<compile_context>
chip_gen: v5e
topology: v5e:2x2
jax: 0.10.0
libtpu: 0.0.40
codegen_flags: <defaults>
</compile_context>

<pallas_src>
import functools

import jax
import jax.numpy as jnp
from jax.experimental import pallas as pl
from jax.experimental.pallas import tpu as pltpu


def _mlp_kernel(xt_ref, w1_ref, b1_ref, w2_ref, b2_ref, w3_ref, b3_ref, o_ref):
    # Layer 1: (H, D_in)bf16 @ (D_in, TB)bf16 -> (H, TB), f32 accumulate (MXU).
    h = jnp.dot(w1_ref[...], xt_ref[...], preferred_element_type=jnp.float32)
    h = jnp.maximum(h + b1_ref[...], 0.0)               # bias + ReLU fused, f32 (VPU)
    # Layer 2: (H, H)bf16 @ (H, TB)bf16 -> (H, TB), f32 accumulate (MXU).
    h = jnp.dot(w2_ref[...], h.astype(jnp.bfloat16),
                preferred_element_type=jnp.float32)
    h = jnp.maximum(h + b2_ref[...], 0.0)
    # Layer 3 (H -> 1) on the MXU: (1, H)bf16 @ (H, TB)bf16 -> (1, TB), f32 acc.
    y = jnp.dot(w3_ref[...], h.astype(jnp.bfloat16),
                preferred_element_type=jnp.float32)
    o_ref[...] = y + b3_ref[0, 0]                        # scalar bias from SMEM


def _pick_tb(batch):
    """Batch-tile (lane) width: one tile per TensorCore, lane-aligned, VMEM-capped."""
    try:
        kind = jax.devices()[0].device_kind.lower()
    except Exception:  # pragma: no cover - defensive
        kind = ""
    n_cores = 2 if ("v7" in kind or "tpu7" in kind) else 1   # v7x has 2 TCs/chip
    tb = -(-batch // n_cores)          # ceil(batch / cores)
    tb = -(-tb // 128) * 128           # lane-align to 128
    return int(min(max(tb, 128), 2048))  # cap keeps v7x (64 MiB VMEM) comfortable


def prepare_params(w1, b1, w2, b2, w3, b3):
    """One-time layout/dtype prep, hoisted OUT of the per-call path:
    bf16 MXU weights, (H,1) column biases for lane-broadcast, (1,H) w3 row,
    (1,1) f32 b3 for SMEM."""
    return (w1.astype(jnp.bfloat16), b1.reshape(-1, 1),
            w2.astype(jnp.bfloat16), b2.reshape(-1, 1),
            w3.reshape(1, -1).astype(jnp.bfloat16), b3.reshape(1, 1))


@functools.partial(jax.jit, static_argnames=("tb",))
def overfit_mlp_forward(x, w1_bf, b1, w2_bf, b2, w3_bf, b3, *, tb=None):
    """x: (B, D_in) f32; params from prepare_params(). Returns (B, 1) f32."""
    B, d_in = x.shape
    H = w1_bf.shape[0]
    if tb is None:
        tb = _pick_tb(B)
    grid_b = pl.cdiv(B, tb)
    b_pad = grid_b * tb

    # Batch-on-lanes layout: one wrapper-side transpose (layout plumbing) so every
    # in-kernel matmul and the output store are lane-dense.  Per-call bf16 cast of
    # the activations only; weights arrive pre-cast.
    xt = x.T.astype(jnp.bfloat16)
    if b_pad != B:
        xt = jnp.pad(xt, ((0, 0), (0, b_pad - B)))

    flops = 2 * b_pad * (d_in * H + H * H + H)
    bytes_accessed = (
        b_pad * d_in * 2                      # x^T bf16
        + (w1_bf.size + w2_bf.size + w3_bf.size) * 2
        + (b1.size + b2.size + b3.size) * 4
        + b_pad * 4)                          # output row f32

    const = lambda i: (0, 0)   # grid-invariant blocks: stay VMEM-resident
    single = pl.Buffered(1)    # no double-buffering for invariant blocks

    yt = pl.pallas_call(
        _mlp_kernel,
        out_shape=jax.ShapeDtypeStruct((1, b_pad), jnp.float32),
        grid=(grid_b,),
        in_specs=[
            pl.BlockSpec((d_in, tb), lambda i: (0, i)),                   # x^T tile
            pl.BlockSpec((H, d_in), const, pipeline_mode=single),         # W1
            pl.BlockSpec((H, 1), const, pipeline_mode=single),            # b1 column
            pl.BlockSpec((H, H), const, pipeline_mode=single),            # W2
            pl.BlockSpec((H, 1), const, pipeline_mode=single),            # b2 column
            pl.BlockSpec((1, H), const, pipeline_mode=single),            # W3 row
            pl.BlockSpec(memory_space=pltpu.MemorySpace.SMEM),            # b3 scalar
        ],
        out_specs=pl.BlockSpec((1, tb), lambda i: (0, i)),
        compiler_params=pltpu.CompilerParams(
            dimension_semantics=("parallel",)),        # v7x: shard batch tiles on TCs
        cost_estimate=pl.CostEstimate(
            flops=flops, transcendentals=0, bytes_accessed=bytes_accessed),
    )(xt, w1_bf, b1, w2_bf, b2, w3_bf, b3)

    return yt[0, :B].reshape(B, 1)


def init_params(key, input_size, hidden_size, output_size):
    """kaiming_normal_(mode='fan_in', nonlinearity='relu') -> std = sqrt(2/fan_in);
    biases zero.  Weights in PyTorch (out_features, in_features) layout."""
    k1, k2, k3 = jax.random.split(key, 3)
    w1 = jax.random.normal(k1, (hidden_size, input_size), jnp.float32) * jnp.sqrt(
        2.0 / input_size)
    w2 = jax.random.normal(k2, (hidden_size, hidden_size), jnp.float32) * jnp.sqrt(
        2.0 / hidden_size)
    w3 = jax.random.normal(k3, (output_size, hidden_size), jnp.float32) * jnp.sqrt(
        2.0 / hidden_size)
    b1 = jnp.zeros((hidden_size,), jnp.float32)
    b2 = jnp.zeros((hidden_size,), jnp.float32)
    b3 = jnp.zeros((output_size,), jnp.float32)
    return w1, b1, w2, b2, w3, b3


if __name__ == "__main__":
    # Shapes consistent with the module spec: hidden_size=512, output_size=1,
    # input_size=16 (small example_x), batch=512.
    batch, input_size, hidden_size, output_size = 512, 16, 512, 1

    key = jax.random.PRNGKey(0)
    kx, kp = jax.random.split(key)
    x = jax.random.normal(kx, (batch, input_size), jnp.float32)

    w1, b1, w2, b2, w3, b3 = init_params(kp, input_size, hidden_size, output_size)
    params = prepare_params(w1, b1, w2, b2, w3, b3)   # one-time bf16 cast / layout

    out = overfit_mlp_forward(x, *params)
    out = jax.block_until_ready(out)

    # Pure-JAX reference of the same forward pass (same bf16-in / f32-acc math).
    xb = x.astype(jnp.bfloat16)
    h = jnp.maximum(
        jnp.dot(xb, w1.T.astype(jnp.bfloat16),
                preferred_element_type=jnp.float32) + b1[None, :], 0.0)
    h = jnp.maximum(
        jnp.dot(h.astype(jnp.bfloat16), w2.T.astype(jnp.bfloat16),
                preferred_element_type=jnp.float32) + b2[None, :], 0.0)
    ref = jnp.dot(h.astype(jnp.bfloat16), w3.T.astype(jnp.bfloat16),
                  preferred_element_type=jnp.float32) + b3[None, :]

    assert out.shape == (batch, output_size)
    assert jnp.allclose(out, ref, atol=1e-2, rtol=1e-2), float(
        jnp.max(jnp.abs(out - ref)))

    print("KERNEL_OK")
</pallas_src>

<mosaic_0001>
module attributes {stable_mosaic.version = 11 : i64} {
  func.func @_mlp_kernel(%arg0: i32, %arg1: memref<16x512xbf16, #tpu.memory_space<vmem>>, %arg2: memref<512x16xbf16, #tpu.memory_space<vmem>>, %arg3: memref<512x1xf32, #tpu.memory_space<vmem>>, %arg4: memref<512x512xbf16, #tpu.memory_space<vmem>>, %arg5: memref<512x1xf32, #tpu.memory_space<vmem>>, %arg6: memref<1x512xbf16, #tpu.memory_space<vmem>>, %arg7: memref<1x1xf32, #tpu.memory_space<smem>>, %arg8: memref<1x512xf32, #tpu.memory_space<vmem>>) attributes {dimension_semantics = [#tpu.dimension_semantics<parallel>], iteration_bounds = array<i64: 1>, scalar_prefetch = 0 : i64, scratch_operands = 0 : i64, tpu.core_type = #tpu.core_type<tc>, window_params = [{transform_indices = @transform_0, window_bounds = array<i64: 16, 512>}, {pipeline_mode = #tpu.pipeline_mode<synchronous>, transform_indices = @transform_1, window_bounds = array<i64: 512, 16>}, {pipeline_mode = #tpu.pipeline_mode<synchronous>, transform_indices = @transform_2, window_bounds = array<i64: 512, 1>}, {pipeline_mode = #tpu.pipeline_mode<synchronous>, transform_indices = @transform_3, window_bounds = array<i64: 512, 512>}, {pipeline_mode = #tpu.pipeline_mode<synchronous>, transform_indices = @transform_4, window_bounds = array<i64: 512, 1>}, {pipeline_mode = #tpu.pipeline_mode<synchronous>, transform_indices = @transform_5, window_bounds = array<i64: 1, 512>}, {transform_indices = @transform_6, window_bounds = array<i64: 1, 1>}, {transform_indices = @transform_7, window_bounds = array<i64: 1, 512>}]} {
    %c0 = arith.constant 0 : index
    %c0_0 = arith.constant 0 : index
    %0 = vector.load %arg2[%c0, %c0_0] : memref<512x16xbf16, #tpu.memory_space<vmem>>, vector<512x16xbf16>
    %c0_1 = arith.constant 0 : index
    %c0_2 = arith.constant 0 : index
    %1 = vector.load %arg1[%c0_1, %c0_2] : memref<16x512xbf16, #tpu.memory_space<vmem>>, vector<16x512xbf16>
    %cst = arith.constant dense<0.000000e+00> : vector<512x512xf32>
    %2 = tpu.matmul %0, %1, %cst {dimension_numbers = #tpu.dot_dimension_numbers<[1], [0], [0], [1], [0, 0, 1, 1], [], []>} : vector<512x16xbf16>, vector<16x512xbf16>, vector<512x512xf32> -> vector<512x512xf32>
    %c0_3 = arith.constant 0 : index
    %c0_4 = arith.constant 0 : index
    %3 = vector.load %arg3[%c0_3, %c0_4] : memref<512x1xf32, #tpu.memory_space<vmem>>, vector<512x1xf32>
    %4 = vector.broadcast %3 : vector<512x1xf32> to vector<512x512xf32>
    %5 = arith.addf %2, %4 : vector<512x512xf32>
    %cst_5 = arith.constant 0.000000e+00 : f32
    %6 = vector.broadcast %cst_5 : f32 to vector<512x512xf32>
    %7 = arith.maximumf %5, %6 : vector<512x512xf32>
    %c0_6 = arith.constant 0 : index
    %c0_7 = arith.constant 0 : index
    %8 = vector.load %arg4[%c0_6, %c0_7] : memref<512x512xbf16, #tpu.memory_space<vmem>>, vector<512x512xbf16>
    %9 = arith.truncf %7 : vector<512x512xf32> to vector<512x512xbf16>
    %cst_8 = arith.constant dense<0.000000e+00> : vector<512x512xf32>
    %10 = tpu.matmul %8, %9, %cst_8 {dimension_numbers = #tpu.dot_dimension_numbers<[1], [0], [0], [1], [0, 0, 1, 1], [], []>} : vector<512x512xbf16>, vector<512x512xbf16>, vector<512x512xf32> -> vector<512x512xf32>
    %c0_9 = arith.constant 0 : index
    %c0_10 = arith.constant 0 : index
    %11 = vector.load %arg5[%c0_9, %c0_10] : memref<512x1xf32, #tpu.memory_space<vmem>>, vector<512x1xf32>
    %12 = vector.broadcast %11 : vector<512x1xf32> to vector<512x512xf32>
    %13 = arith.addf %10, %12 : vector<512x512xf32>
    %cst_11 = arith.constant 0.000000e+00 : f32
    %14 = vector.broadcast %cst_11 : f32 to vector<512x512xf32>
    %15 = arith.maximumf %13, %14 : vector<512x512xf32>
    %c0_12 = arith.constant 0 : index
    %c0_13 = arith.constant 0 : index
    %16 = vector.load %arg6[%c0_12, %c0_13] : memref<1x512xbf16, #tpu.memory_space<vmem>>, vector<1x512xbf16>
    %17 = arith.truncf %15 : vector<512x512xf32> to vector<512x512xbf16>
    %cst_14 = arith.constant dense<0.000000e+00> : vector<1x512xf32>
    %18 = tpu.matmul %16, %17, %cst_14 {dimension_numbers = #tpu.dot_dimension_numbers<[1], [0], [0], [1], [0, 0, 1, 1], [], []>} : vector<1x512xbf16>, vector<512x512xbf16>, vector<1x512xf32> -> vector<1x512xf32>
    %c0_15 = arith.constant 0 : index
    %c0_16 = arith.constant 0 : index
    %19 = memref.load %arg7[%c0_15, %c0_16] : memref<1x1xf32, #tpu.memory_space<smem>>
    %20 = vector.broadcast %19 : f32 to vector<1x512xf32>
    %21 = arith.addf %18, %20 : vector<1x512xf32>
    %c0_17 = arith.constant 0 : index
    %c0_18 = arith.constant 0 : index
    %22 = vector.load %arg8[%c0_17, %c0_18] : memref<1x512xf32, #tpu.memory_space<vmem>>, vector<1x512xf32>
    tpu.vector_store %arg8[%c0_17, %c0_18], %21 {strides = array<i32>} : memref<1x512xf32, #tpu.memory_space<vmem>>, vector<1x512xf32>,
    return
  }
  func.func @transform_0(%arg0: i32) -> (i32, i32) {
    %c0_i32 = arith.constant 0 : i32
    %c0_i32_0 = arith.constant 0 : i32
    return %c0_i32, %arg0 : i32, i32
  }
  func.func @transform_1(%arg0: i32) -> (i32, i32) {
    %c0_i32 = arith.constant 0 : i32
    %c0_i32_0 = arith.constant 0 : i32
    %c0_i32_1 = arith.constant 0 : i32
    return %c0_i32, %c0_i32_0 : i32, i32
  }
  func.func @transform_2(%arg0: i32) -> (i32, i32) {
    %c0_i32 = arith.constant 0 : i32
    %c0_i32_0 = arith.constant 0 : i32
    %c0_i32_1 = arith.constant 0 : i32
    return %c0_i32, %c0_i32_0 : i32, i32
  }
  func.func @transform_3(%arg0: i32) -> (i32, i32) {
    %c0_i32 = arith.constant 0 : i32
    %c0_i32_0 = arith.constant 0 : i32
    %c0_i32_1 = arith.constant 0 : i32
    return %c0_i32, %c0_i32_0 : i32, i32
  }
  func.func @transform_4(%arg0: i32) -> (i32, i32) {
    %c0_i32 = arith.constant 0 : i32
    %c0_i32_0 = arith.constant 0 : i32
    %c0_i32_1 = arith.constant 0 : i32
    return %c0_i32, %c0_i32_0 : i32, i32
  }
  func.func @transform_5(%arg0: i32) -> (i32, i32) {
    %c0_i32 = arith.constant 0 : i32
    %c0_i32_0 = arith.constant 0 : i32
    %c0_i32_1 = arith.constant 0 : i32
    return %c0_i32, %c0_i32_0 : i32, i32
  }
  func.func @transform_6(%arg0: i32) -> (i32, i32) {
    %c0_i32 = arith.constant 0 : i32
    %c0_i32_0 = arith.constant 0 : i32
    %c0_i32_1 = arith.constant 0 : i32
    return %c0_i32, %c0_i32_0 : i32, i32
  }
  func.func @transform_7(%arg0: i32) -> (i32, i32) {
    %c0_i32 = arith.constant 0 : i32
    %c0_i32_0 = arith.constant 0 : i32
    return %c0_i32, %arg0 : i32, i32
  }
}

</mosaic_0001>

<llo_original>
// kernel: overfit_mlp_forward.1
$region0: #{overfit_mlp_forward.1}
  #allocation0 [shape = 'u32[]', space=smem, size = 0x4, offset = 0x4, fixed_abs, tag = 'smem constant byte address 0x4 - core index']
  #allocation1 [shape = 'u32[72,128]{1,0:T(1,128)}', space=vmem, size = 0x9000, scoped, tag = 'internal scratch']
  #allocation2 [shape = 'f32[1,1]{1,0:T(1,128)S(6)}', space=smem, size = 0x200, scoped, tag = 'scoped memory for overfit_mlp_forward.1']
  %s0 = inlined_call_operand.vmem [shape: bf16[16,512], index: 0, kind: input, shape index: {}]
  %s1 = inlined_call_operand.vmem [shape: bf16[512,16], index: 1, kind: input, shape index: {}]
  %s2 = inlined_call_operand.vmem [shape: f32[512,1], index: 2, kind: input, shape index: {}]
  %s3 = inlined_call_operand.vmem [shape: bf16[512,512], index: 3, kind: input, shape index: {}]
  %s4 = inlined_call_operand.vmem [shape: f32[512,1], index: 4, kind: input, shape index: {}]
  %s5 = inlined_call_operand.vmem [shape: bf16[1,512], index: 5, kind: input, shape index: {}]
  %s6 = inlined_call_operand.<no memory space> [shape: f32[1,1], index: 6, kind: input, shape index: {}]
  %s7 = inlined_call_operand.hbm [shape: f32[1,512], index: 7, kind: output, shape index: {}]
  %s8 = sld [smem:[#allocation0]]
  $region38: #{overfit_mlp_forward.1} parent=0
    _
  %s10 = ssub.s32 1, %s8
  %s11 = scalar_select 0, %s10, %s8
  %12 = sst [smem:[#allocation2]] %s6
  $region1: #{overfit_mlp_forward.1} parent=0
    #allocation3 [shape = 'u8[2048]{0}', space=vmem, size = 0x800, scoped, tag = 'output window, operand 0, single buffered']
    #allocation4 [shape = 's32[1]{0}', space=sflag, size = 0x4, scoped, tag = 'scoped memory for overfit_mlp_forward.1']
    %13 = vsyncpa [#allocation4], 0
    // Predicated region
    $region2: #{overfit_mlp_forward.1} parent=1 // pred_check
      _
    $region3: #{overfit_mlp_forward.1} parent=1 // pred_check_branch
      %15 = sbr.rel (0) target = $region5
    $region4: #{overfit_mlp_forward.1} parent=1 // pred_region
      _
    $region5: #{overfit_mlp_forward.1} parent=1 // pred_fallthru
      _
    // Predicated region
    $region6: #{overfit_mlp_forward.1} parent=1 // pred_check
      _
    $region7: #{overfit_mlp_forward.1} parent=1 // pred_check_branch
      %17 = sbr.rel (0) target = $region9
    $region8: #{overfit_mlp_forward.1} parent=1 // pred_region
      _
    $region9: #{overfit_mlp_forward.1} parent=1 // pred_fallthru
      _
    // Predicated region
    $region10: #{overfit_mlp_forward.1} parent=1 // pred_check
      _
    $region11: #{overfit_mlp_forward.1} parent=1 // pred_check_branch
      %19 = sbr.rel (0) target = $region13
    $region12: #{overfit_mlp_forward.1} parent=1 // pred_region
      _
    $region13: #{overfit_mlp_forward.1} parent=1 // pred_fallthru
      _
    // Predicated region
    $region14: #{overfit_mlp_forward.1} parent=1 // pred_check
      _
    $region15: #{overfit_mlp_forward.1} parent=1 // pred_check_branch
      %21 = sbr.rel (0) target = $region17
    $region16: #{overfit_mlp_forward.1} parent=1 // pred_region
      _
    $region17: #{overfit_mlp_forward.1} parent=1 // pred_fallthru
      _
    // Predicated region
    $region18: #{overfit_mlp_forward.1} parent=1 // pred_check
      _
    $region19: #{overfit_mlp_forward.1} parent=1 // pred_check_branch
      %23 = sbr.rel (0) target = $region21
    $region20: #{overfit_mlp_forward.1} parent=1 // pred_region
      _
    $region21: #{overfit_mlp_forward.1} parent=1 // pred_fallthru
      _
    // Predicated region
    $region22: #{overfit_mlp_forward.1} parent=1 // pred_check
      _
    $region23: #{overfit_mlp_forward.1} parent=1 // pred_check_branch
      %25 = sbr.rel (0) target = $region25
    $region24: #{overfit_mlp_forward.1} parent=1 // pred_region
      _
    $region25: #{overfit_mlp_forward.1} parent=1 // pred_fallthru
      _
    // Predicated region
    $region26: #{overfit_mlp_forward.1} parent=1 // pred_check
      _
    $region27: #{overfit_mlp_forward.1} parent=1 // pred_check_branch
      %27 = sbr.rel (0) target = $region29
    $region28: #{overfit_mlp_forward.1} parent=1 // pred_region
      _
    $region29: #{overfit_mlp_forward.1} parent=1 // pred_fallthru
      _
    %v29 = vld [vmem:[%s1] sm:$0xf]
    %v30 = vld [vmem:[%s1 + $0x4] sm:$0xf]
    %v31 = vld [vmem:[%s1 + $0x8] sm:$0xf]
    %v32 = vld [vmem:[%s1 + $0xc] sm:$0xf]
    %v33 = vld [vmem:[%s1 + $0x10] sm:$0xf]
    %v34 = vld [vmem:[%s1 + $0x14] sm:$0xf]
    %v35 = vld [vmem:[%s1 + $0x18] sm:$0xf]
    %v36 = vld [vmem:[%s1 + $0x1c] sm:$0xf]
    %v37 = vld [vmem:[%s1 + $0x20] sm:$0xf]
    %v38 = vld [vmem:[%s1 + $0x24] sm:$0xf]
    %v39 = vld [vmem:[%s1 + $0x28] sm:$0xf]
    %v40 = vld [vmem:[%s1 + $0x2c] sm:$0xf]
    %v41 = vld [vmem:[%s1 + $0x30] sm:$0xf]
    %v42 = vld [vmem:[%s1 + $0x34] sm:$0xf]
    %v43 = vld [vmem:[%s1 + $0x38] sm:$0xf]
    %v44 = vld [vmem:[%s1 + $0x3c] sm:$0xf]
    %v45 = vld [vmem:[%s1 + $0x40] sm:$0xf]
    %v46 = vld [vmem:[%s1 + $0x44] sm:$0xf]
    %v47 = vld [vmem:[%s1 + $0x48] sm:$0xf]
    %v48 = vld [vmem:[%s1 + $0x4c] sm:$0xf]
    %v49 = vld [vmem:[%s1 + $0x50] sm:$0xf]
    %v50 = vld [vmem:[%s1 + $0x54] sm:$0xf]
    %v51 = vld [vmem:[%s1 + $0x58] sm:$0xf]
    %v52 = vld [vmem:[%s1 + $0x5c] sm:$0xf]
    %v53 = vld [vmem:[%s1 + $0x60] sm:$0xf]
    %v54 = vld [vmem:[%s1 + $0x64] sm:$0xf]
    %v55 = vld [vmem:[%s1 + $0x68] sm:$0xf]
    %v56 = vld [vmem:[%s1 + $0x6c] sm:$0xf]
    %v57 = vld [vmem:[%s1 + $0x70] sm:$0xf]
    %v58 = vld [vmem:[%s1 + $0x74] sm:$0xf]
    %v59 = vld [vmem:[%s1 + $0x78] sm:$0xf]
    %v60 = vld [vmem:[%s1 + $0x7c] sm:$0xf]
    %v61 = vld [vmem:[%s1 + $0x80] sm:$0xf]
    %v62 = vld [vmem:[%s1 + $0x84] sm:$0xf]
    %v63 = vld [vmem:[%s1 + $0x88] sm:$0xf]
    %v64 = vld [vmem:[%s1 + $0x8c] sm:$0xf]
    %v65 = vld [vmem:[%s1 + $0x90] sm:$0xf]
    %v66 = vld [vmem:[%s1 + $0x94] sm:$0xf]
    %v67 = vld [vmem:[%s1 + $0x98] sm:$0xf]
    %v68 = vld [vmem:[%s1 + $0x9c] sm:$0xf]
    %v69 = vld [vmem:[%s1 + $0xa0] sm:$0xf]
    %v70 = vld [vmem:[%s1 + $0xa4] sm:$0xf]
    %v71 = vld [vmem:[%s1 + $0xa8] sm:$0xf]
    %v72 = vld [vmem:[%s1 + $0xac] sm:$0xf]
    %v73 = vld [vmem:[%s1 + $0xb0] sm:$0xf]
    %v74 = vld [vmem:[%s1 + $0xb4] sm:$0xf]
    %v75 = vld [vmem:[%s1 + $0xb8] sm:$0xf]
    %v76 = vld [vmem:[%s1 + $0xbc] sm:$0xf]
    %v77 = vld [vmem:[%s1 + $0xc0] sm:$0xf]
    %v78 = vld [vmem:[%s1 + $0xc4] sm:$0xf]
    %v79 = vld [vmem:[%s1 + $0xc8] sm:$0xf]
    %v80 = vld [vmem:[%s1 + $0xcc] sm:$0xf]
    %v81 = vld [vmem:[%s1 + $0xd0] sm:$0xf]
    %v82 = vld [vmem:[%s1 + $0xd4] sm:$0xf]
    %v83 = vld [vmem:[%s1 + $0xd8] sm:$0xf]
    %v84 = vld [vmem:[%s1 + $0xdc] sm:$0xf]
    %v85 = vld [vmem:[%s1 + $0xe0] sm:$0xf]
    %v86 = vld [vmem:[%s1 + $0xe4] sm:$0xf]
    %v87 = vld [vmem:[%s1 + $0xe8] sm:$0xf]
    %v88 = vld [vmem:[%s1 + $0xec] sm:$0xf]
    %v89 = vld [vmem:[%s1 + $0xf0] sm:$0xf]
    %v90 = vld [vmem:[%s1 + $0xf4] sm:$0xf]
    %v91 = vld [vmem:[%s1 + $0xf8] sm:$0xf]
    %v92 = vld [vmem:[%s1 + $0xfc] sm:$0xf]
    %v93 = vld [vmem:[%s0] sm:$0xff]
    %v94 = vld [vmem:[%s0 + $0x8] sm:$0xff]
    %v95 = vld [vmem:[%s0 + $0x10] sm:$0xff]
    %v96 = vld [vmem:[%s0 + $0x18] sm:$0xff]
    %v97 = vld [vmem:[%s2] sm:$0xff]
    %v98 = vld [vmem:[%s2 + $0x8] sm:$0xff]
    %v99 = vld [vmem:[%s2 + $0x10] sm:$0xff]
    %v100 = vld [vmem:[%s2 + $0x18] sm:$0xff]
    %v101 = vld [vmem:[%s2 + $0x20] sm:$0xff]
    %v102 = vld [vmem:[%s2 + $0x28] sm:$0xff]
    %v103 = vld [vmem:[%s2 + $0x30] sm:$0xff]
    %v104 = vld [vmem:[%s2 + $0x38] sm:$0xff]
    %v105 = vld [vmem:[%s2 + $0x40] sm:$0xff]
    %v106 = vld [vmem:[%s2 + $0x48] sm:$0xff]
    %v107 = vld [vmem:[%s2 + $0x50] sm:$0xff]
    %v108 = vld [vmem:[%s2 + $0x58] sm:$0xff]
    %v109 = vld [vmem:[%s2 + $0x60] sm:$0xff]
    %v110 = vld [vmem:[%s2 + $0x68] sm:$0xff]
    %v111 = vld [vmem:[%s2 + $0x70] sm:$0xff]
    %v112 = vld [vmem:[%s2 + $0x78] sm:$0xff]
    %v113 = vld [vmem:[%s2 + $0x80] sm:$0xff]
    %v114 = vld [vmem:[%s2 + $0x88] sm:$0xff]
    %v115 = vld [vmem:[%s2 + $0x90] sm:$0xff]
    %v116 = vld [vmem:[%s2 + $0x98] sm:$0xff]
    %v117 = vld [vmem:[%s2 + $0xa0] sm:$0xff]
    %v118 = vld [vmem:[%s2 + $0xa8] sm:$0xff]
    %v119 = vld [vmem:[%s2 + $0xb0] sm:$0xff]
    %v120 = vld [vmem:[%s2 + $0xb8] sm:$0xff]
    %v121 = vld [vmem:[%s2 + $0xc0] sm:$0xff]
    %v122 = vld [vmem:[%s2 + $0xc8] sm:$0xff]
    %v123 = vld [vmem:[%s2 + $0xd0] sm:$0xff]
    %v124 = vld [vmem:[%s2 + $0xd8] sm:$0xff]
    %v125 = vld [vmem:[%s2 + $0xe0] sm:$0xff]
    %v126 = vld [vmem:[%s2 + $0xe8] sm:$0xff]
    %v127 = vld [vmem:[%s2 + $0xf0] sm:$0xff]
    %v128 = vld [vmem:[%s2 + $0xf8] sm:$0xff]
    %v129 = vld [vmem:[%s2 + $0x100] sm:$0xff]
    %v130 = vld [vmem:[%s2 + $0x108] sm:$0xff]
    %v131 = vld [vmem:[%s2 + $0x110] sm:$0xff]
    %v132 = vld [vmem:[%s2 + $0x118] sm:$0xff]
    %v133 = vld [vmem:[%s2 + $0x120] sm:$0xff]
    %v134 = vld [vmem:[%s2 + $0x128] sm:$0xff]
    %v135 = vld [vmem:[%s2 + $0x130] sm:$0xff]
    %v136 = vld [vmem:[%s2 + $0x138] sm:$0xff]
    %v137 = vld [vmem:[%s2 + $0x140] sm:$0xff]
    %v138 = vld [vmem:[%s2 + $0x148] sm:$0xff]
    %v139 = vld [vmem:[%s2 + $0x150] sm:$0xff]
    %v140 = vld [vmem:[%s2 + $0x158] sm:$0xff]
    %v141 = vld [vmem:[%s2 + $0x160] sm:$0xff]
    %v142 = vld [vmem:[%s2 + $0x168] sm:$0xff]
    %v143 = vld [vmem:[%s2 + $0x170] sm:$0xff]
    %v144 = vld [vmem:[%s2 + $0x178] sm:$0xff]
    %v145 = vld [vmem:[%s2 + $0x180] sm:$0xff]
    %v146 = vld [vmem:[%s2 + $0x188] sm:$0xff]
    %v147 = vld [vmem:[%s2 + $0x190] sm:$0xff]
    %v148 = vld [vmem:[%s2 + $0x198] sm:$0xff]
    %v149 = vld [vmem:[%s2 + $0x1a0] sm:$0xff]
    %v150 = vld [vmem:[%s2 + $0x1a8] sm:$0xff]
    %v151 = vld [vmem:[%s2 + $0x1b0] sm:$0xff]
    %v152 = vld [vmem:[%s2 + $0x1b8] sm:$0xff]
    %v153 = vld [vmem:[%s2 + $0x1c0] sm:$0xff]
    %v154 = vld [vmem:[%s2 + $0x1c8] sm:$0xff]
    %v155 = vld [vmem:[%s2 + $0x1d0] sm:$0xff]
    %v156 = vld [vmem:[%s2 + $0x1d8] sm:$0xff]
    %v157 = vld [vmem:[%s2 + $0x1e0] sm:$0xff]
    %v158 = vld [vmem:[%s2 + $0x1e8] sm:$0xff]
    %v159 = vld [vmem:[%s2 + $0x1f0] sm:$0xff]
    %v160 = vld [vmem:[%s2 + $0x1f8] sm:$0xff]
    %162 = vset.pattern.permute.xlu0 0
    %163 = vperm.xlu0 %162, %v97
    %v164 = vpop.permute.xlu0 %163
    %167 = vset.pattern.permute.xlu0 0
    %168 = vperm.xlu0 %167, %v98
    %v169 = vpop.permute.xlu0 %168
    %172 = vset.pattern.permute.xlu0 0
    %173 = vperm.xlu0 %172, %v99
    %v174 = vpop.permute.xlu0 %173
    %177 = vset.pattern.permute.xlu0 0
    %178 = vperm.xlu0 %177, %v100
    %v179 = vpop.permute.xlu0 %178
    %182 = vset.pattern.permute.xlu0 0
    %183 = vperm.xlu0 %182, %v101
    %v184 = vpop.permute.xlu0 %183
    %187 = vset.pattern.permute.xlu0 0
    %188 = vperm.xlu0 %187, %v102
    %v189 = vpop.permute.xlu0 %188
    %192 = vset.pattern.permute.xlu0 0
    %193 = vperm.xlu0 %192, %v103
    %v194 = vpop.permute.xlu0 %193
    %197 = vset.pattern.permute.xlu0 0
    %198 = vperm.xlu0 %197, %v104
    %v199 = vpop.permute.xlu0 %198
    %202 = vset.pattern.permute.xlu0 0
    %203 = vperm.xlu0 %202, %v105
    %v204 = vpop.permute.xlu0 %203
    %207 = vset.pattern.permute.xlu0 0
    %208 = vperm.xlu0 %207, %v106
    %v209 = vpop.permute.xlu0 %208
    %212 = vset.pattern.permute.xlu0 0
    %213 = vperm.xlu0 %212, %v107
    %v214 = vpop.permute.xlu0 %213
    %217 = vset.pattern.permute.xlu0 0
    %218 = vperm.xlu0 %217, %v108
    %v219 = vpop.permute.xlu0 %218
    %222 = vset.pattern.permute.xlu0 0
    %223 = vperm.xlu0 %222, %v109
    %v224 = vpop.permute.xlu0 %223
    %227 = vset.pattern.permute.xlu0 0
    %228 = vperm.xlu0 %227, %v110
    %v229 = vpop.permute.xlu0 %228
    %232 = vset.pattern.permute.xlu0 0
    %233 = vperm.xlu0 %232, %v111
    %v234 = vpop.permute.xlu0 %233
    %237 = vset.pattern.permute.xlu0 0
    %238 = vperm.xlu0 %237, %v112
    %v239 = vpop.permute.xlu0 %238
    %242 = vset.pattern.permute.xlu0 0
    %243 = vperm.xlu0 %242, %v113
    %v244 = vpop.permute.xlu0 %243
    %247 = vset.pattern.permute.xlu0 0
    %248 = vperm.xlu0 %247, %v114
    %v249 = vpop.permute.xlu0 %248
    %252 = vset.pattern.permute.xlu0 0
    %253 = vperm.xlu0 %252, %v115
    %v254 = vpop.permute.xlu0 %253
    %257 = vset.pattern.permute.xlu0 0
    %258 = vperm.xlu0 %257, %v116
    %v259 = vpop.permute.xlu0 %258
    %262 = vset.pattern.permute.xlu0 0
    %263 = vperm.xlu0 %262, %v117
    %v264 = vpop.permute.xlu0 %263
    %267 = vset.pattern.permute.xlu0 0
    %268 = vperm.xlu0 %267, %v118
    %v269 = vpop.permute.xlu0 %268
    %272 = vset.pattern.permute.xlu0 0
    %273 = vperm.xlu0 %272, %v119
    %v274 = vpop.permute.xlu0 %273
    %277 = vset.pattern.permute.xlu0 0
    %278 = vperm.xlu0 %277, %v120
    %v279 = vpop.permute.xlu0 %278
    %282 = vset.pattern.permute.xlu0 0
    %283 = vperm.xlu0 %282, %v121
    %v284 = vpop.permute.xlu0 %283
    %287 = vset.pattern.permute.xlu0 0
    %288 = vperm.xlu0 %287, %v122
    %v289 = vpop.permute.xlu0 %288
    %292 = vset.pattern.permute.xlu0 0
    %293 = vperm.xlu0 %292, %v123
    %v294 = vpop.permute.xlu0 %293
    %297 = vset.pattern.permute.xlu0 0
    %298 = vperm.xlu0 %297, %v124
    %v299 = vpop.permute.xlu0 %298
    %302 = vset.pattern.permute.xlu0 0
    %303 = vperm.xlu0 %302, %v125
    %v304 = vpop.permute.xlu0 %303
    %307 = vset.pattern.permute.xlu0 0
    %308 = vperm.xlu0 %307, %v126
    %v309 = vpop.permute.xlu0 %308
    %312 = vset.pattern.permute.xlu0 0
    %313 = vperm.xlu0 %312, %v127
    %v314 = vpop.permute.xlu0 %313
    %317 = vset.pattern.permute.xlu0 0
    %318 = vperm.xlu0 %317, %v128
    %v319 = vpop.permute.xlu0 %318
    %322 = vset.pattern.permute.xlu0 0
    %323 = vperm.xlu0 %322, %v129
    %v324 = vpop.permute.xlu0 %323
    %327 = vset.pattern.permute.xlu0 0
    %328 = vperm.xlu0 %327, %v130
    %v329 = vpop.permute.xlu0 %328
    %332 = vset.pattern.permute.xlu0 0
    %333 = vperm.xlu0 %332, %v131
    %v334 = vpop.permute.xlu0 %333
    %337 = vset.pattern.permute.xlu0 0
    %338 = vperm.xlu0 %337, %v132
    %v339 = vpop.permute.xlu0 %338
    %342 = vset.pattern.permute.xlu0 0
    %343 = vperm.xlu0 %342, %v133
    %v344 = vpop.permute.xlu0 %343
    %347 = vset.pattern.permute.xlu0 0
    %348 = vperm.xlu0 %347, %v134
    %v349 = vpop.permute.xlu0 %348
    %352 = vset.pattern.permute.xlu0 0
    %353 = vperm.xlu0 %352, %v135
    %v354 = vpop.permute.xlu0 %353
    %357 = vset.pattern.permute.xlu0 0
    %358 = vperm.xlu0 %357, %v136
    %v359 = vpop.permute.xlu0 %358
    %362 = vset.pattern.permute.xlu0 0
    %363 = vperm.xlu0 %362, %v137
    %v364 = vpop.permute.xlu0 %363
    %367 = vset.pattern.permute.xlu0 0
    %368 = vperm.xlu0 %367, %v138
    %v369 = vpop.permute.xlu0 %368
    %372 = vset.pattern.permute.xlu0 0
    %373 = vperm.xlu0 %372, %v139
    %v374 = vpop.permute.xlu0 %373
    %377 = vset.pattern.permute.xlu0 0
    %378 = vperm.xlu0 %377, %v140
    %v379 = vpop.permute.xlu0 %378
    %382 = vset.pattern.permute.xlu0 0
    %383 = vperm.xlu0 %382, %v141
    %v384 = vpop.permute.xlu0 %383
    %387 = vset.pattern.permute.xlu0 0
    %388 = vperm.xlu0 %387, %v142
    %v389 = vpop.permute.xlu0 %388
    %392 = vset.pattern.permute.xlu0 0
    %393 = vperm.xlu0 %392, %v143
    %v394 = vpop.permute.xlu0 %393
    %397 = vset.pattern.permute.xlu0 0
    %398 = vperm.xlu0 %397, %v144
    %v399 = vpop.permute.xlu0 %398
    %402 = vset.pattern.permute.xlu0 0
    %403 = vperm.xlu0 %402, %v145
    %v404 = vpop.permute.xlu0 %403
    %407 = vset.pattern.permute.xlu0 0
    %408 = vperm.xlu0 %407, %v146
    %v409 = vpop.permute.xlu0 %408
    %412 = vset.pattern.permute.xlu0 0
    %413 = vperm.xlu0 %412, %v147
    %v414 = vpop.permute.xlu0 %413
    %417 = vset.pattern.permute.xlu0 0
    %418 = vperm.xlu0 %417, %v148
    %v419 = vpop.permute.xlu0 %418
    %422 = vset.pattern.permute.xlu0 0
    %423 = vperm.xlu0 %422, %v149
    %v424 = vpop.permute.xlu0 %423
    %427 = vset.pattern.permute.xlu0 0
    %428 = vperm.xlu0 %427, %v150
    %v429 = vpop.permute.xlu0 %428
    %432 = vset.pattern.permute.xlu0 0
    %433 = vperm.xlu0 %432, %v151
    %v434 = vpop.permute.xlu0 %433
    %437 = vset.pattern.permute.xlu0 0
    %438 = vperm.xlu0 %437, %v152
    %v439 = vpop.permute.xlu0 %438
    %442 = vset.pattern.permute.xlu0 0
    %443 = vperm.xlu0 %442, %v153
    %v444 = vpop.permute.xlu0 %443
    %447 = vset.pattern.permute.xlu0 0
    %448 = vperm.xlu0 %447, %v154
    %v449 = vpop.permute.xlu0 %448
    %452 = vset.pattern.permute.xlu0 0
    %453 = vperm.xlu0 %452, %v155
    %v454 = vpop.permute.xlu0 %453
    %457 = vset.pattern.permute.xlu0 0
    %458 = vperm.xlu0 %457, %v156
    %v459 = vpop.permute.xlu0 %458
    %462 = vset.pattern.permute.xlu0 0
    %463 = vperm.xlu0 %462, %v157
    %v464 = vpop.permute.xlu0 %463
    %467 = vset.pattern.permute.xlu0 0
    %468 = vperm.xlu0 %467, %v158
    %v469 = vpop.permute.xlu0 %468
    %472 = vset.pattern.permute.xlu0 0
    %473 = vperm.xlu0 %472, %v159
    %v474 = vpop.permute.xlu0 %473
    %477 = vset.pattern.permute.xlu0 0
    %478 = vperm.xlu0 %477, %v160
    %v479 = vpop.permute.xlu0 %478
    %v545 = vunpack.c.l.b16 %v29
    %v546 = vunpack.c.l.b16 %v30
    %v547 = vunpack.c.l.b16 %v31
    %v548 = vunpack.c.l.b16 %v32
    %v549 = vunpack.c.l.b16 %v33
    %v550 = vunpack.c.l.b16 %v34
    %v551 = vunpack.c.l.b16 %v35
    %v552 = vunpack.c.l.b16 %v36
    %v553 = vunpack.c.l.b16 %v37
    %v554 = vunpack.c.l.b16 %v38
    %v555 = vunpack.c.l.b16 %v39
    %v556 = vunpack.c.l.b16 %v40
    %v557 = vunpack.c.l.b16 %v41
    %v558 = vunpack.c.l.b16 %v42
    %v559 = vunpack.c.l.b16 %v43
    %v560 = vunpack.c.l.b16 %v44
    %v561 = vunpack.c.l.b16 %v45
    %v562 = vunpack.c.l.b16 %v46
    %v563 = vunpack.c.l.b16 %v47
    %v564 = vunpack.c.l.b16 %v48
    %v565 = vunpack.c.l.b16 %v49
    %v566 = vunpack.c.l.b16 %v50
    %v567 = vunpack.c.l.b16 %v51
    %v568 = vunpack.c.l.b16 %v52
    %v569 = vunpack.c.l.b16 %v53
    %v570 = vunpack.c.l.b16 %v54
    %v571 = vunpack.c.l.b16 %v55
    %v572 = vunpack.c.l.b16 %v56
    %v573 = vunpack.c.l.b16 %v57
    %v574 = vunpack.c.l.b16 %v58
    %v575 = vunpack.c.l.b16 %v59
    %v576 = vunpack.c.l.b16 %v60
    %v577 = vunpack.c.l.b16 %v61
    %v578 = vunpack.c.l.b16 %v62
    %v579 = vunpack.c.l.b16 %v63
    %v580 = vunpack.c.l.b16 %v64
    %v581 = vunpack.c.l.b16 %v65
    %v582 = vunpack.c.l.b16 %v66
    %v583 = vunpack.c.l.b16 %v67
    %v584 = vunpack.c.l.b16 %v68
    %v585 = vunpack.c.l.b16 %v69
    %v586 = vunpack.c.l.b16 %v70
    %v587 = vunpack.c.l.b16 %v71
    %v588 = vunpack.c.l.b16 %v72
    %v589 = vunpack.c.l.b16 %v73
    %v590 = vunpack.c.l.b16 %v74
    %v591 = vunpack.c.l.b16 %v75
    %v592 = vunpack.c.l.b16 %v76
    %v593 = vunpack.c.l.b16 %v77
    %v594 = vunpack.c.l.b16 %v78
    %v595 = vunpack.c.l.b16 %v79
    %v596 = vunpack.c.l.b16 %v80
    %v597 = vunpack.c.l.b16 %v81
    %v598 = vunpack.c.l.b16 %v82
    %v599 = vunpack.c.l.b16 %v83
    %v600 = vunpack.c.l.b16 %v84
    %v601 = vunpack.c.l.b16 %v85
    %v602 = vunpack.c.l.b16 %v86
    %v603 = vunpack.c.l.b16 %v87
    %v604 = vunpack.c.l.b16 %v88
    %v605 = vunpack.c.l.b16 %v89
    %v606 = vunpack.c.l.b16 %v90
    %v607 = vunpack.c.l.b16 %v91
    %v608 = vunpack.c.l.b16 %v92
    %v609 = vpack.c.b16 %v546, %v545
    %v610 = vpack.c.b16 %v548, %v547
    %v611 = vpack.c.b16 %v550, %v549
    %v612 = vpack.c.b16 %v552, %v551
    %v613 = vpack.c.b16 %v554, %v553
    %v614 = vpack.c.b16 %v556, %v555
    %v615 = vpack.c.b16 %v558, %v557
    %v616 = vpack.c.b16 %v560, %v559
    %v617 = vpack.c.b16 %v562, %v561
    %v618 = vpack.c.b16 %v564, %v563
    %v619 = vpack.c.b16 %v566, %v565
    %v620 = vpack.c.b16 %v568, %v567
    %v621 = vpack.c.b16 %v570, %v569
    %v622 = vpack.c.b16 %v572, %v571
    %v623 = vpack.c.b16 %v574, %v573
    %v624 = vpack.c.b16 %v576, %v575
    %v625 = vpack.c.b16 %v578, %v577
    %v626 = vpack.c.b16 %v580, %v579
    %v627 = vpack.c.b16 %v582, %v581
    %v628 = vpack.c.b16 %v584, %v583
    %v629 = vpack.c.b16 %v586, %v585
    %v630 = vpack.c.b16 %v588, %v587
    %v631 = vpack.c.b16 %v590, %v589
    %v632 = vpack.c.b16 %v592, %v591
    %v633 = vpack.c.b16 %v594, %v593
    %v634 = vpack.c.b16 %v596, %v595
    %v635 = vpack.c.b16 %v598, %v597
    %v636 = vpack.c.b16 %v600, %v599
    %v637 = vpack.c.b16 %v602, %v601
    %v638 = vpack.c.b16 %v604, %v603
    %v639 = vpack.c.b16 %v606, %v605
    %v640 = vpack.c.b16 %v608, %v607
    %v645 = vunpack.c.l.b16 %v93
    %v646 = vunpack.c.h.b16 %v93
    %v647 = vunpack.c.l.b16 %v94
    %v648 = vunpack.c.h.b16 %v94
    %v649 = vunpack.c.l.b16 %v95
    %v650 = vunpack.c.h.b16 %v95
    %v651 = vunpack.c.l.b16 %v96
    %v652 = vunpack.c.h.b16 %v96
    %v653 = vpack.c.b16 %v649, %v645
    %v654 = vpack.c.b16 %v650, %v646
    %v655 = vpack.c.b16 %v651, %v647
    %v656 = vpack.c.b16 %v652, %v648
    %vm661 = vcmask 130048
    %v663 = vsel %vm661, %v609, 0
    %v666 = vsel %vm661, %v610, 0
    %v669 = vsel %vm661, %v611, 0
    %v672 = vsel %vm661, %v612, 0
    %v675 = vsel %vm661, %v613, 0
    %v678 = vsel %vm661, %v614, 0
    %v681 = vsel %vm661, %v615, 0
    %v684 = vsel %vm661, %v616, 0
    %v687 = vsel %vm661, %v617, 0
    %v690 = vsel %vm661, %v618, 0
    %v693 = vsel %vm661, %v619, 0
    %v696 = vsel %vm661, %v620, 0
    %v699 = vsel %vm661, %v621, 0
    %v702 = vsel %vm661, %v622, 0
    %v705 = vsel %vm661, %v623, 0
    %v708 = vsel %vm661, %v624, 0
    %v711 = vsel %vm661, %v625, 0
    %v714 = vsel %vm661, %v626, 0
    %v717 = vsel %vm661, %v627, 0
    %v720 = vsel %vm661, %v628, 0
    %v723 = vsel %vm661, %v629, 0
    %v726 = vsel %vm661, %v630, 0
    %v729 = vsel %vm661, %v631, 0
    %v732 = vsel %vm661, %v632, 0
    %v735 = vsel %vm661, %v633, 0
    %v738 = vsel %vm661, %v634, 0
    %v741 = vsel %vm661, %v635, 0
    %v744 = vsel %vm661, %v636, 0
    %v747 = vsel %vm661, %v637, 0
    %v750 = vsel %vm661, %v638, 0
    %v753 = vsel %vm661, %v639, 0
    %v756 = vsel %vm661, %v640, 0
    %758 = vmatpush.bf16.msra.mxu0 0
    %759 = vmatpush.bf16.msra.mxu0 0
    %760 = vmatpush.bf16.msra.mxu0 0
    %761 = vmatpush.bf16.msra.mxu0 0
    %762 = vmatpush.bf16.msra.mxu0 0
    %763 = vmatpush.bf16.msra.mxu0 0
    %764 = vmatpush.bf16.msra.mxu0 0
    %765 = vmatpush.bf16.msra.mxu0 %v653
    %766 = vmatmul.bf16.gmra.mxu0 %v663
    %v767 = vpop.f32.mrf.mxu0
    %v768 = vadd.f32 %v164, %v767
    %v769 = vpop.f32.mrf.mxu0
    %v770 = vadd.f32 %v169, %v769
    %771 = vmatmul.bf16.gmra.mxu0 %v666
    %v772 = vpop.f32.mrf.mxu0
    %v773 = vadd.f32 %v174, %v772
    %v774 = vpop.f32.mrf.mxu0
    %v775 = vadd.f32 %v179, %v774
    %776 = vmatmul.bf16.gmra.mxu0 %v669
    %v777 = vpop.f32.mrf.mxu0
    %v778 = vadd.f32 %v184, %v777
    %v779 = vpop.f32.mrf.mxu0
    %v780 = vadd.f32 %v189, %v779
    %781 = vmatmul.bf16.gmra.mxu0 %v672
    %v782 = vpop.f32.mrf.mxu0
    %v783 = vadd.f32 %v194, %v782
    %v784 = vpop.f32.mrf.mxu0
    %v785 = vadd.f32 %v199, %v784
    %786 = vmatmul.bf16.gmra.mxu0 %v675
    %v787 = vpop.f32.mrf.mxu0
    %v788 = vadd.f32 %v204, %v787
    %v789 = vpop.f32.mrf.mxu0
    %v790 = vadd.f32 %v209, %v789
    %791 = vmatmul.bf16.gmra.mxu0 %v678
    %v792 = vpop.f32.mrf.mxu0
    %v793 = vadd.f32 %v214, %v792
    %v794 = vpop.f32.mrf.mxu0
    %v795 = vadd.f32 %v219, %v794
    %796 = vmatmul.bf16.gmra.mxu0 %v681
    %v797 = vpop.f32.mrf.mxu0
    %v798 = vadd.f32 %v224, %v797
    %v799 = vpop.f32.mrf.mxu0
    %v800 = vadd.f32 %v229, %v799
    %801 = vmatmul.bf16.gmra.mxu0 %v684
    %v802 = vpop.f32.mrf.mxu0
    %v803 = vadd.f32 %v234, %v802
    %v804 = vpop.f32.mrf.mxu0
    %v805 = vadd.f32 %v239, %v804
    %806 = vmatmul.bf16.gmra.mxu0 %v687
    %v807 = vpop.f32.mrf.mxu0
    %v808 = vadd.f32 %v244, %v807
    %v809 = vpop.f32.mrf.mxu0
    %v810 = vadd.f32 %v249, %v809
    %811 = vmatmul.bf16.gmra.mxu0 %v690
    %v812 = vpop.f32.mrf.mxu0
    %v813 = vadd.f32 %v254, %v812
    %v814 = vpop.f32.mrf.mxu0
    %v815 = vadd.f32 %v259, %v814
    %816 = vmatmul.bf16.gmra.mxu0 %v693
    %v817 = vpop.f32.mrf.mxu0
    %v818 = vadd.f32 %v264, %v817
    %v819 = vpop.f32.mrf.mxu0
    %v820 = vadd.f32 %v269, %v819
    %821 = vmatmul.bf16.gmra.mxu0 %v696
    %v822 = vpop.f32.mrf.mxu0
    %v823 = vadd.f32 %v274, %v822
    %v824 = vpop.f32.mrf.mxu0
    %v825 = vadd.f32 %v279, %v824
    %826 = vmatmul.bf16.gmra.mxu0 %v699
    %v827 = vpop.f32.mrf.mxu0
    %v828 = vadd.f32 %v284, %v827
    %v829 = vpop.f32.mrf.mxu0
    %v830 = vadd.f32 %v289, %v829
    %831 = vmatmul.bf16.gmra.mxu0 %v702
    %v832 = vpop.f32.mrf.mxu0
    %v833 = vadd.f32 %v294, %v832
    %v834 = vpop.f32.mrf.mxu0
    %v835 = vadd.f32 %v299, %v834
    %836 = vmatmul.bf16.gmra.mxu0 %v705
    %v837 = vpop.f32.mrf.mxu0
    %v838 = vadd.f32 %v304, %v837
    %v839 = vpop.f32.mrf.mxu0
    %v840 = vadd.f32 %v309, %v839
    %841 = vmatmul.bf16.gmra.mxu0 %v708
    %v842 = vpop.f32.mrf.mxu0
    %v843 = vadd.f32 %v314, %v842
    %v844 = vpop.f32.mrf.mxu0
    %v845 = vadd.f32 %v319, %v844
    %846 = vmatmul.bf16.gmra.mxu0 %v711
    %v847 = vpop.f32.mrf.mxu0
    %v848 = vadd.f32 %v324, %v847
    %v849 = vpop.f32.mrf.mxu0
    %v850 = vadd.f32 %v329, %v849
    %851 = vmatmul.bf16.gmra.mxu0 %v714
    %v852 = vpop.f32.mrf.mxu0
    %v853 = vadd.f32 %v334, %v852
    %v854 = vpop.f32.mrf.mxu0
    %v855 = vadd.f32 %v339, %v854
    %856 = vmatmul.bf16.gmra.mxu0 %v717
    %v857 = vpop.f32.mrf.mxu0
    %v858 = vadd.f32 %v344, %v857
    %v859 = vpop.f32.mrf.mxu0
    %v860 = vadd.f32 %v349, %v859
    %861 = vmatmul.bf16.gmra.mxu0 %v720
    %v862 = vpop.f32.mrf.mxu0
    %v863 = vadd.f32 %v354, %v862
    %v864 = vpop.f32.mrf.mxu0
    %v865 = vadd.f32 %v359, %v864
    %866 = vmatmul.bf16.gmra.mxu0 %v723
    %v867 = vpop.f32.mrf.mxu0
    %v868 = vadd.f32 %v364, %v867
    %v869 = vpop.f32.mrf.mxu0
    %v870 = vadd.f32 %v369, %v869
    %871 = vmatmul.bf16.gmra.mxu0 %v726
    %v872 = vpop.f32.mrf.mxu0
    %v873 = vadd.f32 %v374, %v872
    %v874 = vpop.f32.mrf.mxu0
    %v875 = vadd.f32 %v379, %v874
    %876 = vmatmul.bf16.gmra.mxu0 %v729
    %v877 = vpop.f32.mrf.mxu0
    %v878 = vadd.f32 %v384, %v877
    %v879 = vpop.f32.mrf.mxu0
    %v880 = vadd.f32 %v389, %v879
    %881 = vmatmul.bf16.gmra.mxu0 %v732
    %v882 = vpop.f32.mrf.mxu0
    %v883 = vadd.f32 %v394, %v882
    %v884 = vpop.f32.mrf.mxu0
    %v885 = vadd.f32 %v399, %v884
    %886 = vmatmul.bf16.gmra.mxu0 %v735
    %v887 = vpop.f32.mrf.mxu0
    %v888 = vadd.f32 %v404, %v887
    %v889 = vpop.f32.mrf.mxu0
    %v890 = vadd.f32 %v409, %v889
    %891 = vmatmul.bf16.gmra.mxu0 %v738
    %v892 = vpop.f32.mrf.mxu0
    %v893 = vadd.f32 %v414, %v892
    %v894 = vpop.f32.mrf.mxu0
    %v895 = vadd.f32 %v419, %v894
    %896 = vmatmul.bf16.gmra.mxu0 %v741
    %v897 = vpop.f32.mrf.mxu0
    %v898 = vadd.f32 %v424, %v897
    %v899 = vpop.f32.mrf.mxu0
    %v900 = vadd.f32 %v429, %v899
    %901 = vmatmul.bf16.gmra.mxu0 %v744
    %v902 = vpop.f32.mrf.mxu0
    %v903 = vadd.f32 %v434, %v902
    %v904 = vpop.f32.mrf.mxu0
    %v905 = vadd.f32 %v439, %v904
    %906 = vmatmul.bf16.gmra.mxu0 %v747
    %v907 = vpop.f32.mrf.mxu0
    %v908 = vadd.f32 %v444, %v907
    %v909 = vpop.f32.mrf.mxu0
    %v910 = vadd.f32 %v449, %v909
    %911 = vmatmul.bf16.gmra.mxu0 %v750
    %v912 = vpop.f32.mrf.mxu0
    %v913 = vadd.f32 %v454, %v912
    %v914 = vpop.f32.mrf.mxu0
    %v915 = vadd.f32 %v459, %v914
    %916 = vmatmul.bf16.gmra.mxu0 %v753
    %v917 = vpop.f32.mrf.mxu0
    %v918 = vadd.f32 %v464, %v917
    %v919 = vpop.f32.mrf.mxu0
    %v920 = vadd.f32 %v469, %v919
    %921 = vmatmul.bf16.gmra.mxu0 %v756
    %v922 = vpop.f32.mrf.mxu0
    %v923 = vadd.f32 %v474, %v922
    %v924 = vpop.f32.mrf.mxu0
    %v925 = vadd.f32 %v479, %v924
    %926 = vdwg.mxu0
    %927 = vmatpush.bf16.msra.mxu0 0
    %928 = vmatpush.bf16.msra.mxu0 0
    %929 = vmatpush.bf16.msra.mxu0 0
    %930 = vmatpush.bf16.msra.mxu0 0
    %931 = vmatpush.bf16.msra.mxu0 0
    %932 = vmatpush.bf16.msra.mxu0 0
    %933 = vmatpush.bf16.msra.mxu0 0
    %934 = vmatpush.bf16.msra.mxu0 %v654
    %935 = vmatmul.bf16.gmra.mxu0 %v663
    %v936 = vpop.f32.mrf.mxu0
    %v937 = vadd.f32 %v164, %v936
    %v938 = vpop.f32.mrf.mxu0
    %v939 = vadd.f32 %v169, %v938
    %940 = vmatmul.bf16.gmra.mxu0 %v666
    %v941 = vpop.f32.mrf.mxu0
    %v942 = vadd.f32 %v174, %v941
    %v943 = vpop.f32.mrf.mxu0
    %v944 = vadd.f32 %v179, %v943
    %945 = vmatmul.bf16.gmra.mxu0 %v669
    %v946 = vpop.f32.mrf.mxu0
    %v947 = vadd.f32 %v184, %v946
    %v948 = vpop.f32.mrf.mxu0
    %v949 = vadd.f32 %v189, %v948
    %950 = vmatmul.bf16.gmra.mxu0 %v672
    %v951 = vpop.f32.mrf.mxu0
    %v952 = vadd.f32 %v194, %v951
    %v953 = vpop.f32.mrf.mxu0
    %v954 = vadd.f32 %v199, %v953
    %955 = vmatmul.bf16.gmra.mxu0 %v675
    %v956 = vpop.f32.mrf.mxu0
    %v957 = vadd.f32 %v204, %v956
    %v958 = vpop.f32.mrf.mxu0
    %v959 = vadd.f32 %v209, %v958
    %960 = vmatmul.bf16.gmra.mxu0 %v678
    %v961 = vpop.f32.mrf.mxu0
    %v962 = vadd.f32 %v214, %v961
    %v963 = vpop.f32.mrf.mxu0
    %v964 = vadd.f32 %v219, %v963
    %965 = vmatmul.bf16.gmra.mxu0 %v681
    %v966 = vpop.f32.mrf.mxu0
    %v967 = vadd.f32 %v224, %v966
    %v968 = vpop.f32.mrf.mxu0
    %v969 = vadd.f32 %v229, %v968
    %970 = vmatmul.bf16.gmra.mxu0 %v684
    %v971 = vpop.f32.mrf.mxu0
    %v972 = vadd.f32 %v234, %v971
    %v973 = vpop.f32.mrf.mxu0
    %v974 = vadd.f32 %v239, %v973
    %975 = vmatmul.bf16.gmra.mxu0 %v687
    %v976 = vpop.f32.mrf.mxu0
    %v977 = vadd.f32 %v244, %v976
    %v978 = vpop.f32.mrf.mxu0
    %v979 = vadd.f32 %v249, %v978
    %980 = vmatmul.bf16.gmra.mxu0 %v690
    %v981 = vpop.f32.mrf.mxu0
    %v982 = vadd.f32 %v254, %v981
    %v983 = vpop.f32.mrf.mxu0
    %v984 = vadd.f32 %v259, %v983
    %985 = vmatmul.bf16.gmra.mxu0 %v693
    %v986 = vpop.f32.mrf.mxu0
    %v987 = vadd.f32 %v264, %v986
    %v988 = vpop.f32.mrf.mxu0
    %v989 = vadd.f32 %v269, %v988
    %990 = vmatmul.bf16.gmra.mxu0 %v696
    %v991 = vpop.f32.mrf.mxu0
    %v992 = vadd.f32 %v274, %v991
    %v993 = vpop.f32.mrf.mxu0
    %v994 = vadd.f32 %v279, %v993
    %995 = vmatmul.bf16.gmra.mxu0 %v699
    %v996 = vpop.f32.mrf.mxu0
    %v997 = vadd.f32 %v284, %v996
    %v998 = vpop.f32.mrf.mxu0
    %v999 = vadd.f32 %v289, %v998
    %1000 = vmatmul.bf16.gmra.mxu0 %v702
    %v1001 = vpop.f32.mrf.mxu0
    %v1002 = vadd.f32 %v294, %v1001
    %v1003 = vpop.f32.mrf.mxu0
    %v1004 = vadd.f32 %v299, %v1003
    %1005 = vmatmul.bf16.gmra.mxu0 %v705
    %v1006 = vpop.f32.mrf.mxu0
    %v1007 = vadd.f32 %v304, %v1006
    %v1008 = vpop.f32.mrf.mxu0
    %v1009 = vadd.f32 %v309, %v1008
    %1010 = vmatmul.bf16.gmra.mxu0 %v708
    %v1011 = vpop.f32.mrf.mxu0
    %v1012 = vadd.f32 %v314, %v1011
    %v1013 = vpop.f32.mrf.mxu0
    %v1014 = vadd.f32 %v319, %v1013
    %1015 = vmatmul.bf16.gmra.mxu0 %v711
    %v1016 = vpop.f32.mrf.mxu0
    %v1017 = vadd.f32 %v324, %v1016
    %v1018 = vpop.f32.mrf.mxu0
    %v1019 = vadd.f32 %v329, %v1018
    %1020 = vmatmul.bf16.gmra.mxu0 %v714
    %v1021 = vpop.f32.mrf.mxu0
    %v1022 = vadd.f32 %v334, %v1021
    %v1023 = vpop.f32.mrf.mxu0
    %v1024 = vadd.f32 %v339, %v1023
    %1025 = vmatmul.bf16.gmra.mxu0 %v717
    %v1026 = vpop.f32.mrf.mxu0
    %v1027 = vadd.f32 %v344, %v1026
    %v1028 = vpop.f32.mrf.mxu0
    %v1029 = vadd.f32 %v349, %v1028
    %1030 = vmatmul.bf16.gmra.mxu0 %v720
    %v1031 = vpop.f32.mrf.mxu0
    %v1032 = vadd.f32 %v354, %v1031
    %v1033 = vpop.f32.mrf.mxu0
    %v1034 = vadd.f32 %v359, %v1033
    %1035 = vmatmul.bf16.gmra.mxu0 %v723
    %v1036 = vpop.f32.mrf.mxu0
    %v1037 = vadd.f32 %v364, %v1036
    %v1038 = vpop.f32.mrf.mxu0
    %v1039 = vadd.f32 %v369, %v1038
    %1040 = vmatmul.bf16.gmra.mxu0 %v726
    %v1041 = vpop.f32.mrf.mxu0
    %v1042 = vadd.f32 %v374, %v1041
    %v1043 = vpop.f32.mrf.mxu0
    %v1044 = vadd.f32 %v379, %v1043
    %1045 = vmatmul.bf16.gmra.mxu0 %v729
    %v1046 = vpop.f32.mrf.mxu0
    %v1047 = vadd.f32 %v384, %v1046
    %v1048 = vpop.f32.mrf.mxu0
    %v1049 = vadd.f32 %v389, %v1048
    %1050 = vmatmul.bf16.gmra.mxu0 %v732
    %v1051 = vpop.f32.mrf.mxu0
    %v1052 = vadd.f32 %v394, %v1051
    %v1053 = vpop.f32.mrf.mxu0
    %v1054 = vadd.f32 %v399, %v1053
    %1055 = vmatmul.bf16.gmra.mxu0 %v735
    %v1056 = vpop.f32.mrf.mxu0
    %v1057 = vadd.f32 %v404, %v1056
    %v1058 = vpop.f32.mrf.mxu0
    %v1059 = vadd.f32 %v409, %v1058
    %1060 = vmatmul.bf16.gmra.mxu0 %v738
    %v1061 = vpop.f32.mrf.mxu0
    %v1062 = vadd.f32 %v414, %v1061
    %v1063 = vpop.f32.mrf.mxu0
    %v1064 = vadd.f32 %v419, %v1063
    %1065 = vmatmul.bf16.gmra.mxu0 %v741
    %v1066 = vpop.f32.mrf.mxu0
    %v1067 = vadd.f32 %v424, %v1066
    %v1068 = vpop.f32.mrf.mxu0
    %v1069 = vadd.f32 %v429, %v1068
    %1070 = vmatmul.bf16.gmra.mxu0 %v744
    %v1071 = vpop.f32.mrf.mxu0
    %v1072 = vadd.f32 %v434, %v1071
    %v1073 = vpop.f32.mrf.mxu0
    %v1074 = vadd.f32 %v439, %v1073
    %1075 = vmatmul.bf16.gmra.mxu0 %v747
    %v1076 = vpop.f32.mrf.mxu0
    %v1077 = vadd.f32 %v444, %v1076
    %v1078 = vpop.f32.mrf.mxu0
    %v1079 = vadd.f32 %v449, %v1078
    %1080 = vmatmul.bf16.gmra.mxu0 %v750
    %v1081 = vpop.f32.mrf.mxu0
    %v1082 = vadd.f32 %v454, %v1081
    %v1083 = vpop.f32.mrf.mxu0
    %v1084 = vadd.f32 %v459, %v1083
    %1085 = vmatmul.bf16.gmra.mxu0 %v753
    %v1086 = vpop.f32.mrf.mxu0
    %v1087 = vadd.f32 %v464, %v1086
    %v1088 = vpop.f32.mrf.mxu0
    %v1089 = vadd.f32 %v469, %v1088
    %1090 = vmatmul.bf16.gmra.mxu0 %v756
    %v1091 = vpop.f32.mrf.mxu0
    %v1092 = vadd.f32 %v474, %v1091
    %v1093 = vpop.f32.mrf.mxu0
    %v1094 = vadd.f32 %v479, %v1093
    %1095 = vdwg.mxu0
    %1096 = vmatpush.bf16.msra.mxu0 0
    %1097 = vmatpush.bf16.msra.mxu0 0
    %1098 = vmatpush.bf16.msra.mxu0 0
    %1099 = vmatpush.bf16.msra.mxu0 0
    %1100 = vmatpush.bf16.msra.mxu0 0
    %1101 = vmatpush.bf16.msra.mxu0 0
    %1102 = vmatpush.bf16.msra.mxu0 0
    %1103 = vmatpush.bf16.msra.mxu0 %v655
    %1104 = vmatmul.bf16.gmra.mxu0 %v663
    %v1105 = vpop.f32.mrf.mxu0
    %v1106 = vadd.f32 %v164, %v1105
    %v1107 = vpop.f32.mrf.mxu0
    %v1108 = vadd.f32 %v169, %v1107
    %1109 = vmatmul.bf16.gmra.mxu0 %v666
    %v1110 = vpop.f32.mrf.mxu0
    %v1111 = vadd.f32 %v174, %v1110
    %v1112 = vpop.f32.mrf.mxu0
    %v1113 = vadd.f32 %v179, %v1112
    %1114 = vmatmul.bf16.gmra.mxu0 %v669
    %v1115 = vpop.f32.mrf.mxu0
    %v1116 = vadd.f32 %v184, %v1115
    %v1117 = vpop.f32.mrf.mxu0
    %v1118 = vadd.f32 %v189, %v1117
    %1119 = vmatmul.bf16.gmra.mxu0 %v672
    %v1120 = vpop.f32.mrf.mxu0
    %v1121 = vadd.f32 %v194, %v1120
    %v1122 = vpop.f32.mrf.mxu0
    %v1123 = vadd.f32 %v199, %v1122
    %1124 = vmatmul.bf16.gmra.mxu0 %v675
    %v1125 = vpop.f32.mrf.mxu0
    %v1126 = vadd.f32 %v204, %v1125
    %v1127 = vpop.f32.mrf.mxu0
    %v1128 = vadd.f32 %v209, %v1127
    %1129 = vmatmul.bf16.gmra.mxu0 %v678
    %v1130 = vpop.f32.mrf.mxu0
    %v1131 = vadd.f32 %v214, %v1130
    %v1132 = vpop.f32.mrf.mxu0
    %v1133 = vadd.f32 %v219, %v1132
    %1134 = vmatmul.bf16.gmra.mxu0 %v681
    %v1135 = vpop.f32.mrf.mxu0
    %v1136 = vadd.f32 %v224, %v1135
    %v1137 = vpop.f32.mrf.mxu0
    %v1138 = vadd.f32 %v229, %v1137
    %1139 = vmatmul.bf16.gmra.mxu0 %v684
    %v1140 = vpop.f32.mrf.mxu0
    %v1141 = vadd.f32 %v234, %v1140
    %v1142 = vpop.f32.mrf.mxu0
    %v1143 = vadd.f32 %v239, %v1142
    %1144 = vmatmul.bf16.gmra.mxu0 %v687
    %v1145 = vpop.f32.mrf.mxu0
    %v1146 = vadd.f32 %v244, %v1145
    %v1147 = vpop.f32.mrf.mxu0
    %v1148 = vadd.f32 %v249, %v1147
    %1149 = vmatmul.bf16.gmra.mxu0 %v690
    %v1150 = vpop.f32.mrf.mxu0
    %v1151 = vadd.f32 %v254, %v1150
    %v1152 = vpop.f32.mrf.mxu0
    %v1153 = vadd.f32 %v259, %v1152
    %1154 = vmatmul.bf16.gmra.mxu0 %v693
    %v1155 = vpop.f32.mrf.mxu0
    %v1156 = vadd.f32 %v264, %v1155
    %v1157 = vpop.f32.mrf.mxu0
    %v1158 = vadd.f32 %v269, %v1157
    %1159 = vmatmul.bf16.gmra.mxu0 %v696
    %v1160 = vpop.f32.mrf.mxu0
    %v1161 = vadd.f32 %v274, %v1160
    %v1162 = vpop.f32.mrf.mxu0
    %v1163 = vadd.f32 %v279, %v1162
    %1164 = vmatmul.bf16.gmra.mxu0 %v699
    %v1165 = vpop.f32.mrf.mxu0
    %v1166 = vadd.f32 %v284, %v1165
    %v1167 = vpop.f32.mrf.mxu0
    %v1168 = vadd.f32 %v289, %v1167
    %1169 = vmatmul.bf16.gmra.mxu0 %v702
    %v1170 = vpop.f32.mrf.mxu0
    %v1171 = vadd.f32 %v294, %v1170
    %v1172 = vpop.f32.mrf.mxu0
    %v1173 = vadd.f32 %v299, %v1172
    %1174 = vmatmul.bf16.gmra.mxu0 %v705
    %v1175 = vpop.f32.mrf.mxu0
    %v1176 = vadd.f32 %v304, %v1175
    %v1177 = vpop.f32.mrf.mxu0
    %v1178 = vadd.f32 %v309, %v1177
    %1179 = vmatmul.bf16.gmra.mxu0 %v708
    %v1180 = vpop.f32.mrf.mxu0
    %v1181 = vadd.f32 %v314, %v1180
    %v1182 = vpop.f32.mrf.mxu0
    %v1183 = vadd.f32 %v319, %v1182
    %1184 = vmatmul.bf16.gmra.mxu0 %v711
    %v1185 = vpop.f32.mrf.mxu0
    %v1186 = vadd.f32 %v324, %v1185
    %v1187 = vpop.f32.mrf.mxu0
    %v1188 = vadd.f32 %v329, %v1187
    %1189 = vmatmul.bf16.gmra.mxu0 %v714
    %v1190 = vpop.f32.mrf.mxu0
    %v1191 = vadd.f32 %v334, %v1190
    %v1192 = vpop.f32.mrf.mxu0
    %v1193 = vadd.f32 %v339, %v1192
    %1194 = vmatmul.bf16.gmra.mxu0 %v717
    %v1195 = vpop.f32.mrf.mxu0
    %v1196 = vadd.f32 %v344, %v1195
    %v1197 = vpop.f32.mrf.mxu0
    %v1198 = vadd.f32 %v349, %v1197
    %1199 = vmatmul.bf16.gmra.mxu0 %v720
    %v1200 = vpop.f32.mrf.mxu0
    %v1201 = vadd.f32 %v354, %v1200
    %v1202 = vpop.f32.mrf.mxu0
    %v1203 = vadd.f32 %v359, %v1202
    %1204 = vmatmul.bf16.gmra.mxu0 %v723
    %v1205 = vpop.f32.mrf.mxu0
    %v1206 = vadd.f32 %v364, %v1205
    %v1207 = vpop.f32.mrf.mxu0
    %v1208 = vadd.f32 %v369, %v1207
    %1209 = vmatmul.bf16.gmra.mxu0 %v726
    %v1210 = vpop.f32.mrf.mxu0
    %v1211 = vadd.f32 %v374, %v1210
    %v1212 = vpop.f32.mrf.mxu0
    %v1213 = vadd.f32 %v379, %v1212
    %1214 = vmatmul.bf16.gmra.mxu0 %v729
    %v1215 = vpop.f32.mrf.mxu0
    %v1216 = vadd.f32 %v384, %v1215
    %v1217 = vpop.f32.mrf.mxu0
    %v1218 = vadd.f32 %v389, %v1217
    %1219 = vmatmul.bf16.gmra.mxu0 %v732
    %v1220 = vpop.f32.mrf.mxu0
    %v1221 = vadd.f32 %v394, %v1220
    %v1222 = vpop.f32.mrf.mxu0
    %v1223 = vadd.f32 %v399, %v1222
    %1224 = vmatmul.bf16.gmra.mxu0 %v735
    %v1225 = vpop.f32.mrf.mxu0
    %v1226 = vadd.f32 %v404, %v1225
    %v1227 = vpop.f32.mrf.mxu0
    %v1228 = vadd.f32 %v409, %v1227
    %1229 = vmatmul.bf16.gmra.mxu0 %v738
    %v1230 = vpop.f32.mrf.mxu0
    %v1231 = vadd.f32 %v414, %v1230
    %v1232 = vpop.f32.mrf.mxu0
    %v1233 = vadd.f32 %v419, %v1232
    %1234 = vmatmul.bf16.gmra.mxu0 %v741
    %v1235 = vpop.f32.mrf.mxu0
    %v1236 = vadd.f32 %v424, %v1235
    %v1237 = vpop.f32.mrf.mxu0
    %v1238 = vadd.f32 %v429, %v1237
    %1239 = vmatmul.bf16.gmra.mxu0 %v744
    %v1240 = vpop.f32.mrf.mxu0
    %v1241 = vadd.f32 %v434, %v1240
    %v1242 = vpop.f32.mrf.mxu0
    %v1243 = vadd.f32 %v439, %v1242
    %1244 = vmatmul.bf16.gmra.mxu0 %v747
    %v1245 = vpop.f32.mrf.mxu0
    %v1246 = vadd.f32 %v444, %v1245
    %v1247 = vpop.f32.mrf.mxu0
    %v1248 = vadd.f32 %v449, %v1247
    %1249 = vmatmul.bf16.gmra.mxu0 %v750
    %v1250 = vpop.f32.mrf.mxu0
    %v1251 = vadd.f32 %v454, %v1250
    %v1252 = vpop.f32.mrf.mxu0
    %v1253 = vadd.f32 %v459, %v1252
    %1254 = vmatmul.bf16.gmra.mxu0 %v753
    %v1255 = vpop.f32.mrf.mxu0
    %v1256 = vadd.f32 %v464, %v1255
    %v1257 = vpop.f32.mrf.mxu0
    %v1258 = vadd.f32 %v469, %v1257
    %1259 = vmatmul.bf16.gmra.mxu0 %v756
    %v1260 = vpop.f32.mrf.mxu0
    %v1261 = vadd.f32 %v474, %v1260
    %v1262 = vpop.f32.mrf.mxu0
    %v1263 = vadd.f32 %v479, %v1262
    %1264 = vdwg.mxu0
    %1265 = vmatpush.bf16.msra.mxu0 0
    %1266 = vmatpush.bf16.msra.mxu0 0
    %1267 = vmatpush.bf16.msra.mxu0 0
    %1268 = vmatpush.bf16.msra.mxu0 0
    %1269 = vmatpush.bf16.msra.mxu0 0
    %1270 = vmatpush.bf16.msra.mxu0 0
    %1271 = vmatpush.bf16.msra.mxu0 0
    %1272 = vmatpush.bf16.msra.mxu0 %v656
    %1273 = vmatmul.bf16.gmra.mxu0 %v663
    %v1274 = vpop.f32.mrf.mxu0
    %v1275 = vadd.f32 %v164, %v1274
    %v1276 = vpop.f32.mrf.mxu0
    %v1277 = vadd.f32 %v169, %v1276
    %1278 = vmatmul.bf16.gmra.mxu0 %v666
    %v1279 = vpop.f32.mrf.mxu0
    %v1280 = vadd.f32 %v174, %v1279
    %v1281 = vpop.f32.mrf.mxu0
    %v1282 = vadd.f32 %v179, %v1281
    %1283 = vmatmul.bf16.gmra.mxu0 %v669
    %v1284 = vpop.f32.mrf.mxu0
    %v1285 = vadd.f32 %v184, %v1284
    %v1286 = vpop.f32.mrf.mxu0
    %v1287 = vadd.f32 %v189, %v1286
    %1288 = vmatmul.bf16.gmra.mxu0 %v672
    %v1289 = vpop.f32.mrf.mxu0
    %v1290 = vadd.f32 %v194, %v1289
    %v1291 = vpop.f32.mrf.mxu0
    %v1292 = vadd.f32 %v199, %v1291
    %1293 = vmatmul.bf16.gmra.mxu0 %v675
    %v1294 = vpop.f32.mrf.mxu0
    %v1295 = vadd.f32 %v204, %v1294
    %v1296 = vpop.f32.mrf.mxu0
    %v1297 = vadd.f32 %v209, %v1296
    %1298 = vmatmul.bf16.gmra.mxu0 %v678
    %v1299 = vpop.f32.mrf.mxu0
    %v1300 = vadd.f32 %v214, %v1299
    %v1301 = vpop.f32.mrf.mxu0
    %v1302 = vadd.f32 %v219, %v1301
    %1303 = vmatmul.bf16.gmra.mxu0 %v681
    %v1304 = vpop.f32.mrf.mxu0
    %v1305 = vadd.f32 %v224, %v1304
    %v1306 = vpop.f32.mrf.mxu0
    %v1307 = vadd.f32 %v229, %v1306
    %1308 = vmatmul.bf16.gmra.mxu0 %v684
    %v1309 = vpop.f32.mrf.mxu0
    %v1310 = vadd.f32 %v234, %v1309
    %v1311 = vpop.f32.mrf.mxu0
    %v1312 = vadd.f32 %v239, %v1311
    %1313 = vmatmul.bf16.gmra.mxu0 %v687
    %v1314 = vpop.f32.mrf.mxu0
    %v1315 = vadd.f32 %v244, %v1314
    %v1316 = vpop.f32.mrf.mxu0
    %v1317 = vadd.f32 %v249, %v1316
    %1318 = vmatmul.bf16.gmra.mxu0 %v690
    %v1319 = vpop.f32.mrf.mxu0
    %v1320 = vadd.f32 %v254, %v1319
    %v1321 = vpop.f32.mrf.mxu0
    %v1322 = vadd.f32 %v259, %v1321
    %1323 = vmatmul.bf16.gmra.mxu0 %v693
    %v1324 = vpop.f32.mrf.mxu0
    %v1325 = vadd.f32 %v264, %v1324
    %v1326 = vpop.f32.mrf.mxu0
    %v1327 = vadd.f32 %v269, %v1326
    %1328 = vmatmul.bf16.gmra.mxu0 %v696
    %v1329 = vpop.f32.mrf.mxu0
    %v1330 = vadd.f32 %v274, %v1329
    %v1331 = vpop.f32.mrf.mxu0
    %v1332 = vadd.f32 %v279, %v1331
    %1333 = vmatmul.bf16.gmra.mxu0 %v699
    %v1334 = vpop.f32.mrf.mxu0
    %v1335 = vadd.f32 %v284, %v1334
    %v1336 = vpop.f32.mrf.mxu0
    %v1337 = vadd.f32 %v289, %v1336
    %1338 = vmatmul.bf16.gmra.mxu0 %v702
    %v1339 = vpop.f32.mrf.mxu0
    %v1340 = vadd.f32 %v294, %v1339
    %v1341 = vpop.f32.mrf.mxu0
    %v1342 = vadd.f32 %v299, %v1341
    %1343 = vmatmul.bf16.gmra.mxu0 %v705
    %v1344 = vpop.f32.mrf.mxu0
    %v1345 = vadd.f32 %v304, %v1344
    %v1346 = vpop.f32.mrf.mxu0
    %v1347 = vadd.f32 %v309, %v1346
    %1348 = vmatmul.bf16.gmra.mxu0 %v708
    %v1349 = vpop.f32.mrf.mxu0
    %v1350 = vadd.f32 %v314, %v1349
    %v1351 = vpop.f32.mrf.mxu0
    %v1352 = vadd.f32 %v319, %v1351
    %1353 = vmatmul.bf16.gmra.mxu0 %v711
    %v1354 = vpop.f32.mrf.mxu0
    %v1355 = vadd.f32 %v324, %v1354
    %v1356 = vpop.f32.mrf.mxu0
    %v1357 = vadd.f32 %v329, %v1356
    %1358 = vmatmul.bf16.gmra.mxu0 %v714
    %v1359 = vpop.f32.mrf.mxu0
    %v1360 = vadd.f32 %v334, %v1359
    %v1361 = vpop.f32.mrf.mxu0
    %v1362 = vadd.f32 %v339, %v1361
    %1363 = vmatmul.bf16.gmra.mxu0 %v717
    %v1364 = vpop.f32.mrf.mxu0
    %v1365 = vadd.f32 %v344, %v1364
    %v1366 = vpop.f32.mrf.mxu0
    %v1367 = vadd.f32 %v349, %v1366
    %1368 = vmatmul.bf16.gmra.mxu0 %v720
    %v1369 = vpop.f32.mrf.mxu0
    %v1370 = vadd.f32 %v354, %v1369
    %v1371 = vpop.f32.mrf.mxu0
    %v1372 = vadd.f32 %v359, %v1371
    %1373 = vmatmul.bf16.gmra.mxu0 %v723
    %v1374 = vpop.f32.mrf.mxu0
    %v1375 = vadd.f32 %v364, %v1374
    %v1376 = vpop.f32.mrf.mxu0
    %v1377 = vadd.f32 %v369, %v1376
    %1378 = vmatmul.bf16.gmra.mxu0 %v726
    %v1379 = vpop.f32.mrf.mxu0
    %v1380 = vadd.f32 %v374, %v1379
    %v1381 = vpop.f32.mrf.mxu0
    %v1382 = vadd.f32 %v379, %v1381
    %1383 = vmatmul.bf16.gmra.mxu0 %v729
    %v1384 = vpop.f32.mrf.mxu0
    %v1385 = vadd.f32 %v384, %v1384
    %v1386 = vpop.f32.mrf.mxu0
    %v1387 = vadd.f32 %v389, %v1386
    %1388 = vmatmul.bf16.gmra.mxu0 %v732
    %v1389 = vpop.f32.mrf.mxu0
    %v1390 = vadd.f32 %v394, %v1389
    %v1391 = vpop.f32.mrf.mxu0
    %v1392 = vadd.f32 %v399, %v1391
    %1393 = vmatmul.bf16.gmra.mxu0 %v735
    %v1394 = vpop.f32.mrf.mxu0
    %v1395 = vadd.f32 %v404, %v1394
    %v1396 = vpop.f32.mrf.mxu0
    %v1397 = vadd.f32 %v409, %v1396
    %1398 = vmatmul.bf16.gmra.mxu0 %v738
    %v1399 = vpop.f32.mrf.mxu0
    %v1400 = vadd.f32 %v414, %v1399
    %v1401 = vpop.f32.mrf.mxu0
    %v1402 = vadd.f32 %v419, %v1401
    %1403 = vmatmul.bf16.gmra.mxu0 %v741
    %v1404 = vpop.f32.mrf.mxu0
    %v1405 = vadd.f32 %v424, %v1404
    %v1406 = vpop.f32.mrf.mxu0
    %v1407 = vadd.f32 %v429, %v1406
    %1408 = vmatmul.bf16.gmra.mxu0 %v744
    %v1409 = vpop.f32.mrf.mxu0
    %v1410 = vadd.f32 %v434, %v1409
    %v1411 = vpop.f32.mrf.mxu0
    %v1412 = vadd.f32 %v439, %v1411
    %1413 = vmatmul.bf16.gmra.mxu0 %v747
    %v1414 = vpop.f32.mrf.mxu0
    %v1415 = vadd.f32 %v444, %v1414
    %v1416 = vpop.f32.mrf.mxu0
    %v1417 = vadd.f32 %v449, %v1416
    %1418 = vmatmul.bf16.gmra.mxu0 %v750
    %v1419 = vpop.f32.mrf.mxu0
    %v1420 = vadd.f32 %v454, %v1419
    %v1421 = vpop.f32.mrf.mxu0
    %v1422 = vadd.f32 %v459, %v1421
    %1423 = vmatmul.bf16.gmra.mxu0 %v753
    %v1424 = vpop.f32.mrf.mxu0
    %v1425 = vadd.f32 %v464, %v1424
    %v1426 = vpop.f32.mrf.mxu0
    %v1427 = vadd.f32 %v469, %v1426
    %1428 = vmatmul.bf16.gmra.mxu0 %v756
    %v1429 = vpop.f32.mrf.mxu0
    %v1430 = vadd.f32 %v474, %v1429
    %v1431 = vpop.f32.mrf.mxu0
    %v1432 = vadd.f32 %v479, %v1431
    %1433 = vdwg.mxu0
    %v1434 = vmax.f32 %v768, 0.0
    %v1435 = vmax.f32 %v937, 0.0
    %v1436 = vmax.f32 %v1106, 0.0
    %v1437 = vmax.f32 %v1275, 0.0
    %v1438 = vmax.f32 %v770, 0.0
    %v1439 = vmax.f32 %v939, 0.0
    %v1440 = vmax.f32 %v1108, 0.0
    %v1441 = vmax.f32 %v1277, 0.0
    %v1442 = vmax.f32 %v773, 0.0
    %v1443 = vmax.f32 %v942, 0.0
    %v1444 = vmax.f32 %v1111, 0.0
    %v1445 = vmax.f32 %v1280, 0.0
    %v1446 = vmax.f32 %v775, 0.0
    %v1447 = vmax.f32 %v944, 0.0
    %v1448 = vmax.f32 %v1113, 0.0
    %v1449 = vmax.f32 %v1282, 0.0
    %v1450 = vmax.f32 %v778, 0.0
    %v1451 = vmax.f32 %v947, 0.0
    %v1452 = vmax.f32 %v1116, 0.0
    %v1453 = vmax.f32 %v1285, 0.0
    %v1454 = vmax.f32 %v780, 0.0
    %v1455 = vmax.f32 %v949, 0.0
    %v1456 = vmax.f32 %v1118, 0.0
    %v1457 = vmax.f32 %v1287, 0.0
    %v1458 = vmax.f32 %v783, 0.0
    %v1459 = vmax.f32 %v952, 0.0
    %v1460 = vmax.f32 %v1121, 0.0
    %v1461 = vmax.f32 %v1290, 0.0
    %v1462 = vmax.f32 %v785, 0.0
    %v1463 = vmax.f32 %v954, 0.0
    %v1464 = vmax.f32 %v1123, 0.0
    %v1465 = vmax.f32 %v1292, 0.0
    %v1466 = vmax.f32 %v788, 0.0
    %v1467 = vmax.f32 %v957, 0.0
    %v1468 = vmax.f32 %v1126, 0.0
    %v1469 = vmax.f32 %v1295, 0.0
    %v1470 = vmax.f32 %v790, 0.0
    %v1471 = vmax.f32 %v959, 0.0
    %v1472 = vmax.f32 %v1128, 0.0
    %v1473 = vmax.f32 %v1297, 0.0
    %v1474 = vmax.f32 %v793, 0.0
    %v1475 = vmax.f32 %v962, 0.0
    %v1476 = vmax.f32 %v1131, 0.0
    %v1477 = vmax.f32 %v1300, 0.0
    %v1478 = vmax.f32 %v795, 0.0
    %v1479 = vmax.f32 %v964, 0.0
    %v1480 = vmax.f32 %v1133, 0.0
    %v1481 = vmax.f32 %v1302, 0.0
    %v1482 = vmax.f32 %v798, 0.0
    %v1483 = vmax.f32 %v967, 0.0
    %v1484 = vmax.f32 %v1136, 0.0
    %v1485 = vmax.f32 %v1305, 0.0
    %v1486 = vmax.f32 %v800, 0.0
    %v1487 = vmax.f32 %v969, 0.0
    %v1488 = vmax.f32 %v1138, 0.0
    %v1489 = vmax.f32 %v1307, 0.0
    %v1490 = vmax.f32 %v803, 0.0
    %v1491 = vmax.f32 %v972, 0.0
    %v1492 = vmax.f32 %v1141, 0.0
    %v1493 = vmax.f32 %v1310, 0.0
    %v1494 = vmax.f32 %v805, 0.0
    %v1495 = vmax.f32 %v974, 0.0
    %v1496 = vmax.f32 %v1143, 0.0
    %v1497 = vmax.f32 %v1312, 0.0
    %v1498 = vmax.f32 %v808, 0.0
    %v1499 = vmax.f32 %v977, 0.0
    %v1500 = vmax.f32 %v1146, 0.0
    %v1501 = vmax.f32 %v1315, 0.0
    %v1502 = vmax.f32 %v810, 0.0
    %v1503 = vmax.f32 %v979, 0.0
    %v1504 = vmax.f32 %v1148, 0.0
    %v1505 = vmax.f32 %v1317, 0.0
    %v1506 = vmax.f32 %v813, 0.0
    %v1507 = vmax.f32 %v982, 0.0
    %v1508 = vmax.f32 %v1151, 0.0
    %v1509 = vmax.f32 %v1320, 0.0
    %v1510 = vmax.f32 %v815, 0.0
    %v1511 = vmax.f32 %v984, 0.0
    %v1512 = vmax.f32 %v1153, 0.0
    %v1513 = vmax.f32 %v1322, 0.0
    %v1514 = vmax.f32 %v818, 0.0
    %v1515 = vmax.f32 %v987, 0.0
    %v1516 = vmax.f32 %v1156, 0.0
    %v1517 = vmax.f32 %v1325, 0.0
    %v1518 = vmax.f32 %v820, 0.0
    %v1519 = vmax.f32 %v989, 0.0
    %v1520 = vmax.f32 %v1158, 0.0
    %v1521 = vmax.f32 %v1327, 0.0
    %v1522 = vmax.f32 %v823, 0.0
    %v1523 = vmax.f32 %v992, 0.0
    %v1524 = vmax.f32 %v1161, 0.0
    %v1525 = vmax.f32 %v1330, 0.0
    %v1526 = vmax.f32 %v825, 0.0
    %v1527 = vmax.f32 %v994, 0.0
    %v1528 = vmax.f32 %v1163, 0.0
    %v1529 = vmax.f32 %v1332, 0.0
    %v1530 = vmax.f32 %v828, 0.0
    %v1531 = vmax.f32 %v997, 0.0
    %v1532 = vmax.f32 %v1166, 0.0
    %v1533 = vmax.f32 %v1335, 0.0
    %v1534 = vmax.f32 %v830, 0.0
    %v1535 = vmax.f32 %v999, 0.0
    %v1536 = vmax.f32 %v1168, 0.0
    %v1537 = vmax.f32 %v1337, 0.0
    %v1538 = vmax.f32 %v833, 0.0
    %v1539 = vmax.f32 %v1002, 0.0
    %v1540 = vmax.f32 %v1171, 0.0
    %v1541 = vmax.f32 %v1340, 0.0
    %v1542 = vmax.f32 %v835, 0.0
    %v1543 = vmax.f32 %v1004, 0.0
    %v1544 = vmax.f32 %v1173, 0.0
    %v1545 = vmax.f32 %v1342, 0.0
    %v1546 = vmax.f32 %v838, 0.0
    %v1547 = vmax.f32 %v1007, 0.0
    %v1548 = vmax.f32 %v1176, 0.0
    %v1549 = vmax.f32 %v1345, 0.0
    %v1550 = vmax.f32 %v840, 0.0
    %v1551 = vmax.f32 %v1009, 0.0
    %v1552 = vmax.f32 %v1178, 0.0
    %v1553 = vmax.f32 %v1347, 0.0
    %v1554 = vmax.f32 %v843, 0.0
    %v1555 = vmax.f32 %v1012, 0.0
    %v1556 = vmax.f32 %v1181, 0.0
    %v1557 = vmax.f32 %v1350, 0.0
    %v1558 = vmax.f32 %v845, 0.0
    %v1559 = vmax.f32 %v1014, 0.0
    %v1560 = vmax.f32 %v1183, 0.0
    %v1561 = vmax.f32 %v1352, 0.0
    %v1562 = vmax.f32 %v848, 0.0
    %v1563 = vmax.f32 %v1017, 0.0
    %v1564 = vmax.f32 %v1186, 0.0
    %v1565 = vmax.f32 %v1355, 0.0
    %v1566 = vmax.f32 %v850, 0.0
    %v1567 = vmax.f32 %v1019, 0.0
    %v1568 = vmax.f32 %v1188, 0.0
    %v1569 = vmax.f32 %v1357, 0.0
    %v1570 = vmax.f32 %v853, 0.0
    %v1571 = vmax.f32 %v1022, 0.0
    %v1572 = vmax.f32 %v1191, 0.0
    %v1573 = vmax.f32 %v1360, 0.0
    %v1574 = vmax.f32 %v855, 0.0
    %v1575 = vmax.f32 %v1024, 0.0
    %v1576 = vmax.f32 %v1193, 0.0
    %v1577 = vmax.f32 %v1362, 0.0
    %v1578 = vmax.f32 %v858, 0.0
    %v1579 = vmax.f32 %v1027, 0.0
    %v1580 = vmax.f32 %v1196, 0.0
    %v1581 = vmax.f32 %v1365, 0.0
    %v1582 = vmax.f32 %v860, 0.0
    %v1583 = vmax.f32 %v1029, 0.0
    %v1584 = vmax.f32 %v1198, 0.0
    %v1585 = vmax.f32 %v1367, 0.0
    %v1586 = vmax.f32 %v863, 0.0
    %v1587 = vmax.f32 %v1032, 0.0
    %v1588 = vmax.f32 %v1201, 0.0
    %v1589 = vmax.f32 %v1370, 0.0
    %v1590 = vmax.f32 %v865, 0.0
    %v1591 = vmax.f32 %v1034, 0.0
    %v1592 = vmax.f32 %v1203, 0.0
    %v1593 = vmax.f32 %v1372, 0.0
    %v1594 = vmax.f32 %v868, 0.0
    %v1595 = vmax.f32 %v1037, 0.0
    %v1596 = vmax.f32 %v1206, 0.0
    %v1597 = vmax.f32 %v1375, 0.0
    %v1598 = vmax.f32 %v870, 0.0
    %v1599 = vmax.f32 %v1039, 0.0
    %v1600 = vmax.f32 %v1208, 0.0
    %v1601 = vmax.f32 %v1377, 0.0
    %v1602 = vmax.f32 %v873, 0.0
    %v1603 = vmax.f32 %v1042, 0.0
    %v1604 = vmax.f32 %v1211, 0.0
    %v1605 = vmax.f32 %v1380, 0.0
    %v1606 = vmax.f32 %v875, 0.0
    %v1607 = vmax.f32 %v1044, 0.0
    %v1608 = vmax.f32 %v1213, 0.0
    %v1609 = vmax.f32 %v1382, 0.0
    %v1610 = vmax.f32 %v878, 0.0
    %v1611 = vmax.f32 %v1047, 0.0
    %v1612 = vmax.f32 %v1216, 0.0
    %v1613 = vmax.f32 %v1385, 0.0
    %v1614 = vmax.f32 %v880, 0.0
    %v1615 = vmax.f32 %v1049, 0.0
    %v1616 = vmax.f32 %v1218, 0.0
    %v1617 = vmax.f32 %v1387, 0.0
    %v1618 = vmax.f32 %v883, 0.0
    %v1619 = vmax.f32 %v1052, 0.0
    %v1620 = vmax.f32 %v1221, 0.0
    %v1621 = vmax.f32 %v1390, 0.0
    %v1622 = vmax.f32 %v885, 0.0
    %v1623 = vmax.f32 %v1054, 0.0
    %v1624 = vmax.f32 %v1223, 0.0
    %v1625 = vmax.f32 %v1392, 0.0
    %v1626 = vmax.f32 %v888, 0.0
    %v1627 = vmax.f32 %v1057, 0.0
    %v1628 = vmax.f32 %v1226, 0.0
    %v1629 = vmax.f32 %v1395, 0.0
    %v1630 = vmax.f32 %v890, 0.0
    %v1631 = vmax.f32 %v1059, 0.0
    %v1632 = vmax.f32 %v1228, 0.0
    %v1633 = vmax.f32 %v1397, 0.0
    %v1634 = vmax.f32 %v893, 0.0
    %v1635 = vmax.f32 %v1062, 0.0
    %v1636 = vmax.f32 %v1231, 0.0
    %v1637 = vmax.f32 %v1400, 0.0
    %v1638 = vmax.f32 %v895, 0.0
    %v1639 = vmax.f32 %v1064, 0.0
    %v1640 = vmax.f32 %v1233, 0.0
    %v1641 = vmax.f32 %v1402, 0.0
    %v1642 = vmax.f32 %v898, 0.0
    %v1643 = vmax.f32 %v1067, 0.0
    %v1644 = vmax.f32 %v1236, 0.0
    %v1645 = vmax.f32 %v1405, 0.0
    %v1646 = vmax.f32 %v900, 0.0
    %v1647 = vmax.f32 %v1069, 0.0
    %v1648 = vmax.f32 %v1238, 0.0
    %v1649 = vmax.f32 %v1407, 0.0
    %v1650 = vmax.f32 %v903, 0.0
    %v1651 = vmax.f32 %v1072, 0.0
    %v1652 = vmax.f32 %v1241, 0.0
    %v1653 = vmax.f32 %v1410, 0.0
    %v1654 = vmax.f32 %v905, 0.0
    %v1655 = vmax.f32 %v1074, 0.0
    %v1656 = vmax.f32 %v1243, 0.0
    %v1657 = vmax.f32 %v1412, 0.0
    %v1658 = vmax.f32 %v908, 0.0
    %v1659 = vmax.f32 %v1077, 0.0
    %v1660 = vmax.f32 %v1246, 0.0
    %v1661 = vmax.f32 %v1415, 0.0
    %v1662 = vmax.f32 %v910, 0.0
    %v1663 = vmax.f32 %v1079, 0.0
    %v1664 = vmax.f32 %v1248, 0.0
    %v1665 = vmax.f32 %v1417, 0.0
    %v1666 = vmax.f32 %v913, 0.0
    %v1667 = vmax.f32 %v1082, 0.0
    %v1668 = vmax.f32 %v1251, 0.0
    %v1669 = vmax.f32 %v1420, 0.0
    %v1670 = vmax.f32 %v915, 0.0
    %v1671 = vmax.f32 %v1084, 0.0
    %v1672 = vmax.f32 %v1253, 0.0
    %v1673 = vmax.f32 %v1422, 0.0
    %v1674 = vmax.f32 %v918, 0.0
    %v1675 = vmax.f32 %v1087, 0.0
    %v1676 = vmax.f32 %v1256, 0.0
    %v1677 = vmax.f32 %v1425, 0.0
    %v1678 = vmax.f32 %v920, 0.0
    %v1679 = vmax.f32 %v1089, 0.0
    %v1680 = vmax.f32 %v1258, 0.0
    %v1681 = vmax.f32 %v1427, 0.0
    %v1682 = vmax.f32 %v923, 0.0
    %v1683 = vmax.f32 %v1092, 0.0
    %v1684 = vmax.f32 %v1261, 0.0
    %v1685 = vmax.f32 %v1430, 0.0
    %v1686 = vmax.f32 %v925, 0.0
    %v1687 = vmax.f32 %v1094, 0.0
    %v1688 = vmax.f32 %v1263, 0.0
    %v1689 = vmax.f32 %v1432, 0.0
    %v1690 = vld [vmem:[%s3] sm:$0xff]
    %v1691 = vld [vmem:[%s3 + $0x8] sm:$0xff]
    %v1692 = vld [vmem:[%s3 + $0x10] sm:$0xff]
    %v1693 = vld [vmem:[%s3 + $0x18] sm:$0xff]
    %v1694 = vld [vmem:[%s3 + $0x20] sm:$0xff]
    %v1695 = vld [vmem:[%s3 + $0x28] sm:$0xff]
    %v1696 = vld [vmem:[%s3 + $0x30] sm:$0xff]
    %v1697 = vld [vmem:[%s3 + $0x38] sm:$0xff]
    %v1698 = vld [vmem:[%s3 + $0x40] sm:$0xff]
    %v1699 = vld [vmem:[%s3 + $0x48] sm:$0xff]
    %v1700 = vld [vmem:[%s3 + $0x50] sm:$0xff]
    %v1701 = vld [vmem:[%s3 + $0x58] sm:$0xff]
    %v1702 = vld [vmem:[%s3 + $0x60] sm:$0xff]
    %v1703 = vld [vmem:[%s3 + $0x68] sm:$0xff]
    %v1704 = vld [vmem:[%s3 + $0x70] sm:$0xff]
    %v1705 = vld [vmem:[%s3 + $0x78] sm:$0xff]
    %v1706 = vld [vmem:[%s3 + $0x80] sm:$0xff]
    %v1707 = vld [vmem:[%s3 + $0x88] sm:$0xff]
    %v1708 = vld [vmem:[%s3 + $0x90] sm:$0xff]
    %v1709 = vld [vmem:[%s3 + $0x98] sm:$0xff]
    %v1710 = vld [vmem:[%s3 + $0xa0] sm:$0xff]
    %v1711 = vld [vmem:[%s3 + $0xa8] sm:$0xff]
    %v1712 = vld [vmem:[%s3 + $0xb0] sm:$0xff]
    %v1713 = vld [vmem:[%s3 + $0xb8] sm:$0xff]
    %v1714 = vld [vmem:[%s3 + $0xc0] sm:$0xff]
    %v1715 = vld [vmem:[%s3 + $0xc8] sm:$0xff]
    %v1716 = vld [vmem:[%s3 + $0xd0] sm:$0xff]
    %v1717 = vld [vmem:[%s3 + $0xd8] sm:$0xff]
    %v1718 = vld [vmem:[%s3 + $0xe0] sm:$0xff]
    %v1719 = vld [vmem:[%s3 + $0xe8] sm:$0xff]
    %v1720 = vld [vmem:[%s3 + $0xf0] sm:$0xff]
    %v1721 = vld [vmem:[%s3 + $0xf8] sm:$0xff]
    %v1722 = vld [vmem:[%s3 + $0x100] sm:$0xff]
    %v1723 = vld [vmem:[%s3 + $0x108] sm:$0xff]
    %v1724 = vld [vmem:[%s3 + $0x110] sm:$0xff]
    %v1725 = vld [vmem:[%s3 + $0x118] sm:$0xff]
    %v1726 = vld [vmem:[%s3 + $0x120] sm:$0xff]
    %v1727 = vld [vmem:[%s3 + $0x128] sm:$0xff]
    %v1728 = vld [vmem:[%s3 + $0x130] sm:$0xff]
    %v1729 = vld [vmem:[%s3 + $0x138] sm:$0xff]
    %v1730 = vld [vmem:[%s3 + $0x140] sm:$0xff]
    %v1731 = vld [vmem:[%s3 + $0x148] sm:$0xff]
    %v1732 = vld [vmem:[%s3 + $0x150] sm:$0xff]
    %v1733 = vld [vmem:[%s3 + $0x158] sm:$0xff]
    %v1734 = vld [vmem:[%s3 + $0x160] sm:$0xff]
    %v1735 = vld [vmem:[%s3 + $0x168] sm:$0xff]
    %v1736 = vld [vmem:[%s3 + $0x170] sm:$0xff]
    %v1737 = vld [vmem:[%s3 + $0x178] sm:$0xff]
    %v1738 = vld [vmem:[%s3 + $0x180] sm:$0xff]
    %v1739 = vld [vmem:[%s3 + $0x188] sm:$0xff]
    %v1740 = vld [vmem:[%s3 + $0x190] sm:$0xff]
    %v1741 = vld [vmem:[%s3 + $0x198] sm:$0xff]
    %v1742 = vld [vmem:[%s3 + $0x1a0] sm:$0xff]
    %v1743 = vld [vmem:[%s3 + $0x1a8] sm:$0xff]
    %v1744 = vld [vmem:[%s3 + $0x1b0] sm:$0xff]
    %v1745 = vld [vmem:[%s3 + $0x1b8] sm:$0xff]
    %v1746 = vld [vmem:[%s3 + $0x1c0] sm:$0xff]
    %v1747 = vld [vmem:[%s3 + $0x1c8] sm:$0xff]
    %v1748 = vld [vmem:[%s3 + $0x1d0] sm:$0xff]
    %v1749 = vld [vmem:[%s3 + $0x1d8] sm:$0xff]
    %v1750 = vld [vmem:[%s3 + $0x1e0] sm:$0xff]
    %v1751 = vld [vmem:[%s3 + $0x1e8] sm:$0xff]
    %v1752 = vld [vmem:[%s3 + $0x1f0] sm:$0xff]
    %v1753 = vld [vmem:[%s3 + $0x1f8] sm:$0xff]
    %v1754 = vld [vmem:[%s3 + $0x200] sm:$0xff]
    %v1755 = vld [vmem:[%s3 + $0x208] sm:$0xff]
    %v1756 = vld [vmem:[%s3 + $0x210] sm:$0xff]
    %v1757 = vld [vmem:[%s3 + $0x218] sm:$0xff]
    %v1758 = vld [vmem:[%s3 + $0x220] sm:$0xff]
    %v1759 = vld [vmem:[%s3 + $0x228] sm:$0xff]
    %v1760 = vld [vmem:[%s3 + $0x230] sm:$0xff]
    %v1761 = vld [vmem:[%s3 + $0x238] sm:$0xff]
    %v1762 = vld [vmem:[%s3 + $0x240] sm:$0xff]
    %v1763 = vld [vmem:[%s3 + $0x248] sm:$0xff]
    %v1764 = vld [vmem:[%s3 + $0x250] sm:$0xff]
    %v1765 = vld [vmem:[%s3 + $0x258] sm:$0xff]
    %v1766 = vld [vmem:[%s3 + $0x260] sm:$0xff]
    %v1767 = vld [vmem:[%s3 + $0x268] sm:$0xff]
    %v1768 = vld [vmem:[%s3 + $0x270] sm:$0xff]
    %v1769 = vld [vmem:[%s3 + $0x278] sm:$0xff]
    %v1770 = vld [vmem:[%s3 + $0x280] sm:$0xff]
    %v1771 = vld [vmem:[%s3 + $0x288] sm:$0xff]
    %v1772 = vld [vmem:[%s3 + $0x290] sm:$0xff]
    %v1773 = vld [vmem:[%s3 + $0x298] sm:$0xff]
    %v1774 = vld [vmem:[%s3 + $0x2a0] sm:$0xff]
    %v1775 = vld [vmem:[%s3 + $0x2a8] sm:$0xff]
    %v1776 = vld [vmem:[%s3 + $0x2b0] sm:$0xff]
    %v1777 = vld [vmem:[%s3 + $0x2b8] sm:$0xff]
    %v1778 = vld [vmem:[%s3 + $0x2c0] sm:$0xff]
    %v1779 = vld [vmem:[%s3 + $0x2c8] sm:$0xff]
    %v1780 = vld [vmem:[%s3 + $0x2d0] sm:$0xff]
    %v1781 = vld [vmem:[%s3 + $0x2d8] sm:$0xff]
    %v1782 = vld [vmem:[%s3 + $0x2e0] sm:$0xff]
    %v1783 = vld [vmem:[%s3 + $0x2e8] sm:$0xff]
    %v1784 = vld [vmem:[%s3 + $0x2f0] sm:$0xff]
    %v1785 = vld [vmem:[%s3 + $0x2f8] sm:$0xff]
    %v1786 = vld [vmem:[%s3 + $0x300] sm:$0xff]
    %v1787 = vld [vmem:[%s3 + $0x308] sm:$0xff]
    %v1788 = vld [vmem:[%s3 + $0x310] sm:$0xff]
    %v1789 = vld [vmem:[%s3 + $0x318] sm:$0xff]
    %v1790 = vld [vmem:[%s3 + $0x320] sm:$0xff]
    %v1791 = vld [vmem:[%s3 + $0x328] sm:$0xff]
    %v1792 = vld [vmem:[%s3 + $0x330] sm:$0xff]
    %v1793 = vld [vmem:[%s3 + $0x338] sm:$0xff]
    %v1794 = vld [vmem:[%s3 + $0x340] sm:$0xff]
    %v1795 = vld [vmem:[%s3 + $0x348] sm:$0xff]
    %v1796 = vld [vmem:[%s3 + $0x350] sm:$0xff]
    %v1797 = vld [vmem:[%s3 + $0x358] sm:$0xff]
    %v1798 = vld [vmem:[%s3 + $0x360] sm:$0xff]
    %v1799 = vld [vmem:[%s3 + $0x368] sm:$0xff]
    %v1800 = vld [vmem:[%s3 + $0x370] sm:$0xff]
    %v1801 = vld [vmem:[%s3 + $0x378] sm:$0xff]
    %v1802 = vld [vmem:[%s3 + $0x380] sm:$0xff]
    %v1803 = vld [vmem:[%s3 + $0x388] sm:$0xff]
    %v1804 = vld [vmem:[%s3 + $0x390] sm:$0xff]
    %v1805 = vld [vmem:[%s3 + $0x398] sm:$0xff]
    %v1806 = vld [vmem:[%s3 + $0x3a0] sm:$0xff]
    %v1807 = vld [vmem:[%s3 + $0x3a8] sm:$0xff]
    %v1808 = vld [vmem:[%s3 + $0x3b0] sm:$0xff]
    %v1809 = vld [vmem:[%s3 + $0x3b8] sm:$0xff]
    %v1810 = vld [vmem:[%s3 + $0x3c0] sm:$0xff]
    %v1811 = vld [vmem:[%s3 + $0x3c8] sm:$0xff]
    %v1812 = vld [vmem:[%s3 + $0x3d0] sm:$0xff]
    %v1813 = vld [vmem:[%s3 + $0x3d8] sm:$0xff]
    %v1814 = vld [vmem:[%s3 + $0x3e0] sm:$0xff]
    %v1815 = vld [vmem:[%s3 + $0x3e8] sm:$0xff]
    %v1816 = vld [vmem:[%s3 + $0x3f0] sm:$0xff]
    %v1817 = vld [vmem:[%s3 + $0x3f8] sm:$0xff]
    %v1818 = vpack.c.bf16 %v1438, %v1434
    %v1819 = vpack.c.bf16 %v1439, %v1435
    %v1820 = vpack.c.bf16 %v1440, %v1436
    %v1821 = vpack.c.bf16 %v1441, %v1437
    %v1822 = vpack.c.bf16 %v1446, %v1442
    %v1823 = vpack.c.bf16 %v1447, %v1443
    %v1824 = vpack.c.bf16 %v1448, %v1444
    %v1825 = vpack.c.bf16 %v1449, %v1445
    %v1826 = vpack.c.bf16 %v1454, %v1450
    %v1827 = vpack.c.bf16 %v1455, %v1451
    %v1828 = vpack.c.bf16 %v1456, %v1452
    %v1829 = vpack.c.bf16 %v1457, %v1453
    %v1830 = vpack.c.bf16 %v1462, %v1458
    %v1831 = vpack.c.bf16 %v1463, %v1459
    %v1832 = vpack.c.bf16 %v1464, %v1460
    %v1833 = vpack.c.bf16 %v1465, %v1461
    %v1834 = vpack.c.bf16 %v1470, %v1466
    %v1835 = vpack.c.bf16 %v1471, %v1467
    %v1836 = vpack.c.bf16 %v1472, %v1468
    %v1837 = vpack.c.bf16 %v1473, %v1469
    %v1838 = vpack.c.bf16 %v1478, %v1474
    %v1839 = vpack.c.bf16 %v1479, %v1475
    %v1840 = vpack.c.bf16 %v1480, %v1476
    %v1841 = vpack.c.bf16 %v1481, %v1477
    %v1842 = vpack.c.bf16 %v1486, %v1482
    %v1843 = vpack.c.bf16 %v1487, %v1483
    %v1844 = vpack.c.bf16 %v1488, %v1484
    %v1845 = vpack.c.bf16 %v1489, %v1485
    %v1846 = vpack.c.bf16 %v1494, %v1490
    %v1847 = vpack.c.bf16 %v1495, %v1491
    %v1848 = vpack.c.bf16 %v1496, %v1492
    %v1849 = vpack.c.bf16 %v1497, %v1493
    %v1850 = vpack.c.bf16 %v1502, %v1498
    %v1851 = vpack.c.bf16 %v1503, %v1499
    %v1852 = vpack.c.bf16 %v1504, %v1500
    %v1853 = vpack.c.bf16 %v1505, %v1501
    %v1854 = vpack.c.bf16 %v1510, %v1506
    %v1855 = vpack.c.bf16 %v1511, %v1507
    %v1856 = vpack.c.bf16 %v1512, %v1508
    %v1857 = vpack.c.bf16 %v1513, %v1509
    %v1858 = vpack.c.bf16 %v1518, %v1514
    %v1859 = vpack.c.bf16 %v1519, %v1515
    %v1860 = vpack.c.bf16 %v1520, %v1516
    %v1861 = vpack.c.bf16 %v1521, %v1517
    %v1862 = vpack.c.bf16 %v1526, %v1522
    %v1863 = vpack.c.bf16 %v1527, %v1523
    %v1864 = vpack.c.bf16 %v1528, %v1524
    %v1865 = vpack.c.bf16 %v1529, %v1525
    %v1866 = vpack.c.bf16 %v1534, %v1530
    %v1867 = vpack.c.bf16 %v1535, %v1531
    %v1868 = vpack.c.bf16 %v1536, %v1532
    %v1869 = vpack.c.bf16 %v1537, %v1533
    %v1870 = vpack.c.bf16 %v1542, %v1538
    %v1871 = vpack.c.bf16 %v1543, %v1539
    %v1872 = vpack.c.bf16 %v1544, %v1540
    %v1873 = vpack.c.bf16 %v1545, %v1541
    %v1874 = vpack.c.bf16 %v1550, %v1546
    %v1875 = vpack.c.bf16 %v1551, %v1547
    %v1876 = vpack.c.bf16 %v1552, %v1548
    %v1877 = vpack.c.bf16 %v1553, %v1549
    %v1878 = vpack.c.bf16 %v1558, %v1554
    %v1879 = vpack.c.bf16 %v1559, %v1555
    %v1880 = vpack.c.bf16 %v1560, %v1556
    %v1881 = vpack.c.bf16 %v1561, %v1557
    %v1882 = vpack.c.bf16 %v1566, %v1562
    %v1883 = vpack.c.bf16 %v1567, %v1563
    %v1884 = vpack.c.bf16 %v1568, %v1564
    %v1885 = vpack.c.bf16 %v1569, %v1565
    %v1886 = vpack.c.bf16 %v1574, %v1570
    %v1887 = vpack.c.bf16 %v1575, %v1571
    %v1888 = vpack.c.bf16 %v1576, %v1572
    %v1889 = vpack.c.bf16 %v1577, %v1573
    %v1890 = vpack.c.bf16 %v1582, %v1578
    %v1891 = vpack.c.bf16 %v1583, %v1579
    %v1892 = vpack.c.bf16 %v1584, %v1580
    %v1893 = vpack.c.bf16 %v1585, %v1581
    %v1894 = vpack.c.bf16 %v1590, %v1586
    %v1895 = vpack.c.bf16 %v1591, %v1587
    %v1896 = vpack.c.bf16 %v1592, %v1588
    %v1897 = vpack.c.bf16 %v1593, %v1589
    %v1898 = vpack.c.bf16 %v1598, %v1594
    %v1899 = vpack.c.bf16 %v1599, %v1595
    %v1900 = vpack.c.bf16 %v1600, %v1596
    %v1901 = vpack.c.bf16 %v1601, %v1597
    %v1902 = vpack.c.bf16 %v1606, %v1602
    %v1903 = vpack.c.bf16 %v1607, %v1603
    %v1904 = vpack.c.bf16 %v1608, %v1604
    %v1905 = vpack.c.bf16 %v1609, %v1605
    %v1906 = vpack.c.bf16 %v1614, %v1610
    %v1907 = vpack.c.bf16 %v1615, %v1611
    %v1908 = vpack.c.bf16 %v1616, %v1612
    %v1909 = vpack.c.bf16 %v1617, %v1613
    %v1910 = vpack.c.bf16 %v1622, %v1618
    %v1911 = vpack.c.bf16 %v1623, %v1619
    %v1912 = vpack.c.bf16 %v1624, %v1620
    %v1913 = vpack.c.bf16 %v1625, %v1621
    %v1914 = vpack.c.bf16 %v1630, %v1626
    %v1915 = vpack.c.bf16 %v1631, %v1627
    %v1916 = vpack.c.bf16 %v1632, %v1628
    %v1917 = vpack.c.bf16 %v1633, %v1629
    %v1918 = vpack.c.bf16 %v1638, %v1634
    %v1919 = vpack.c.bf16 %v1639, %v1635
    %v1920 = vpack.c.bf16 %v1640, %v1636
    %v1921 = vpack.c.bf16 %v1641, %v1637
    %v1922 = vpack.c.bf16 %v1646, %v1642
    %v1923 = vpack.c.bf16 %v1647, %v1643
    %v1924 = vpack.c.bf16 %v1648, %v1644
    %v1925 = vpack.c.bf16 %v1649, %v1645
    %v1926 = vpack.c.bf16 %v1654, %v1650
    %v1927 = vpack.c.bf16 %v1655, %v1651
    %v1928 = vpack.c.bf16 %v1656, %v1652
    %v1929 = vpack.c.bf16 %v1657, %v1653
    %v1930 = vpack.c.bf16 %v1662, %v1658
    %v1931 = vpack.c.bf16 %v1663, %v1659
    %v1932 = vpack.c.bf16 %v1664, %v1660
    %v1933 = vpack.c.bf16 %v1665, %v1661
    %v1934 = vpack.c.bf16 %v1670, %v1666
    %v1935 = vpack.c.bf16 %v1671, %v1667
    %v1936 = vpack.c.bf16 %v1672, %v1668
    %v1937 = vpack.c.bf16 %v1673, %v1669
    %v1938 = vpack.c.bf16 %v1678, %v1674
    %v1939 = vpack.c.bf16 %v1679, %v1675
    %v1940 = vpack.c.bf16 %v1680, %v1676
    %v1941 = vpack.c.bf16 %v1681, %v1677
    %v1942 = vpack.c.bf16 %v1686, %v1682
    %v1943 = vpack.c.bf16 %v1687, %v1683
    %v1944 = vpack.c.bf16 %v1688, %v1684
    %v1945 = vpack.c.bf16 %v1689, %v1685
    %v1946 = vld [vmem:[%s4] sm:$0xff]
    %v1947 = vld [vmem:[%s4 + $0x8] sm:$0xff]
    %v1948 = vld [vmem:[%s4 + $0x10] sm:$0xff]
    %v1949 = vld [vmem:[%s4 + $0x18] sm:$0xff]
    %v1950 = vld [vmem:[%s4 + $0x20] sm:$0xff]
    %v1951 = vld [vmem:[%s4 + $0x28] sm:$0xff]
    %v1952 = vld [vmem:[%s4 + $0x30] sm:$0xff]
    %v1953 = vld [vmem:[%s4 + $0x38] sm:$0xff]
    %v1954 = vld [vmem:[%s4 + $0x40] sm:$0xff]
    %v1955 = vld [vmem:[%s4 + $0x48] sm:$0xff]
    %v1956 = vld [vmem:[%s4 + $0x50] sm:$0xff]
    %v1957 = vld [vmem:[%s4 + $0x58] sm:$0xff]
    %v1958 = vld [vmem:[%s4 + $0x60] sm:$0xff]
    %v1959 = vld [vmem:[%s4 + $0x68] sm:$0xff]
    %v1960 = vld [vmem:[%s4 + $0x70] sm:$0xff]
    %v1961 = vld [vmem:[%s4 + $0x78] sm:$0xff]
    %v1962 = vld [vmem:[%s4 + $0x80] sm:$0xff]
    %v1963 = vld [vmem:[%s4 + $0x88] sm:$0xff]
    %v1964 = vld [vmem:[%s4 + $0x90] sm:$0xff]
    %v1965 = vld [vmem:[%s4 + $0x98] sm:$0xff]
    %v1966 = vld [vmem:[%s4 + $0xa0] sm:$0xff]
    %v1967 = vld [vmem:[%s4 + $0xa8] sm:$0xff]
    %v1968 = vld [vmem:[%s4 + $0xb0] sm:$0xff]
    %v1969 = vld [vmem:[%s4 + $0xb8] sm:$0xff]
    %v1970 = vld [vmem:[%s4 + $0xc0] sm:$0xff]
    %v1971 = vld [vmem:[%s4 + $0xc8] sm:$0xff]
    %v1972 = vld [vmem:[%s4 + $0xd0] sm:$0xff]
    %v1973 = vld [vmem:[%s4 + $0xd8] sm:$0xff]
    %v1974 = vld [vmem:[%s4 + $0xe0] sm:$0xff]
    %v1975 = vld [vmem:[%s4 + $0xe8] sm:$0xff]
    %v1976 = vld [vmem:[%s4 + $0xf0] sm:$0xff]
    %v1977 = vld [vmem:[%s4 + $0xf8] sm:$0xff]
    %v1978 = vld [vmem:[%s4 + $0x100] sm:$0xff]
    %v1979 = vld [vmem:[%s4 + $0x108] sm:$0xff]
    %v1980 = vld [vmem:[%s4 + $0x110] sm:$0xff]
    %v1981 = vld [vmem:[%s4 + $0x118] sm:$0xff]
    %v1982 = vld [vmem:[%s4 + $0x120] sm:$0xff]
    %v1983 = vld [vmem:[%s4 + $0x128] sm:$0xff]
    %v1984 = vld [vmem:[%s4 + $0x130] sm:$0xff]
    %v1985 = vld [vmem:[%s4 + $0x138] sm:$0xff]
    %v1986 = vld [vmem:[%s4 + $0x140] sm:$0xff]
    %v1987 = vld [vmem:[%s4 + $0x148] sm:$0xff]
    %v1988 = vld [vmem:[%s4 + $0x150] sm:$0xff]
    %v1989 = vld [vmem:[%s4 + $0x158] sm:$0xff]
    %v1990 = vld [vmem:[%s4 + $0x160] sm:$0xff]
    %v1991 = vld [vmem:[%s4 + $0x168] sm:$0xff]
    %v1992 = vld [vmem:[%s4 + $0x170] sm:$0xff]
    %v1993 = vld [vmem:[%s4 + $0x178] sm:$0xff]
    %v1994 = vld [vmem:[%s4 + $0x180] sm:$0xff]
    %v1995 = vld [vmem:[%s4 + $0x188] sm:$0xff]
    %v1996 = vld [vmem:[%s4 + $0x190] sm:$0xff]
    %v1997 = vld [vmem:[%s4 + $0x198] sm:$0xff]
    %v1998 = vld [vmem:[%s4 + $0x1a0] sm:$0xff]
    %v1999 = vld [vmem:[%s4 + $0x1a8] sm:$0xff]
    %v2000 = vld [vmem:[%s4 + $0x1b0] sm:$0xff]
    %v2001 = vld [vmem:[%s4 + $0x1b8] sm:$0xff]
    %v2002 = vld [vmem:[%s4 + $0x1c0] sm:$0xff]
    %v2003 = vld [vmem:[%s4 + $0x1c8] sm:$0xff]
    %v2004 = vld [vmem:[%s4 + $0x1d0] sm:$0xff]
    %v2005 = vld [vmem:[%s4 + $0x1d8] sm:$0xff]
    %v2006 = vld [vmem:[%s4 + $0x1e0] sm:$0xff]
    %v2007 = vld [vmem:[%s4 + $0x1e8] sm:$0xff]
    %v2008 = vld [vmem:[%s4 + $0x1f0] sm:$0xff]
    %v2009 = vld [vmem:[%s4 + $0x1f8] sm:$0xff]
    %2011 = vset.pattern.permute.xlu0 0
    %2012 = vperm.xlu0 %2011, %v1946
    %v2013 = vpop.permute.xlu0 %2012
    %2016 = vset.pattern.permute.xlu0 0
    %2017 = vperm.xlu0 %2016, %v1947
    %v2018 = vpop.permute.xlu0 %2017
    %2021 = vset.pattern.permute.xlu0 0
    %2022 = vperm.xlu0 %2021, %v1948
    %v2023 = vpop.permute.xlu0 %2022
    %2026 = vset.pattern.permute.xlu0 0
    %2027 = vperm.xlu0 %2026, %v1949
    %v2028 = vpop.permute.xlu0 %2027
    %2031 = vset.pattern.permute.xlu0 0
    %2032 = vperm.xlu0 %2031, %v1950
    %v2033 = vpop.permute.xlu0 %2032
    %2036 = vset.pattern.permute.xlu0 0
    %2037 = vperm.xlu0 %2036, %v1951
    %v2038 = vpop.permute.xlu0 %2037
    %2041 = vset.pattern.permute.xlu0 0
    %2042 = vperm.xlu0 %2041, %v1952
    %v2043 = vpop.permute.xlu0 %2042
    %2046 = vset.pattern.permute.xlu0 0
    %2047 = vperm.xlu0 %2046, %v1953
    %v2048 = vpop.permute.xlu0 %2047
    %2051 = vset.pattern.permute.xlu0 0
    %2052 = vperm.xlu0 %2051, %v1954
    %v2053 = vpop.permute.xlu0 %2052
    %2056 = vset.pattern.permute.xlu0 0
    %2057 = vperm.xlu0 %2056, %v1955
    %v2058 = vpop.permute.xlu0 %2057
    %2061 = vset.pattern.permute.xlu0 0
    %2062 = vperm.xlu0 %2061, %v1956
    %v2063 = vpop.permute.xlu0 %2062
    %2066 = vset.pattern.permute.xlu0 0
    %2067 = vperm.xlu0 %2066, %v1957
    %v2068 = vpop.permute.xlu0 %2067
    %2071 = vset.pattern.permute.xlu0 0
    %2072 = vperm.xlu0 %2071, %v1958
    %v2073 = vpop.permute.xlu0 %2072
    %2076 = vset.pattern.permute.xlu0 0
    %2077 = vperm.xlu0 %2076, %v1959
    %v2078 = vpop.permute.xlu0 %2077
    %2081 = vset.pattern.permute.xlu0 0
    %2082 = vperm.xlu0 %2081, %v1960
    %v2083 = vpop.permute.xlu0 %2082
    %2086 = vset.pattern.permute.xlu0 0
    %2087 = vperm.xlu0 %2086, %v1961
    %v2088 = vpop.permute.xlu0 %2087
    %2091 = vset.pattern.permute.xlu0 0
    %2092 = vperm.xlu0 %2091, %v1962
    %v2093 = vpop.permute.xlu0 %2092
    %2096 = vset.pattern.permute.xlu0 0
    %2097 = vperm.xlu0 %2096, %v1963
    %v2098 = vpop.permute.xlu0 %2097
    %2101 = vset.pattern.permute.xlu0 0
    %2102 = vperm.xlu0 %2101, %v1964
    %v2103 = vpop.permute.xlu0 %2102
    %2106 = vset.pattern.permute.xlu0 0
    %2107 = vperm.xlu0 %2106, %v1965
    %v2108 = vpop.permute.xlu0 %2107
    %2111 = vset.pattern.permute.xlu0 0
    %2112 = vperm.xlu0 %2111, %v1966
    %v2113 = vpop.permute.xlu0 %2112
    %2116 = vset.pattern.permute.xlu0 0
    %2117 = vperm.xlu0 %2116, %v1967
    %v2118 = vpop.permute.xlu0 %2117
    %2121 = vset.pattern.permute.xlu0 0
    %2122 = vperm.xlu0 %2121, %v1968
    %v2123 = vpop.permute.xlu0 %2122
    %2126 = vset.pattern.permute.xlu0 0
    %2127 = vperm.xlu0 %2126, %v1969
    %v2128 = vpop.permute.xlu0 %2127
    %2131 = vset.pattern.permute.xlu0 0
    %2132 = vperm.xlu0 %2131, %v1970
    %v2133 = vpop.permute.xlu0 %2132
    %2136 = vset.pattern.permute.xlu0 0
    %2137 = vperm.xlu0 %2136, %v1971
    %v2138 = vpop.permute.xlu0 %2137
    %2141 = vset.pattern.permute.xlu0 0
    %2142 = vperm.xlu0 %2141, %v1972
    %v2143 = vpop.permute.xlu0 %2142
    %2146 = vset.pattern.permute.xlu0 0
    %2147 = vperm.xlu0 %2146, %v1973
    %v2148 = vpop.permute.xlu0 %2147
    %2151 = vset.pattern.permute.xlu0 0
    %2152 = vperm.xlu0 %2151, %v1974
    %v2153 = vpop.permute.xlu0 %2152
    %2156 = vset.pattern.permute.xlu0 0
    %2157 = vperm.xlu0 %2156, %v1975
    %v2158 = vpop.permute.xlu0 %2157
    %2161 = vset.pattern.permute.xlu0 0
    %2162 = vperm.xlu0 %2161, %v1976
    %v2163 = vpop.permute.xlu0 %2162
    %2166 = vset.pattern.permute.xlu0 0
    %2167 = vperm.xlu0 %2166, %v1977
    %v2168 = vpop.permute.xlu0 %2167
    %2171 = vset.pattern.permute.xlu0 0
    %2172 = vperm.xlu0 %2171, %v1978
    %v2173 = vpop.permute.xlu0 %2172
    %2176 = vset.pattern.permute.xlu0 0
    %2177 = vperm.xlu0 %2176, %v1979
    %v2178 = vpop.permute.xlu0 %2177
    %2181 = vset.pattern.permute.xlu0 0
    %2182 = vperm.xlu0 %2181, %v1980
    %v2183 = vpop.permute.xlu0 %2182
    %2186 = vset.pattern.permute.xlu0 0
    %2187 = vperm.xlu0 %2186, %v1981
    %v2188 = vpop.permute.xlu0 %2187
    %2191 = vset.pattern.permute.xlu0 0
    %2192 = vperm.xlu0 %2191, %v1982
    %v2193 = vpop.permute.xlu0 %2192
    %2196 = vset.pattern.permute.xlu0 0
    %2197 = vperm.xlu0 %2196, %v1983
    %v2198 = vpop.permute.xlu0 %2197
    %2201 = vset.pattern.permute.xlu0 0
    %2202 = vperm.xlu0 %2201, %v1984
    %v2203 = vpop.permute.xlu0 %2202
    %2206 = vset.pattern.permute.xlu0 0
    %2207 = vperm.xlu0 %2206, %v1985
    %v2208 = vpop.permute.xlu0 %2207
    %2211 = vset.pattern.permute.xlu0 0
    %2212 = vperm.xlu0 %2211, %v1986
    %v2213 = vpop.permute.xlu0 %2212
    %2216 = vset.pattern.permute.xlu0 0
    %2217 = vperm.xlu0 %2216, %v1987
    %v2218 = vpop.permute.xlu0 %2217
    %2221 = vset.pattern.permute.xlu0 0
    %2222 = vperm.xlu0 %2221, %v1988
    %v2223 = vpop.permute.xlu0 %2222
    %2226 = vset.pattern.permute.xlu0 0
    %2227 = vperm.xlu0 %2226, %v1989
    %v2228 = vpop.permute.xlu0 %2227
    %2231 = vset.pattern.permute.xlu0 0
    %2232 = vperm.xlu0 %2231, %v1990
    %v2233 = vpop.permute.xlu0 %2232
    %2236 = vset.pattern.permute.xlu0 0
    %2237 = vperm.xlu0 %2236, %v1991
    %v2238 = vpop.permute.xlu0 %2237
    %2241 = vset.pattern.permute.xlu0 0
    %2242 = vperm.xlu0 %2241, %v1992
    %v2243 = vpop.permute.xlu0 %2242
    %2246 = vset.pattern.permute.xlu0 0
    %2247 = vperm.xlu0 %2246, %v1993
    %v2248 = vpop.permute.xlu0 %2247
    %2251 = vset.pattern.permute.xlu0 0
    %2252 = vperm.xlu0 %2251, %v1994
    %v2253 = vpop.permute.xlu0 %2252
    %2256 = vset.pattern.permute.xlu0 0
    %2257 = vperm.xlu0 %2256, %v1995
    %v2258 = vpop.permute.xlu0 %2257
    %2261 = vset.pattern.permute.xlu0 0
    %2262 = vperm.xlu0 %2261, %v1996
    %v2263 = vpop.permute.xlu0 %2262
    %2266 = vset.pattern.permute.xlu0 0
    %2267 = vperm.xlu0 %2266, %v1997
    %v2268 = vpop.permute.xlu0 %2267
    %2271 = vset.pattern.permute.xlu0 0
    %2272 = vperm.xlu0 %2271, %v1998
    %v2273 = vpop.permute.xlu0 %2272
    %2276 = vset.pattern.permute.xlu0 0
    %2277 = vperm.xlu0 %2276, %v1999
    %v2278 = vpop.permute.xlu0 %2277
    %2281 = vset.pattern.permute.xlu0 0
    %2282 = vperm.xlu0 %2281, %v2000
    %v2283 = vpop.permute.xlu0 %2282
    %2286 = vset.pattern.permute.xlu0 0
    %2287 = vperm.xlu0 %2286, %v2001
    %v2288 = vpop.permute.xlu0 %2287
    %2291 = vset.pattern.permute.xlu0 0
    %2292 = vperm.xlu0 %2291, %v2002
    %v2293 = vpop.permute.xlu0 %2292
    %2296 = vset.pattern.permute.xlu0 0
    %2297 = vperm.xlu0 %2296, %v2003
    %v2298 = vpop.permute.xlu0 %2297
    %2301 = vset.pattern.permute.xlu0 0
    %2302 = vperm.xlu0 %2301, %v2004
    %v2303 = vpop.permute.xlu0 %2302
    %2306 = vset.pattern.permute.xlu0 0
    %2307 = vperm.xlu0 %2306, %v2005
    %v2308 = vpop.permute.xlu0 %2307
    %2311 = vset.pattern.permute.xlu0 0
    %2312 = vperm.xlu0 %2311, %v2006
    %v2313 = vpop.permute.xlu0 %2312
    %2316 = vset.pattern.permute.xlu0 0
    %2317 = vperm.xlu0 %2316, %v2007
    %v2318 = vpop.permute.xlu0 %2317
    %2321 = vset.pattern.permute.xlu0 0
    %2322 = vperm.xlu0 %2321, %v2008
    %v2323 = vpop.permute.xlu0 %2322
    %2326 = vset.pattern.permute.xlu0 0
    %2327 = vperm.xlu0 %2326, %v2009
    %v2328 = vpop.permute.xlu0 %2327
    %v2458 = vunpack.c.l.b16 %v1690
    %v2459 = vunpack.c.h.b16 %v1690
    %v2460 = vunpack.c.l.b16 %v1691
    %v2461 = vunpack.c.h.b16 %v1691
    %v2462 = vunpack.c.l.b16 %v1692
    %v2463 = vunpack.c.h.b16 %v1692
    %v2464 = vunpack.c.l.b16 %v1693
    %v2465 = vunpack.c.h.b16 %v1693
    %v2466 = vunpack.c.l.b16 %v1694
    %v2467 = vunpack.c.h.b16 %v1694
    %v2468 = vunpack.c.l.b16 %v1695
    %v2469 = vunpack.c.h.b16 %v1695
    %v2470 = vunpack.c.l.b16 %v1696
    %v2471 = vunpack.c.h.b16 %v1696
    %v2472 = vunpack.c.l.b16 %v1697
    %v2473 = vunpack.c.h.b16 %v1697
    %v2474 = vunpack.c.l.b16 %v1698
    %v2475 = vunpack.c.h.b16 %v1698
    %v2476 = vunpack.c.l.b16 %v1699
    %v2477 = vunpack.c.h.b16 %v1699
    %v2478 = vunpack.c.l.b16 %v1700
    %v2479 = vunpack.c.h.b16 %v1700
    %v2480 = vunpack.c.l.b16 %v1701
    %v2481 = vunpack.c.h.b16 %v1701
    %v2482 = vunpack.c.l.b16 %v1702
    %v2483 = vunpack.c.h.b16 %v1702
    %v2484 = vunpack.c.l.b16 %v1703
    %v2485 = vunpack.c.h.b16 %v1703
    %v2486 = vunpack.c.l.b16 %v1704
    %v2487 = vunpack.c.h.b16 %v1704
    %v2488 = vunpack.c.l.b16 %v1705
    %v2489 = vunpack.c.h.b16 %v1705
    %v2490 = vunpack.c.l.b16 %v1706
    %v2491 = vunpack.c.h.b16 %v1706
    %v2492 = vunpack.c.l.b16 %v1707
    %v2493 = vunpack.c.h.b16 %v1707
    %v2494 = vunpack.c.l.b16 %v1708
    %v2495 = vunpack.c.h.b16 %v1708
    %v2496 = vunpack.c.l.b16 %v1709
    %v2497 = vunpack.c.h.b16 %v1709
    %v2498 = vunpack.c.l.b16 %v1710
    %v2499 = vunpack.c.h.b16 %v1710
    %v2500 = vunpack.c.l.b16 %v1711
    %v2501 = vunpack.c.h.b16 %v1711
    %v2502 = vunpack.c.l.b16 %v1712
    %v2503 = vunpack.c.h.b16 %v1712
    %v2504 = vunpack.c.l.b16 %v1713
    %v2505 = vunpack.c.h.b16 %v1713
    %v2506 = vunpack.c.l.b16 %v1714
    %v2507 = vunpack.c.h.b16 %v1714
    %v2508 = vunpack.c.l.b16 %v1715
    %v2509 = vunpack.c.h.b16 %v1715
    %v2510 = vunpack.c.l.b16 %v1716
    %v2511 = vunpack.c.h.b16 %v1716
    %v2512 = vunpack.c.l.b16 %v1717
    %v2513 = vunpack.c.h.b16 %v1717
    %v2514 = vunpack.c.l.b16 %v1718
    %v2515 = vunpack.c.h.b16 %v1718
    %v2516 = vunpack.c.l.b16 %v1719
    %v2517 = vunpack.c.h.b16 %v1719
    %v2518 = vunpack.c.l.b16 %v1720
    %v2519 = vunpack.c.h.b16 %v1720
    %v2520 = vunpack.c.l.b16 %v1721
    %v2521 = vunpack.c.h.b16 %v1721
    %v2522 = vunpack.c.l.b16 %v1722
    %v2523 = vunpack.c.h.b16 %v1722
    %v2524 = vunpack.c.l.b16 %v1723
    %v2525 = vunpack.c.h.b16 %v1723
    %v2526 = vunpack.c.l.b16 %v1724
    %v2527 = vunpack.c.h.b16 %v1724
    %v2528 = vunpack.c.l.b16 %v1725
    %v2529 = vunpack.c.h.b16 %v1725
    %v2530 = vunpack.c.l.b16 %v1726
    %v2531 = vunpack.c.h.b16 %v1726
    %v2532 = vunpack.c.l.b16 %v1727
    %v2533 = vunpack.c.h.b16 %v1727
    %v2534 = vunpack.c.l.b16 %v1728
    %v2535 = vunpack.c.h.b16 %v1728
    %v2536 = vunpack.c.l.b16 %v1729
    %v2537 = vunpack.c.h.b16 %v1729
    %v2538 = vunpack.c.l.b16 %v1730
    %v2539 = vunpack.c.h.b16 %v1730
    %v2540 = vunpack.c.l.b16 %v1731
    %v2541 = vunpack.c.h.b16 %v1731
    %v2542 = vunpack.c.l.b16 %v1732
    %v2543 = vunpack.c.h.b16 %v1732
    %v2544 = vunpack.c.l.b16 %v1733
    %v2545 = vunpack.c.h.b16 %v1733
    %v2546 = vunpack.c.l.b16 %v1734
    %v2547 = vunpack.c.h.b16 %v1734
    %v2548 = vunpack.c.l.b16 %v1735
    %v2549 = vunpack.c.h.b16 %v1735
    %v2550 = vunpack.c.l.b16 %v1736
    %v2551 = vunpack.c.h.b16 %v1736
    %v2552 = vunpack.c.l.b16 %v1737
    %v2553 = vunpack.c.h.b16 %v1737
    %v2554 = vunpack.c.l.b16 %v1738
    %v2555 = vunpack.c.h.b16 %v1738
    %v2556 = vunpack.c.l.b16 %v1739
    %v2557 = vunpack.c.h.b16 %v1739
    %v2558 = vunpack.c.l.b16 %v1740
    %v2559 = vunpack.c.h.b16 %v1740
    %v2560 = vunpack.c.l.b16 %v1741
    %v2561 = vunpack.c.h.b16 %v1741
    %v2562 = vunpack.c.l.b16 %v1742
    %v2563 = vunpack.c.h.b16 %v1742
    %v2564 = vunpack.c.l.b16 %v1743
    %v2565 = vunpack.c.h.b16 %v1743
    %v2566 = vunpack.c.l.b16 %v1744
    %v2567 = vunpack.c.h.b16 %v1744
    %v2568 = vunpack.c.l.b16 %v1745
    %v2569 = vunpack.c.h.b16 %v1745
    %v2570 = vunpack.c.l.b16 %v1746
    %v2571 = vunpack.c.h.b16 %v1746
    %v2572 = vunpack.c.l.b16 %v1747
    %v2573 = vunpack.c.h.b16 %v1747
    %v2574 = vunpack.c.l.b16 %v1748
    %v2575 = vunpack.c.h.b16 %v1748
    %v2576 = vunpack.c.l.b16 %v1749
    %v2577 = vunpack.c.h.b16 %v1749
    %v2578 = vunpack.c.l.b16 %v1750
    %v2579 = vunpack.c.h.b16 %v1750
    %v2580 = vunpack.c.l.b16 %v1751
    %v2581 = vunpack.c.h.b16 %v1751
    %v2582 = vunpack.c.l.b16 %v1752
    %v2583 = vunpack.c.h.b16 %v1752
    %v2584 = vunpack.c.l.b16 %v1753
    %v2585 = vunpack.c.h.b16 %v1753
    %v2586 = vunpack.c.l.b16 %v1754
    %v2587 = vunpack.c.h.b16 %v1754
    %v2588 = vunpack.c.l.b16 %v1755
    %v2589 = vunpack.c.h.b16 %v1755
    %v2590 = vunpack.c.l.b16 %v1756
    %v2591 = vunpack.c.h.b16 %v1756
    %v2592 = vunpack.c.l.b16 %v1757
    %v2593 = vunpack.c.h.b16 %v1757
    %v2594 = vunpack.c.l.b16 %v1758
    %v2595 = vunpack.c.h.b16 %v1758
    %v2596 = vunpack.c.l.b16 %v1759
    %v2597 = vunpack.c.h.b16 %v1759
    %v2598 = vunpack.c.l.b16 %v1760
    %v2599 = vunpack.c.h.b16 %v1760
    %v2600 = vunpack.c.l.b16 %v1761
    %v2601 = vunpack.c.h.b16 %v1761
    %v2602 = vunpack.c.l.b16 %v1762
    %v2603 = vunpack.c.h.b16 %v1762
    %v2604 = vunpack.c.l.b16 %v1763
    %v2605 = vunpack.c.h.b16 %v1763
    %v2606 = vunpack.c.l.b16 %v1764
    %v2607 = vunpack.c.h.b16 %v1764
    %v2608 = vunpack.c.l.b16 %v1765
    %v2609 = vunpack.c.h.b16 %v1765
    %v2610 = vunpack.c.l.b16 %v1766
    %v2611 = vunpack.c.h.b16 %v1766
    %v2612 = vunpack.c.l.b16 %v1767
    %v2613 = vunpack.c.h.b16 %v1767
    %v2614 = vunpack.c.l.b16 %v1768
    %v2615 = vunpack.c.h.b16 %v1768
    %v2616 = vunpack.c.l.b16 %v1769
    %v2617 = vunpack.c.h.b16 %v1769
    %v2618 = vunpack.c.l.b16 %v1770
    %v2619 = vunpack.c.h.b16 %v1770
    %v2620 = vunpack.c.l.b16 %v1771
    %v2621 = vunpack.c.h.b16 %v1771
    %v2622 = vunpack.c.l.b16 %v1772
    %v2623 = vunpack.c.h.b16 %v1772
    %v2624 = vunpack.c.l.b16 %v1773
    %v2625 = vunpack.c.h.b16 %v1773
    %v2626 = vunpack.c.l.b16 %v1774
    %v2627 = vunpack.c.h.b16 %v1774
    %v2628 = vunpack.c.l.b16 %v1775
    %v2629 = vunpack.c.h.b16 %v1775
    %v2630 = vunpack.c.l.b16 %v1776
    %v2631 = vunpack.c.h.b16 %v1776
    %v2632 = vunpack.c.l.b16 %v1777
    %v2633 = vunpack.c.h.b16 %v1777
    %v2634 = vunpack.c.l.b16 %v1778
    %v2635 = vunpack.c.h.b16 %v1778
    %v2636 = vunpack.c.l.b16 %v1779
    %v2637 = vunpack.c.h.b16 %v1779
    %v2638 = vunpack.c.l.b16 %v1780
    %v2639 = vunpack.c.h.b16 %v1780
    %v2640 = vunpack.c.l.b16 %v1781
    %v2641 = vunpack.c.h.b16 %v1781
    %v2642 = vunpack.c.l.b16 %v1782
    %v2643 = vunpack.c.h.b16 %v1782
    %v2644 = vunpack.c.l.b16 %v1783
    %v2645 = vunpack.c.h.b16 %v1783
    %v2646 = vunpack.c.l.b16 %v1784
    %v2647 = vunpack.c.h.b16 %v1784
    %v2648 = vunpack.c.l.b16 %v1785
    %v2649 = vunpack.c.h.b16 %v1785
    %v2650 = vunpack.c.l.b16 %v1786
    %v2651 = vunpack.c.h.b16 %v1786
    %v2652 = vunpack.c.l.b16 %v1787
    %v2653 = vunpack.c.h.b16 %v1787
    %v2654 = vunpack.c.l.b16 %v1788
    %v2655 = vunpack.c.h.b16 %v1788
    %v2656 = vunpack.c.l.b16 %v1789
    %v2657 = vunpack.c.h.b16 %v1789
    %v2658 = vunpack.c.l.b16 %v1790
    %v2659 = vunpack.c.h.b16 %v1790
    %v2660 = vunpack.c.l.b16 %v1791
    %v2661 = vunpack.c.h.b16 %v1791
    %v2662 = vunpack.c.l.b16 %v1792
    %v2663 = vunpack.c.h.b16 %v1792
    %v2664 = vunpack.c.l.b16 %v1793
    %v2665 = vunpack.c.h.b16 %v1793
    %v2666 = vunpack.c.l.b16 %v1794
    %v2667 = vunpack.c.h.b16 %v1794
    %v2668 = vunpack.c.l.b16 %v1795
    %v2669 = vunpack.c.h.b16 %v1795
    %v2670 = vunpack.c.l.b16 %v1796
    %v2671 = vunpack.c.h.b16 %v1796
    %v2672 = vunpack.c.l.b16 %v1797
    %v2673 = vunpack.c.h.b16 %v1797
    %v2674 = vunpack.c.l.b16 %v1798
    %v2675 = vunpack.c.h.b16 %v1798
    %v2676 = vunpack.c.l.b16 %v1799
    %v2677 = vunpack.c.h.b16 %v1799
    %v2678 = vunpack.c.l.b16 %v1800
    %v2679 = vunpack.c.h.b16 %v1800
    %v2680 = vunpack.c.l.b16 %v1801
    %v2681 = vunpack.c.h.b16 %v1801
    %v2682 = vunpack.c.l.b16 %v1802
    %v2683 = vunpack.c.h.b16 %v1802
    %v2684 = vunpack.c.l.b16 %v1803
    %v2685 = vunpack.c.h.b16 %v1803
    %v2686 = vunpack.c.l.b16 %v1804
    %v2687 = vunpack.c.h.b16 %v1804
    %v2688 = vunpack.c.l.b16 %v1805
    %v2689 = vunpack.c.h.b16 %v1805
    %v2690 = vunpack.c.l.b16 %v1806
    %v2691 = vunpack.c.h.b16 %v1806
    %v2692 = vunpack.c.l.b16 %v1807
    %v2693 = vunpack.c.h.b16 %v1807
    %v2694 = vunpack.c.l.b16 %v1808
    %v2695 = vunpack.c.h.b16 %v1808
    %v2696 = vunpack.c.l.b16 %v1809
    %v2697 = vunpack.c.h.b16 %v1809
    %v2698 = vunpack.c.l.b16 %v1810
    %v2699 = vunpack.c.h.b16 %v1810
    %v2700 = vunpack.c.l.b16 %v1811
    %v2701 = vunpack.c.h.b16 %v1811
    %v2702 = vunpack.c.l.b16 %v1812
    %v2703 = vunpack.c.h.b16 %v1812
    %v2704 = vunpack.c.l.b16 %v1813
    %v2705 = vunpack.c.h.b16 %v1813
    %v2706 = vunpack.c.l.b16 %v1814
    %v2707 = vunpack.c.h.b16 %v1814
    %v2708 = vunpack.c.l.b16 %v1815
    %v2709 = vunpack.c.h.b16 %v1815
    %v2710 = vunpack.c.l.b16 %v1816
    %v2711 = vunpack.c.h.b16 %v1816
    %v2712 = vunpack.c.l.b16 %v1817
    %v2713 = vunpack.c.h.b16 %v1817
    %v2714 = vpack.c.b16 %v2462, %v2458
    %v2715 = vpack.c.b16 %v2463, %v2459
    %v2716 = vpack.c.b16 %v2464, %v2460
    %v2717 = vpack.c.b16 %v2465, %v2461
    %v2718 = vpack.c.b16 %v2470, %v2466
    %v2719 = vpack.c.b16 %v2471, %v2467
    %v2720 = vpack.c.b16 %v2472, %v2468
    %v2721 = vpack.c.b16 %v2473, %v2469
    %v2722 = vpack.c.b16 %v2478, %v2474
    %v2723 = vpack.c.b16 %v2479, %v2475
    %v2724 = vpack.c.b16 %v2480, %v2476
    %v2725 = vpack.c.b16 %v2481, %v2477
    %v2726 = vpack.c.b16 %v2486, %v2482
    %v2727 = vpack.c.b16 %v2487, %v2483
    %v2728 = vpack.c.b16 %v2488, %v2484
    %v2729 = vpack.c.b16 %v2489, %v2485
    %v2730 = vpack.c.b16 %v2494, %v2490
    %v2731 = vpack.c.b16 %v2495, %v2491
    %v2732 = vpack.c.b16 %v2496, %v2492
    %v2733 = vpack.c.b16 %v2497, %v2493
    %v2734 = vpack.c.b16 %v2502, %v2498
    %v2735 = vpack.c.b16 %v2503, %v2499
    %v2736 = vpack.c.b16 %v2504, %v2500
    %v2737 = vpack.c.b16 %v2505, %v2501
    %v2738 = vpack.c.b16 %v2510, %v2506
    %v2739 = vpack.c.b16 %v2511, %v2507
    %v2740 = vpack.c.b16 %v2512, %v2508
    %v2741 = vpack.c.b16 %v2513, %v2509
    %v2742 = vpack.c.b16 %v2518, %v2514
    %v2743 = vpack.c.b16 %v2519, %v2515
    %v2744 = vpack.c.b16 %v2520, %v2516
    %v2745 = vpack.c.b16 %v2521, %v2517
    %v2746 = vpack.c.b16 %v2526, %v2522
    %v2747 = vpack.c.b16 %v2527, %v2523
    %v2748 = vpack.c.b16 %v2528, %v2524
    %v2749 = vpack.c.b16 %v2529, %v2525
    %v2750 = vpack.c.b16 %v2534, %v2530
    %v2751 = vpack.c.b16 %v2535, %v2531
    %v2752 = vpack.c.b16 %v2536, %v2532
    %v2753 = vpack.c.b16 %v2537, %v2533
    %v2754 = vpack.c.b16 %v2542, %v2538
    %v2755 = vpack.c.b16 %v2543, %v2539
    %v2756 = vpack.c.b16 %v2544, %v2540
    %v2757 = vpack.c.b16 %v2545, %v2541
    %v2758 = vpack.c.b16 %v2550, %v2546
    %v2759 = vpack.c.b16 %v2551, %v2547
    %v2760 = vpack.c.b16 %v2552, %v2548
    %v2761 = vpack.c.b16 %v2553, %v2549
    %v2762 = vpack.c.b16 %v2558, %v2554
    %v2763 = vpack.c.b16 %v2559, %v2555
    %v2764 = vpack.c.b16 %v2560, %v2556
    %v2765 = vpack.c.b16 %v2561, %v2557
    %v2766 = vpack.c.b16 %v2566, %v2562
    %v2767 = vpack.c.b16 %v2567, %v2563
    %v2768 = vpack.c.b16 %v2568, %v2564
    %v2769 = vpack.c.b16 %v2569, %v2565
    %v2770 = vpack.c.b16 %v2574, %v2570
    %v2771 = vpack.c.b16 %v2575, %v2571
    %v2772 = vpack.c.b16 %v2576, %v2572
    %v2773 = vpack.c.b16 %v2577, %v2573
    %v2774 = vpack.c.b16 %v2582, %v2578
    %v2775 = vpack.c.b16 %v2583, %v2579
    %v2776 = vpack.c.b16 %v2584, %v2580
    %v2777 = vpack.c.b16 %v2585, %v2581
    %v2778 = vpack.c.b16 %v2590, %v2586
    %v2779 = vpack.c.b16 %v2591, %v2587
    %v2780 = vpack.c.b16 %v2592, %v2588
    %v2781 = vpack.c.b16 %v2593, %v2589
    %v2782 = vpack.c.b16 %v2598, %v2594
    %v2783 = vpack.c.b16 %v2599, %v2595
    %v2784 = vpack.c.b16 %v2600, %v2596
    %v2785 = vpack.c.b16 %v2601, %v2597
    %v2786 = vpack.c.b16 %v2606, %v2602
    %v2787 = vpack.c.b16 %v2607, %v2603
    %v2788 = vpack.c.b16 %v2608, %v2604
    %v2789 = vpack.c.b16 %v2609, %v2605
    %v2790 = vpack.c.b16 %v2614, %v2610
    %v2791 = vpack.c.b16 %v2615, %v2611
    %v2792 = vpack.c.b16 %v2616, %v2612
    %v2793 = vpack.c.b16 %v2617, %v2613
    %v2794 = vpack.c.b16 %v2622, %v2618
    %v2795 = vpack.c.b16 %v2623, %v2619
    %v2796 = vpack.c.b16 %v2624, %v2620
    %v2797 = vpack.c.b16 %v2625, %v2621
    %v2798 = vpack.c.b16 %v2630, %v2626
    %v2799 = vpack.c.b16 %v2631, %v2627
    %v2800 = vpack.c.b16 %v2632, %v2628
    %v2801 = vpack.c.b16 %v2633, %v2629
    %v2802 = vpack.c.b16 %v2638, %v2634
    %v2803 = vpack.c.b16 %v2639, %v2635
    %v2804 = vpack.c.b16 %v2640, %v2636
    %v2805 = vpack.c.b16 %v2641, %v2637
    %v2806 = vpack.c.b16 %v2646, %v2642
    %v2807 = vpack.c.b16 %v2647, %v2643
    %v2808 = vpack.c.b16 %v2648, %v2644
    %v2809 = vpack.c.b16 %v2649, %v2645
    %v2810 = vpack.c.b16 %v2654, %v2650
    %v2811 = vpack.c.b16 %v2655, %v2651
    %v2812 = vpack.c.b16 %v2656, %v2652
    %v2813 = vpack.c.b16 %v2657, %v2653
    %v2814 = vpack.c.b16 %v2662, %v2658
    %v2815 = vpack.c.b16 %v2663, %v2659
    %v2816 = vpack.c.b16 %v2664, %v2660
    %v2817 = vpack.c.b16 %v2665, %v2661
    %v2818 = vpack.c.b16 %v2670, %v2666
    %v2819 = vpack.c.b16 %v2671, %v2667
    %v2820 = vpack.c.b16 %v2672, %v2668
    %v2821 = vpack.c.b16 %v2673, %v2669
    %v2822 = vpack.c.b16 %v2678, %v2674
    %v2823 = vpack.c.b16 %v2679, %v2675
    %v2824 = vpack.c.b16 %v2680, %v2676
    %v2825 = vpack.c.b16 %v2681, %v2677
    %v2826 = vpack.c.b16 %v2686, %v2682
    %v2827 = vpack.c.b16 %v2687, %v2683
    %v2828 = vpack.c.b16 %v2688, %v2684
    %v2829 = vpack.c.b16 %v2689, %v2685
    %v2830 = vpack.c.b16 %v2694, %v2690
    %v2831 = vpack.c.b16 %v2695, %v2691
    %v2832 = vpack.c.b16 %v2696, %v2692
    %v2833 = vpack.c.b16 %v2697, %v2693
    %v2834 = vpack.c.b16 %v2702, %v2698
    %v2835 = vpack.c.b16 %v2703, %v2699
    %v2836 = vpack.c.b16 %v2704, %v2700
    %v2837 = vpack.c.b16 %v2705, %v2701
    %v2838 = vpack.c.b16 %v2710, %v2706
    %v2839 = vpack.c.b16 %v2711, %v2707
    %v2840 = vpack.c.b16 %v2712, %v2708
    %v2841 = vpack.c.b16 %v2713, %v2709
    %2970 = vmatpush.bf16.msra.mxu0 %v1846
    %2971 = vmatpush.bf16.msra.mxu0 %v1842
    %2972 = vmatpush.bf16.msra.mxu0 %v1838
    %2973 = vmatpush.bf16.msra.mxu0 %v1834
    %2974 = vmatpush.bf16.msra.mxu0 %v1830
    %2975 = vmatpush.bf16.msra.mxu0 %v1826
    %2976 = vmatpush.bf16.msra.mxu0 %v1822
    %2977 = vmatpush.bf16.msra.mxu0 %v1818
    %2978 = vmatmul.bf16.gmra.mxu0 %v2714
    %v2979 = vpop.f32.mrf.mxu0
    %v2980 = vadd.f32 %v2013, %v2979
    %v2981 = vpop.f32.mrf.mxu0
    %v2982 = vadd.f32 %v2018, %v2981
    %2983 = vmatmul.bf16.gmra.mxu0 %v2718
    %v2984 = vpop.f32.mrf.mxu0
    %v2985 = vadd.f32 %v2023, %v2984
    %v2986 = vpop.f32.mrf.mxu0
    %v2987 = vadd.f32 %v2028, %v2986
    %2988 = vmatmul.bf16.gmra.mxu0 %v2722
    %v2989 = vpop.f32.mrf.mxu0
    %v2990 = vadd.f32 %v2033, %v2989
    %v2991 = vpop.f32.mrf.mxu0
    %v2992 = vadd.f32 %v2038, %v2991
    %2993 = vmatmul.bf16.gmra.mxu0 %v2726
    %v2994 = vpop.f32.mrf.mxu0
    %v2995 = vadd.f32 %v2043, %v2994
    %v2996 = vpop.f32.mrf.mxu0
    %v2997 = vadd.f32 %v2048, %v2996
    %2998 = vmatmul.bf16.gmra.mxu0 %v2730
    %v2999 = vpop.f32.mrf.mxu0
    %v3000 = vadd.f32 %v2053, %v2999
    %v3001 = vpop.f32.mrf.mxu0
    %v3002 = vadd.f32 %v2058, %v3001
    %3003 = vmatmul.bf16.gmra.mxu0 %v2734
    %v3004 = vpop.f32.mrf.mxu0
    %v3005 = vadd.f32 %v2063, %v3004
    %v3006 = vpop.f32.mrf.mxu0
    %v3007 = vadd.f32 %v2068, %v3006
    %3008 = vmatmul.bf16.gmra.mxu0 %v2738
    %v3009 = vpop.f32.mrf.mxu0
    %v3010 = vadd.f32 %v2073, %v3009
    %v3011 = vpop.f32.mrf.mxu0
    %v3012 = vadd.f32 %v2078, %v3011
    %3013 = vmatmul.bf16.gmra.mxu0 %v2742
    %v3014 = vpop.f32.mrf.mxu0
    %v3015 = vadd.f32 %v2083, %v3014
    %v3016 = vpop.f32.mrf.mxu0
    %v3017 = vadd.f32 %v2088, %v3016
    %3018 = vmatmul.bf16.gmra.mxu0 %v2746
    %v3019 = vpop.f32.mrf.mxu0
    %v3020 = vadd.f32 %v2093, %v3019
    %v3021 = vpop.f32.mrf.mxu0
    %v3022 = vadd.f32 %v2098, %v3021
    %3023 = vmatmul.bf16.gmra.mxu0 %v2750
    %v3024 = vpop.f32.mrf.mxu0
    %v3025 = vadd.f32 %v2103, %v3024
    %v3026 = vpop.f32.mrf.mxu0
    %v3027 = vadd.f32 %v2108, %v3026
    %3028 = vmatmul.bf16.gmra.mxu0 %v2754
    %v3029 = vpop.f32.mrf.mxu0
    %v3030 = vadd.f32 %v2113, %v3029
    %v3031 = vpop.f32.mrf.mxu0
    %v3032 = vadd.f32 %v2118, %v3031
    %3033 = vmatmul.bf16.gmra.mxu0 %v2758
    %v3034 = vpop.f32.mrf.mxu0
    %v3035 = vadd.f32 %v2123, %v3034
    %v3036 = vpop.f32.mrf.mxu0
    %v3037 = vadd.f32 %v2128, %v3036
    %3038 = vmatmul.bf16.gmra.mxu0 %v2762
    %v3039 = vpop.f32.mrf.mxu0
    %v3040 = vadd.f32 %v2133, %v3039
    %v3041 = vpop.f32.mrf.mxu0
    %v3042 = vadd.f32 %v2138, %v3041
    %3043 = vmatmul.bf16.gmra.mxu0 %v2766
    %v3044 = vpop.f32.mrf.mxu0
    %v3045 = vadd.f32 %v2143, %v3044
    %v3046 = vpop.f32.mrf.mxu0
    %v3047 = vadd.f32 %v2148, %v3046
    %3048 = vmatmul.bf16.gmra.mxu0 %v2770
    %v3049 = vpop.f32.mrf.mxu0
    %v3050 = vadd.f32 %v2153, %v3049
    %v3051 = vpop.f32.mrf.mxu0
    %v3052 = vadd.f32 %v2158, %v3051
    %3053 = vmatmul.bf16.gmra.mxu0 %v2774
    %v3054 = vpop.f32.mrf.mxu0
    %v3055 = vadd.f32 %v2163, %v3054
    %v3056 = vpop.f32.mrf.mxu0
    %v3057 = vadd.f32 %v2168, %v3056
    %3058 = vmatmul.bf16.gmra.mxu0 %v2778
    %v3059 = vpop.f32.mrf.mxu0
    %v3060 = vadd.f32 %v2173, %v3059
    %v3061 = vpop.f32.mrf.mxu0
    %v3062 = vadd.f32 %v2178, %v3061
    %3063 = vmatmul.bf16.gmra.mxu0 %v2782
    %v3064 = vpop.f32.mrf.mxu0
    %v3065 = vadd.f32 %v2183, %v3064
    %v3066 = vpop.f32.mrf.mxu0
    %v3067 = vadd.f32 %v2188, %v3066
    %3068 = vmatmul.bf16.gmra.mxu0 %v2786
    %v3069 = vpop.f32.mrf.mxu0
    %v3070 = vadd.f32 %v2193, %v3069
    %v3071 = vpop.f32.mrf.mxu0
    %v3072 = vadd.f32 %v2198, %v3071
    %3073 = vmatmul.bf16.gmra.mxu0 %v2790
    %v3074 = vpop.f32.mrf.mxu0
    %v3075 = vadd.f32 %v2203, %v3074
    %v3076 = vpop.f32.mrf.mxu0
    %v3077 = vadd.f32 %v2208, %v3076
    %3078 = vmatmul.bf16.gmra.mxu0 %v2794
    %v3079 = vpop.f32.mrf.mxu0
    %v3080 = vadd.f32 %v2213, %v3079
    %v3081 = vpop.f32.mrf.mxu0
    %v3082 = vadd.f32 %v2218, %v3081
    %3083 = vmatmul.bf16.gmra.mxu0 %v2798
    %v3084 = vpop.f32.mrf.mxu0
    %v3085 = vadd.f32 %v2223, %v3084
    %v3086 = vpop.f32.mrf.mxu0
    %v3087 = vadd.f32 %v2228, %v3086
    %3088 = vmatmul.bf16.gmra.mxu0 %v2802
    %v3089 = vpop.f32.mrf.mxu0
    %v3090 = vadd.f32 %v2233, %v3089
    %v3091 = vpop.f32.mrf.mxu0
    %v3092 = vadd.f32 %v2238, %v3091
    %3093 = vmatmul.bf16.gmra.mxu0 %v2806
    %v3094 = vpop.f32.mrf.mxu0
    %v3095 = vadd.f32 %v2243, %v3094
    %v3096 = vpop.f32.mrf.mxu0
    %v3097 = vadd.f32 %v2248, %v3096
    %3098 = vmatmul.bf16.gmra.mxu0 %v2810
    %v3099 = vpop.f32.mrf.mxu0
    %v3100 = vadd.f32 %v2253, %v3099
    %v3101 = vpop.f32.mrf.mxu0
    %v3102 = vadd.f32 %v2258, %v3101
    %3103 = vmatmul.bf16.gmra.mxu0 %v2814
    %v3104 = vpop.f32.mrf.mxu0
    %v3105 = vadd.f32 %v2263, %v3104
    %v3106 = vpop.f32.mrf.mxu0
    %v3107 = vadd.f32 %v2268, %v3106
    %3108 = vmatmul.bf16.gmra.mxu0 %v2818
    %v3109 = vpop.f32.mrf.mxu0
    %v3110 = vadd.f32 %v2273, %v3109
    %v3111 = vpop.f32.mrf.mxu0
    %v3112 = vadd.f32 %v2278, %v3111
    %3113 = vmatmul.bf16.gmra.mxu0 %v2822
    %v3114 = vpop.f32.mrf.mxu0
    %v3115 = vadd.f32 %v2283, %v3114
    %v3116 = vpop.f32.mrf.mxu0
    %v3117 = vadd.f32 %v2288, %v3116
    %3118 = vmatmul.bf16.gmra.mxu0 %v2826
    %v3119 = vpop.f32.mrf.mxu0
    %v3120 = vadd.f32 %v2293, %v3119
    %v3121 = vpop.f32.mrf.mxu0
    %v3122 = vadd.f32 %v2298, %v3121
    %3123 = vmatmul.bf16.gmra.mxu0 %v2830
    %v3124 = vpop.f32.mrf.mxu0
    %v3125 = vadd.f32 %v2303, %v3124
    %v3126 = vpop.f32.mrf.mxu0
    %v3127 = vadd.f32 %v2308, %v3126
    %3128 = vmatmul.bf16.gmra.mxu0 %v2834
    %v3129 = vpop.f32.mrf.mxu0
    %v3130 = vadd.f32 %v2313, %v3129
    %v3131 = vpop.f32.mrf.mxu0
    %v3132 = vadd.f32 %v2318, %v3131
    %3133 = vmatmul.bf16.gmra.mxu0 %v2838
    %v3134 = vpop.f32.mrf.mxu0
    %v3135 = vadd.f32 %v2323, %v3134
    %v3136 = vpop.f32.mrf.mxu0
    %v3137 = vadd.f32 %v2328, %v3136
    %3138 = vdwg.mxu0
    %3139 = vmatpush.bf16.msra.mxu0 %v1878
    %3140 = vmatpush.bf16.msra.mxu0 %v1874
    %3141 = vmatpush.bf16.msra.mxu0 %v1870
    %3142 = vmatpush.bf16.msra.mxu0 %v1866
    %3143 = vmatpush.bf16.msra.mxu0 %v1862
    %3144 = vmatpush.bf16.msra.mxu0 %v1858
    %3145 = vmatpush.bf16.msra.mxu0 %v1854
    %3146 = vmatpush.bf16.msra.mxu0 %v1850
    %3147 = vmatmul.bf16.gmra.mxu0 %v2715
    %v3148 = vpop.f32.mrf.mxu0
    %v3149 = vadd.f32 %v2980, %v3148
    %v3150 = vpop.f32.mrf.mxu0
    %v3151 = vadd.f32 %v2982, %v3150
    %3152 = vmatmul.bf16.gmra.mxu0 %v2719
    %v3153 = vpop.f32.mrf.mxu0
    %v3154 = vadd.f32 %v2985, %v3153
    %v3155 = vpop.f32.mrf.mxu0
    %v3156 = vadd.f32 %v2987, %v3155
    %3157 = vmatmul.bf16.gmra.mxu0 %v2723
    %v3158 = vpop.f32.mrf.mxu0
    %v3159 = vadd.f32 %v2990, %v3158
    %v3160 = vpop.f32.mrf.mxu0
    %v3161 = vadd.f32 %v2992, %v3160
    %3162 = vmatmul.bf16.gmra.mxu0 %v2727
    %v3163 = vpop.f32.mrf.mxu0
    %v3164 = vadd.f32 %v2995, %v3163
    %v3165 = vpop.f32.mrf.mxu0
    %v3166 = vadd.f32 %v2997, %v3165
    %3167 = vmatmul.bf16.gmra.mxu0 %v2731
    %v3168 = vpop.f32.mrf.mxu0
    %v3169 = vadd.f32 %v3000, %v3168
    %v3170 = vpop.f32.mrf.mxu0
    %v3171 = vadd.f32 %v3002, %v3170
    %3172 = vmatmul.bf16.gmra.mxu0 %v2735
    %v3173 = vpop.f32.mrf.mxu0
    %v3174 = vadd.f32 %v3005, %v3173
    %v3175 = vpop.f32.mrf.mxu0
    %v3176 = vadd.f32 %v3007, %v3175
    %3177 = vmatmul.bf16.gmra.mxu0 %v2739
    %v3178 = vpop.f32.mrf.mxu0
    %v3179 = vadd.f32 %v3010, %v3178
    %v3180 = vpop.f32.mrf.mxu0
    %v3181 = vadd.f32 %v3012, %v3180
    %3182 = vmatmul.bf16.gmra.mxu0 %v2743
    %v3183 = vpop.f32.mrf.mxu0
    %v3184 = vadd.f32 %v3015, %v3183
    %v3185 = vpop.f32.mrf.mxu0
    %v3186 = vadd.f32 %v3017, %v3185
    %3187 = vmatmul.bf16.gmra.mxu0 %v2747
    %v3188 = vpop.f32.mrf.mxu0
    %v3189 = vadd.f32 %v3020, %v3188
    %v3190 = vpop.f32.mrf.mxu0
    %v3191 = vadd.f32 %v3022, %v3190
    %3192 = vmatmul.bf16.gmra.mxu0 %v2751
    %v3193 = vpop.f32.mrf.mxu0
    %v3194 = vadd.f32 %v3025, %v3193
    %v3195 = vpop.f32.mrf.mxu0
    %v3196 = vadd.f32 %v3027, %v3195
    %3197 = vmatmul.bf16.gmra.mxu0 %v2755
    %v3198 = vpop.f32.mrf.mxu0
    %v3199 = vadd.f32 %v3030, %v3198
    %v3200 = vpop.f32.mrf.mxu0
    %v3201 = vadd.f32 %v3032, %v3200
    %3202 = vmatmul.bf16.gmra.mxu0 %v2759
    %v3203 = vpop.f32.mrf.mxu0
    %v3204 = vadd.f32 %v3035, %v3203
    %v3205 = vpop.f32.mrf.mxu0
    %v3206 = vadd.f32 %v3037, %v3205
    %3207 = vmatmul.bf16.gmra.mxu0 %v2763
    %v3208 = vpop.f32.mrf.mxu0
    %v3209 = vadd.f32 %v3040, %v3208
    %v3210 = vpop.f32.mrf.mxu0
    %v3211 = vadd.f32 %v3042, %v3210
    %3212 = vmatmul.bf16.gmra.mxu0 %v2767
    %v3213 = vpop.f32.mrf.mxu0
    %v3214 = vadd.f32 %v3045, %v3213
    %v3215 = vpop.f32.mrf.mxu0
    %v3216 = vadd.f32 %v3047, %v3215
    %3217 = vmatmul.bf16.gmra.mxu0 %v2771
    %v3218 = vpop.f32.mrf.mxu0
    %v3219 = vadd.f32 %v3050, %v3218
    %v3220 = vpop.f32.mrf.mxu0
    %v3221 = vadd.f32 %v3052, %v3220
    %3222 = vmatmul.bf16.gmra.mxu0 %v2775
    %v3223 = vpop.f32.mrf.mxu0
    %v3224 = vadd.f32 %v3055, %v3223
    %v3225 = vpop.f32.mrf.mxu0
    %v3226 = vadd.f32 %v3057, %v3225
    %3227 = vmatmul.bf16.gmra.mxu0 %v2779
    %v3228 = vpop.f32.mrf.mxu0
    %v3229 = vadd.f32 %v3060, %v3228
    %v3230 = vpop.f32.mrf.mxu0
    %v3231 = vadd.f32 %v3062, %v3230
    %3232 = vmatmul.bf16.gmra.mxu0 %v2783
    %v3233 = vpop.f32.mrf.mxu0
    %v3234 = vadd.f32 %v3065, %v3233
    %v3235 = vpop.f32.mrf.mxu0
    %v3236 = vadd.f32 %v3067, %v3235
    %3237 = vmatmul.bf16.gmra.mxu0 %v2787
    %v3238 = vpop.f32.mrf.mxu0
    %v3239 = vadd.f32 %v3070, %v3238
    %v3240 = vpop.f32.mrf.mxu0
    %v3241 = vadd.f32 %v3072, %v3240
    %3242 = vmatmul.bf16.gmra.mxu0 %v2791
    %v3243 = vpop.f32.mrf.mxu0
    %v3244 = vadd.f32 %v3075, %v3243
    %v3245 = vpop.f32.mrf.mxu0
    %v3246 = vadd.f32 %v3077, %v3245
    %3247 = vmatmul.bf16.gmra.mxu0 %v2795
    %v3248 = vpop.f32.mrf.mxu0
    %v3249 = vadd.f32 %v3080, %v3248
    %v3250 = vpop.f32.mrf.mxu0
    %v3251 = vadd.f32 %v3082, %v3250
    %3252 = vmatmul.bf16.gmra.mxu0 %v2799
    %v3253 = vpop.f32.mrf.mxu0
    %v3254 = vadd.f32 %v3085, %v3253
    %v3255 = vpop.f32.mrf.mxu0
    %v3256 = vadd.f32 %v3087, %v3255
    %3257 = vmatmul.bf16.gmra.mxu0 %v2803
    %v3258 = vpop.f32.mrf.mxu0
    %v3259 = vadd.f32 %v3090, %v3258
    %v3260 = vpop.f32.mrf.mxu0
    %v3261 = vadd.f32 %v3092, %v3260
    %3262 = vmatmul.bf16.gmra.mxu0 %v2807
    %v3263 = vpop.f32.mrf.mxu0
    %v3264 = vadd.f32 %v3095, %v3263
    %v3265 = vpop.f32.mrf.mxu0
    %v3266 = vadd.f32 %v3097, %v3265
    %3267 = vmatmul.bf16.gmra.mxu0 %v2811
    %v3268 = vpop.f32.mrf.mxu0
    %v3269 = vadd.f32 %v3100, %v3268
    %v3270 = vpop.f32.mrf.mxu0
    %v3271 = vadd.f32 %v3102, %v3270
    %3272 = vmatmul.bf16.gmra.mxu0 %v2815
    %v3273 = vpop.f32.mrf.mxu0
    %v3274 = vadd.f32 %v3105, %v3273
    %v3275 = vpop.f32.mrf.mxu0
    %v3276 = vadd.f32 %v3107, %v3275
    %3277 = vmatmul.bf16.gmra.mxu0 %v2819
    %v3278 = vpop.f32.mrf.mxu0
    %v3279 = vadd.f32 %v3110, %v3278
    %v3280 = vpop.f32.mrf.mxu0
    %v3281 = vadd.f32 %v3112, %v3280
    %3282 = vmatmul.bf16.gmra.mxu0 %v2823
    %v3283 = vpop.f32.mrf.mxu0
    %v3284 = vadd.f32 %v3115, %v3283
    %v3285 = vpop.f32.mrf.mxu0
    %v3286 = vadd.f32 %v3117, %v3285
    %3287 = vmatmul.bf16.gmra.mxu0 %v2827
    %v3288 = vpop.f32.mrf.mxu0
    %v3289 = vadd.f32 %v3120, %v3288
    %v3290 = vpop.f32.mrf.mxu0
    %v3291 = vadd.f32 %v3122, %v3290
    %3292 = vmatmul.bf16.gmra.mxu0 %v2831
    %v3293 = vpop.f32.mrf.mxu0
    %v3294 = vadd.f32 %v3125, %v3293
    %v3295 = vpop.f32.mrf.mxu0
    %v3296 = vadd.f32 %v3127, %v3295
    %3297 = vmatmul.bf16.gmra.mxu0 %v2835
    %v3298 = vpop.f32.mrf.mxu0
    %v3299 = vadd.f32 %v3130, %v3298
    %v3300 = vpop.f32.mrf.mxu0
    %v3301 = vadd.f32 %v3132, %v3300
    %3302 = vmatmul.bf16.gmra.mxu0 %v2839
    %v3303 = vpop.f32.mrf.mxu0
    %v3304 = vadd.f32 %v3135, %v3303
    %v3305 = vpop.f32.mrf.mxu0
    %v3306 = vadd.f32 %v3137, %v3305
    %3307 = vdwg.mxu0
    %3308 = vmatpush.bf16.msra.mxu0 %v1910
    %3309 = vmatpush.bf16.msra.mxu0 %v1906
    %3310 = vmatpush.bf16.msra.mxu0 %v1902
    %3311 = vmatpush.bf16.msra.mxu0 %v1898
    %3312 = vmatpush.bf16.msra.mxu0 %v1894
    %3313 = vmatpush.bf16.msra.mxu0 %v1890
    %3314 = vmatpush.bf16.msra.mxu0 %v1886
    %3315 = vmatpush.bf16.msra.mxu0 %v1882
    %3316 = vmatmul.bf16.gmra.mxu0 %v2716
    %v3317 = vpop.f32.mrf.mxu0
    %v3318 = vadd.f32 %v3149, %v3317
    %v3319 = vpop.f32.mrf.mxu0
    %v3320 = vadd.f32 %v3151, %v3319
    %3321 = vmatmul.bf16.gmra.mxu0 %v2720
    %v3322 = vpop.f32.mrf.mxu0
    %v3323 = vadd.f32 %v3154, %v3322
    %v3324 = vpop.f32.mrf.mxu0
    %v3325 = vadd.f32 %v3156, %v3324
    %3326 = vmatmul.bf16.gmra.mxu0 %v2724
    %v3327 = vpop.f32.mrf.mxu0
    %v3328 = vadd.f32 %v3159, %v3327
    %v3329 = vpop.f32.mrf.mxu0
    %v3330 = vadd.f32 %v3161, %v3329
    %3331 = vmatmul.bf16.gmra.mxu0 %v2728
    %v3332 = vpop.f32.mrf.mxu0
    %v3333 = vadd.f32 %v3164, %v3332
    %v3334 = vpop.f32.mrf.mxu0
    %v3335 = vadd.f32 %v3166, %v3334
    %3336 = vmatmul.bf16.gmra.mxu0 %v2732
    %v3337 = vpop.f32.mrf.mxu0
    %v3338 = vadd.f32 %v3169, %v3337
    %v3339 = vpop.f32.mrf.mxu0
    %v3340 = vadd.f32 %v3171, %v3339
    %3341 = vmatmul.bf16.gmra.mxu0 %v2736
    %v3342 = vpop.f32.mrf.mxu0
    %v3343 = vadd.f32 %v3174, %v3342
    %v3344 = vpop.f32.mrf.mxu0
    %v3345 = vadd.f32 %v3176, %v3344
    %3346 = vmatmul.bf16.gmra.mxu0 %v2740
    %v3347 = vpop.f32.mrf.mxu0
    %v3348 = vadd.f32 %v3179, %v3347
    %v3349 = vpop.f32.mrf.mxu0
    %v3350 = vadd.f32 %v3181, %v3349
    %3351 = vmatmul.bf16.gmra.mxu0 %v2744
    %v3352 = vpop.f32.mrf.mxu0
    %v3353 = vadd.f32 %v3184, %v3352
    %v3354 = vpop.f32.mrf.mxu0
    %v3355 = vadd.f32 %v3186, %v3354
    %3356 = vmatmul.bf16.gmra.mxu0 %v2748
    %v3357 = vpop.f32.mrf.mxu0
    %v3358 = vadd.f32 %v3189, %v3357
    %v3359 = vpop.f32.mrf.mxu0
    %v3360 = vadd.f32 %v3191, %v3359
    %3361 = vmatmul.bf16.gmra.mxu0 %v2752
    %v3362 = vpop.f32.mrf.mxu0
    %v3363 = vadd.f32 %v3194, %v3362
    %v3364 = vpop.f32.mrf.mxu0
    %v3365 = vadd.f32 %v3196, %v3364
    %3366 = vmatmul.bf16.gmra.mxu0 %v2756
    %v3367 = vpop.f32.mrf.mxu0
    %v3368 = vadd.f32 %v3199, %v3367
    %v3369 = vpop.f32.mrf.mxu0
    %v3370 = vadd.f32 %v3201, %v3369
    %3371 = vmatmul.bf16.gmra.mxu0 %v2760
    %v3372 = vpop.f32.mrf.mxu0
    %v3373 = vadd.f32 %v3204, %v3372
    %v3374 = vpop.f32.mrf.mxu0
    %v3375 = vadd.f32 %v3206, %v3374
    %3376 = vmatmul.bf16.gmra.mxu0 %v2764
    %v3377 = vpop.f32.mrf.mxu0
    %v3378 = vadd.f32 %v3209, %v3377
    %v3379 = vpop.f32.mrf.mxu0
    %v3380 = vadd.f32 %v3211, %v3379
    %3381 = vmatmul.bf16.gmra.mxu0 %v2768
    %v3382 = vpop.f32.mrf.mxu0
    %v3383 = vadd.f32 %v3214, %v3382
    %v3384 = vpop.f32.mrf.mxu0
    %v3385 = vadd.f32 %v3216, %v3384
    %3386 = vmatmul.bf16.gmra.mxu0 %v2772
    %v3387 = vpop.f32.mrf.mxu0
    %v3388 = vadd.f32 %v3219, %v3387
    %v3389 = vpop.f32.mrf.mxu0
    %v3390 = vadd.f32 %v3221, %v3389
    %3391 = vmatmul.bf16.gmra.mxu0 %v2776
    %v3392 = vpop.f32.mrf.mxu0
    %v3393 = vadd.f32 %v3224, %v3392
    %v3394 = vpop.f32.mrf.mxu0
    %v3395 = vadd.f32 %v3226, %v3394
    %3396 = vmatmul.bf16.gmra.mxu0 %v2780
    %v3397 = vpop.f32.mrf.mxu0
    %v3398 = vadd.f32 %v3229, %v3397
    %v3399 = vpop.f32.mrf.mxu0
    %v3400 = vadd.f32 %v3231, %v3399
    %3401 = vmatmul.bf16.gmra.mxu0 %v2784
    %v3402 = vpop.f32.mrf.mxu0
    %v3403 = vadd.f32 %v3234, %v3402
    %v3404 = vpop.f32.mrf.mxu0
    %v3405 = vadd.f32 %v3236, %v3404
    %3406 = vmatmul.bf16.gmra.mxu0 %v2788
    %v3407 = vpop.f32.mrf.mxu0
    %v3408 = vadd.f32 %v3239, %v3407
    %v3409 = vpop.f32.mrf.mxu0
    %v3410 = vadd.f32 %v3241, %v3409
    %3411 = vmatmul.bf16.gmra.mxu0 %v2792
    %v3412 = vpop.f32.mrf.mxu0
    %v3413 = vadd.f32 %v3244, %v3412
    %v3414 = vpop.f32.mrf.mxu0
    %v3415 = vadd.f32 %v3246, %v3414
    %3416 = vmatmul.bf16.gmra.mxu0 %v2796
    %v3417 = vpop.f32.mrf.mxu0
    %v3418 = vadd.f32 %v3249, %v3417
    %v3419 = vpop.f32.mrf.mxu0
    %v3420 = vadd.f32 %v3251, %v3419
    %3421 = vmatmul.bf16.gmra.mxu0 %v2800
    %v3422 = vpop.f32.mrf.mxu0
    %v3423 = vadd.f32 %v3254, %v3422
    %v3424 = vpop.f32.mrf.mxu0
    %v3425 = vadd.f32 %v3256, %v3424
    %3426 = vmatmul.bf16.gmra.mxu0 %v2804
    %v3427 = vpop.f32.mrf.mxu0
    %v3428 = vadd.f32 %v3259, %v3427
    %v3429 = vpop.f32.mrf.mxu0
    %v3430 = vadd.f32 %v3261, %v3429
    %3431 = vmatmul.bf16.gmra.mxu0 %v2808
    %v3432 = vpop.f32.mrf.mxu0
    %v3433 = vadd.f32 %v3264, %v3432
    %v3434 = vpop.f32.mrf.mxu0
    %v3435 = vadd.f32 %v3266, %v3434
    %3436 = vmatmul.bf16.gmra.mxu0 %v2812
    %v3437 = vpop.f32.mrf.mxu0
    %v3438 = vadd.f32 %v3269, %v3437
    %v3439 = vpop.f32.mrf.mxu0
    %v3440 = vadd.f32 %v3271, %v3439
    %3441 = vmatmul.bf16.gmra.mxu0 %v2816
    %v3442 = vpop.f32.mrf.mxu0
    %v3443 = vadd.f32 %v3274, %v3442
    %v3444 = vpop.f32.mrf.mxu0
    %v3445 = vadd.f32 %v3276, %v3444
    %3446 = vmatmul.bf16.gmra.mxu0 %v2820
    %v3447 = vpop.f32.mrf.mxu0
    %v3448 = vadd.f32 %v3279, %v3447
    %v3449 = vpop.f32.mrf.mxu0
    %v3450 = vadd.f32 %v3281, %v3449
    %3451 = vmatmul.bf16.gmra.mxu0 %v2824
    %v3452 = vpop.f32.mrf.mxu0
    %v3453 = vadd.f32 %v3284, %v3452
    %v3454 = vpop.f32.mrf.mxu0
    %v3455 = vadd.f32 %v3286, %v3454
    %3456 = vmatmul.bf16.gmra.mxu0 %v2828
    %v3457 = vpop.f32.mrf.mxu0
    %v3458 = vadd.f32 %v3289, %v3457
    %v3459 = vpop.f32.mrf.mxu0
    %v3460 = vadd.f32 %v3291, %v3459
    %3461 = vmatmul.bf16.gmra.mxu0 %v2832
    %v3462 = vpop.f32.mrf.mxu0
    %v3463 = vadd.f32 %v3294, %v3462
    %v3464 = vpop.f32.mrf.mxu0
    %v3465 = vadd.f32 %v3296, %v3464
    %3466 = vmatmul.bf16.gmra.mxu0 %v2836
    %v3467 = vpop.f32.mrf.mxu0
    %v3468 = vadd.f32 %v3299, %v3467
    %v3469 = vpop.f32.mrf.mxu0
    %v3470 = vadd.f32 %v3301, %v3469
    %3471 = vmatmul.bf16.gmra.mxu0 %v2840
    %v3472 = vpop.f32.mrf.mxu0
    %v3473 = vadd.f32 %v3304, %v3472
    %v3474 = vpop.f32.mrf.mxu0
    %v3475 = vadd.f32 %v3306, %v3474
    %3476 = vdwg.mxu0
    %3477 = vmatpush.bf16.msra.mxu0 %v1942
    %3478 = vmatpush.bf16.msra.mxu0 %v1938
    %3479 = vmatpush.bf16.msra.mxu0 %v1934
    %3480 = vmatpush.bf16.msra.mxu0 %v1930
    %3481 = vmatpush.bf16.msra.mxu0 %v1926
    %3482 = vmatpush.bf16.msra.mxu0 %v1922
    %3483 = vmatpush.bf16.msra.mxu0 %v1918
    %3484 = vmatpush.bf16.msra.mxu0 %v1914
    %3485 = vmatmul.bf16.gmra.mxu0 %v2717
    %v3486 = vpop.f32.mrf.mxu0
    %v3487 = vadd.f32 %v3318, %v3486
    %v3488 = vpop.f32.mrf.mxu0
    %v3489 = vadd.f32 %v3320, %v3488
    %3490 = vmatmul.bf16.gmra.mxu0 %v2721
    %v3491 = vpop.f32.mrf.mxu0
    %v3492 = vadd.f32 %v3323, %v3491
    %v3493 = vpop.f32.mrf.mxu0
    %v3494 = vadd.f32 %v3325, %v3493
    %3495 = vmatmul.bf16.gmra.mxu0 %v2725
    %v3496 = vpop.f32.mrf.mxu0
    %v3497 = vadd.f32 %v3328, %v3496
    %v3498 = vpop.f32.mrf.mxu0
    %v3499 = vadd.f32 %v3330, %v3498
    %3500 = vmatmul.bf16.gmra.mxu0 %v2729
    %v3501 = vpop.f32.mrf.mxu0
    %v3502 = vadd.f32 %v3333, %v3501
    %v3503 = vpop.f32.mrf.mxu0
    %v3504 = vadd.f32 %v3335, %v3503
    %3505 = vmatmul.bf16.gmra.mxu0 %v2733
    %v3506 = vpop.f32.mrf.mxu0
    %v3507 = vadd.f32 %v3338, %v3506
    %v3508 = vpop.f32.mrf.mxu0
    %v3509 = vadd.f32 %v3340, %v3508
    %3510 = vmatmul.bf16.gmra.mxu0 %v2737
    %v3511 = vpop.f32.mrf.mxu0
    %v3512 = vadd.f32 %v3343, %v3511
    %v3513 = vpop.f32.mrf.mxu0
    %v3514 = vadd.f32 %v3345, %v3513
    %3515 = vmatmul.bf16.gmra.mxu0 %v2741
    %v3516 = vpop.f32.mrf.mxu0
    %v3517 = vadd.f32 %v3348, %v3516
    %v3518 = vpop.f32.mrf.mxu0
    %v3519 = vadd.f32 %v3350, %v3518
    %3520 = vmatmul.bf16.gmra.mxu0 %v2745
    %v3521 = vpop.f32.mrf.mxu0
    %v3522 = vadd.f32 %v3353, %v3521
    %v3523 = vpop.f32.mrf.mxu0
    %v3524 = vadd.f32 %v3355, %v3523
    %3525 = vmatmul.bf16.gmra.mxu0 %v2749
    %v3526 = vpop.f32.mrf.mxu0
    %v3527 = vadd.f32 %v3358, %v3526
    %v3528 = vpop.f32.mrf.mxu0
    %v3529 = vadd.f32 %v3360, %v3528
    %3530 = vmatmul.bf16.gmra.mxu0 %v2753
    %v3531 = vpop.f32.mrf.mxu0
    %v3532 = vadd.f32 %v3363, %v3531
    %v3533 = vpop.f32.mrf.mxu0
    %v3534 = vadd.f32 %v3365, %v3533
    %3535 = vmatmul.bf16.gmra.mxu0 %v2757
    %v3536 = vpop.f32.mrf.mxu0
    %v3537 = vadd.f32 %v3368, %v3536
    %v3538 = vpop.f32.mrf.mxu0
    %v3539 = vadd.f32 %v3370, %v3538
    %3540 = vmatmul.bf16.gmra.mxu0 %v2761
    %v3541 = vpop.f32.mrf.mxu0
    %v3542 = vadd.f32 %v3373, %v3541
    %v3543 = vpop.f32.mrf.mxu0
    %v3544 = vadd.f32 %v3375, %v3543
    %3545 = vmatmul.bf16.gmra.mxu0 %v2765
    %v3546 = vpop.f32.mrf.mxu0
    %v3547 = vadd.f32 %v3378, %v3546
    %v3548 = vpop.f32.mrf.mxu0
    %v3549 = vadd.f32 %v3380, %v3548
    %3550 = vmatmul.bf16.gmra.mxu0 %v2769
    %v3551 = vpop.f32.mrf.mxu0
    %v3552 = vadd.f32 %v3383, %v3551
    %v3553 = vpop.f32.mrf.mxu0
    %v3554 = vadd.f32 %v3385, %v3553
    %3555 = vmatmul.bf16.gmra.mxu0 %v2773
    %v3556 = vpop.f32.mrf.mxu0
    %v3557 = vadd.f32 %v3388, %v3556
    %v3558 = vpop.f32.mrf.mxu0
    %v3559 = vadd.f32 %v3390, %v3558
    %3560 = vmatmul.bf16.gmra.mxu0 %v2777
    %v3561 = vpop.f32.mrf.mxu0
    %v3562 = vadd.f32 %v3393, %v3561
    %v3563 = vpop.f32.mrf.mxu0
    %v3564 = vadd.f32 %v3395, %v3563
    %3565 = vmatmul.bf16.gmra.mxu0 %v2781
    %v3566 = vpop.f32.mrf.mxu0
    %v3567 = vadd.f32 %v3398, %v3566
    %v3568 = vpop.f32.mrf.mxu0
    %v3569 = vadd.f32 %v3400, %v3568
    %3570 = vmatmul.bf16.gmra.mxu0 %v2785
    %v3571 = vpop.f32.mrf.mxu0
    %v3572 = vadd.f32 %v3403, %v3571
    %v3573 = vpop.f32.mrf.mxu0
    %v3574 = vadd.f32 %v3405, %v3573
    %3575 = vmatmul.bf16.gmra.mxu0 %v2789
    %v3576 = vpop.f32.mrf.mxu0
    %v3577 = vadd.f32 %v3408, %v3576
    %v3578 = vpop.f32.mrf.mxu0
    %v3579 = vadd.f32 %v3410, %v3578
    %3580 = vmatmul.bf16.gmra.mxu0 %v2793
    %v3581 = vpop.f32.mrf.mxu0
    %v3582 = vadd.f32 %v3413, %v3581
    %v3583 = vpop.f32.mrf.mxu0
    %v3584 = vadd.f32 %v3415, %v3583
    %3585 = vmatmul.bf16.gmra.mxu0 %v2797
    %v3586 = vpop.f32.mrf.mxu0
    %v3587 = vadd.f32 %v3418, %v3586
    %v3588 = vpop.f32.mrf.mxu0
    %v3589 = vadd.f32 %v3420, %v3588
    %3590 = vmatmul.bf16.gmra.mxu0 %v2801
    %v3591 = vpop.f32.mrf.mxu0
    %v3592 = vadd.f32 %v3423, %v3591
    %v3593 = vpop.f32.mrf.mxu0
    %v3594 = vadd.f32 %v3425, %v3593
    %3595 = vmatmul.bf16.gmra.mxu0 %v2805
    %v3596 = vpop.f32.mrf.mxu0
    %v3597 = vadd.f32 %v3428, %v3596
    %v3598 = vpop.f32.mrf.mxu0
    %v3599 = vadd.f32 %v3430, %v3598
    %3600 = vmatmul.bf16.gmra.mxu0 %v2809
    %v3601 = vpop.f32.mrf.mxu0
    %v3602 = vadd.f32 %v3433, %v3601
    %v3603 = vpop.f32.mrf.mxu0
    %v3604 = vadd.f32 %v3435, %v3603
    %3605 = vmatmul.bf16.gmra.mxu0 %v2813
    %v3606 = vpop.f32.mrf.mxu0
    %v3607 = vadd.f32 %v3438, %v3606
    %v3608 = vpop.f32.mrf.mxu0
    %v3609 = vadd.f32 %v3440, %v3608
    %3610 = vmatmul.bf16.gmra.mxu0 %v2817
    %v3611 = vpop.f32.mrf.mxu0
    %v3612 = vadd.f32 %v3443, %v3611
    %v3613 = vpop.f32.mrf.mxu0
    %v3614 = vadd.f32 %v3445, %v3613
    %3615 = vmatmul.bf16.gmra.mxu0 %v2821
    %v3616 = vpop.f32.mrf.mxu0
    %v3617 = vadd.f32 %v3448, %v3616
    %v3618 = vpop.f32.mrf.mxu0
    %v3619 = vadd.f32 %v3450, %v3618
    %3620 = vmatmul.bf16.gmra.mxu0 %v2825
    %v3621 = vpop.f32.mrf.mxu0
    %v3622 = vadd.f32 %v3453, %v3621
    %v3623 = vpop.f32.mrf.mxu0
    %v3624 = vadd.f32 %v3455, %v3623
    %3625 = vmatmul.bf16.gmra.mxu0 %v2829
    %v3626 = vpop.f32.mrf.mxu0
    %v3627 = vadd.f32 %v3458, %v3626
    %v3628 = vpop.f32.mrf.mxu0
    %v3629 = vadd.f32 %v3460, %v3628
    %3630 = vmatmul.bf16.gmra.mxu0 %v2833
    %v3631 = vpop.f32.mrf.mxu0
    %v3632 = vadd.f32 %v3463, %v3631
    %v3633 = vpop.f32.mrf.mxu0
    %v3634 = vadd.f32 %v3465, %v3633
    %3635 = vmatmul.bf16.gmra.mxu0 %v2837
    %v3636 = vpop.f32.mrf.mxu0
    %v3637 = vadd.f32 %v3468, %v3636
    %v3638 = vpop.f32.mrf.mxu0
    %v3639 = vadd.f32 %v3470, %v3638
    %3640 = vmatmul.bf16.gmra.mxu0 %v2841
    %v3641 = vpop.f32.mrf.mxu0
    %v3642 = vadd.f32 %v3473, %v3641
    %v3643 = vpop.f32.mrf.mxu0
    %v3644 = vadd.f32 %v3475, %v3643
    %3645 = vdwg.mxu0
    %3646 = vmatpush.bf16.msra.mxu0 %v1847
    %3647 = vmatpush.bf16.msra.mxu0 %v1843
    %3648 = vmatpush.bf16.msra.mxu0 %v1839
    %3649 = vmatpush.bf16.msra.mxu0 %v1835
    %3650 = vmatpush.bf16.msra.mxu0 %v1831
    %3651 = vmatpush.bf16.msra.mxu0 %v1827
    %3652 = vmatpush.bf16.msra.mxu0 %v1823
    %3653 = vmatpush.bf16.msra.mxu0 %v1819
    %3654 = vmatmul.bf16.gmra.mxu0 %v2714
    %v3655 = vpop.f32.mrf.mxu0
    %v3656 = vadd.f32 %v2013, %v3655
    %v3657 = vpop.f32.mrf.mxu0
    %v3658 = vadd.f32 %v2018, %v3657
    %3659 = vmatmul.bf16.gmra.mxu0 %v2718
    %v3660 = vpop.f32.mrf.mxu0
    %v3661 = vadd.f32 %v2023, %v3660
    %v3662 = vpop.f32.mrf.mxu0
    %v3663 = vadd.f32 %v2028, %v3662
    %3664 = vmatmul.bf16.gmra.mxu0 %v2722
    %v3665 = vpop.f32.mrf.mxu0
    %v3666 = vadd.f32 %v2033, %v3665
    %v3667 = vpop.f32.mrf.mxu0
    %v3668 = vadd.f32 %v2038, %v3667
    %3669 = vmatmul.bf16.gmra.mxu0 %v2726
    %v3670 = vpop.f32.mrf.mxu0
    %v3671 = vadd.f32 %v2043, %v3670
    %v3672 = vpop.f32.mrf.mxu0
    %v3673 = vadd.f32 %v2048, %v3672
    %3674 = vmatmul.bf16.gmra.mxu0 %v2730
    %v3675 = vpop.f32.mrf.mxu0
    %v3676 = vadd.f32 %v2053, %v3675
    %v3677 = vpop.f32.mrf.mxu0
    %v3678 = vadd.f32 %v2058, %v3677
    %3679 = vmatmul.bf16.gmra.mxu0 %v2734
    %v3680 = vpop.f32.mrf.mxu0
    %v3681 = vadd.f32 %v2063, %v3680
    %v3682 = vpop.f32.mrf.mxu0
    %v3683 = vadd.f32 %v2068, %v3682
    %3684 = vmatmul.bf16.gmra.mxu0 %v2738
    %v3685 = vpop.f32.mrf.mxu0
    %v3686 = vadd.f32 %v2073, %v3685
    %v3687 = vpop.f32.mrf.mxu0
    %v3688 = vadd.f32 %v2078, %v3687
    %3689 = vmatmul.bf16.gmra.mxu0 %v2742
    %v3690 = vpop.f32.mrf.mxu0
    %v3691 = vadd.f32 %v2083, %v3690
    %v3692 = vpop.f32.mrf.mxu0
    %v3693 = vadd.f32 %v2088, %v3692
    %3694 = vmatmul.bf16.gmra.mxu0 %v2746
    %v3695 = vpop.f32.mrf.mxu0
    %v3696 = vadd.f32 %v2093, %v3695
    %v3697 = vpop.f32.mrf.mxu0
    %v3698 = vadd.f32 %v2098, %v3697
    %3699 = vmatmul.bf16.gmra.mxu0 %v2750
    %v3700 = vpop.f32.mrf.mxu0
    %v3701 = vadd.f32 %v2103, %v3700
    %v3702 = vpop.f32.mrf.mxu0
    %v3703 = vadd.f32 %v2108, %v3702
    %3704 = vmatmul.bf16.gmra.mxu0 %v2754
    %v3705 = vpop.f32.mrf.mxu0
    %v3706 = vadd.f32 %v2113, %v3705
    %v3707 = vpop.f32.mrf.mxu0
    %v3708 = vadd.f32 %v2118, %v3707
    %3709 = vmatmul.bf16.gmra.mxu0 %v2758
    %v3710 = vpop.f32.mrf.mxu0
    %v3711 = vadd.f32 %v2123, %v3710
    %v3712 = vpop.f32.mrf.mxu0
    %v3713 = vadd.f32 %v2128, %v3712
    %3714 = vmatmul.bf16.gmra.mxu0 %v2762
    %v3715 = vpop.f32.mrf.mxu0
    %v3716 = vadd.f32 %v2133, %v3715
    %v3717 = vpop.f32.mrf.mxu0
    %v3718 = vadd.f32 %v2138, %v3717
    %3719 = vmatmul.bf16.gmra.mxu0 %v2766
    %v3720 = vpop.f32.mrf.mxu0
    %v3721 = vadd.f32 %v2143, %v3720
    %v3722 = vpop.f32.mrf.mxu0
    %v3723 = vadd.f32 %v2148, %v3722
    %3724 = vmatmul.bf16.gmra.mxu0 %v2770
    %v3725 = vpop.f32.mrf.mxu0
    %v3726 = vadd.f32 %v2153, %v3725
    %v3727 = vpop.f32.mrf.mxu0
    %v3728 = vadd.f32 %v2158, %v3727
    %3729 = vmatmul.bf16.gmra.mxu0 %v2774
    %v3730 = vpop.f32.mrf.mxu0
    %v3731 = vadd.f32 %v2163, %v3730
    %v3732 = vpop.f32.mrf.mxu0
    %v3733 = vadd.f32 %v2168, %v3732
    %3734 = vmatmul.bf16.gmra.mxu0 %v2778
    %v3735 = vpop.f32.mrf.mxu0
    %v3736 = vadd.f32 %v2173, %v3735
    %v3737 = vpop.f32.mrf.mxu0
    %v3738 = vadd.f32 %v2178, %v3737
    %3739 = vmatmul.bf16.gmra.mxu0 %v2782
    %v3740 = vpop.f32.mrf.mxu0
    %v3741 = vadd.f32 %v2183, %v3740
    %v3742 = vpop.f32.mrf.mxu0
    %v3743 = vadd.f32 %v2188, %v3742
    %3744 = vmatmul.bf16.gmra.mxu0 %v2786
    %v3745 = vpop.f32.mrf.mxu0
    %v3746 = vadd.f32 %v2193, %v3745
    %v3747 = vpop.f32.mrf.mxu0
    %v3748 = vadd.f32 %v2198, %v3747
    %3749 = vmatmul.bf16.gmra.mxu0 %v2790
    %v3750 = vpop.f32.mrf.mxu0
    %v3751 = vadd.f32 %v2203, %v3750
    %v3752 = vpop.f32.mrf.mxu0
    %v3753 = vadd.f32 %v2208, %v3752
    %3754 = vmatmul.bf16.gmra.mxu0 %v2794
    %v3755 = vpop.f32.mrf.mxu0
    %v3756 = vadd.f32 %v2213, %v3755
    %v3757 = vpop.f32.mrf.mxu0
    %v3758 = vadd.f32 %v2218, %v3757
    %3759 = vmatmul.bf16.gmra.mxu0 %v2798
    %v3760 = vpop.f32.mrf.mxu0
    %v3761 = vadd.f32 %v2223, %v3760
    %v3762 = vpop.f32.mrf.mxu0
    %v3763 = vadd.f32 %v2228, %v3762
    %3764 = vmatmul.bf16.gmra.mxu0 %v2802
    %v3765 = vpop.f32.mrf.mxu0
    %v3766 = vadd.f32 %v2233, %v3765
    %v3767 = vpop.f32.mrf.mxu0
    %v3768 = vadd.f32 %v2238, %v3767
    %3769 = vmatmul.bf16.gmra.mxu0 %v2806
    %v3770 = vpop.f32.mrf.mxu0
    %v3771 = vadd.f32 %v2243, %v3770
    %v3772 = vpop.f32.mrf.mxu0
    %v3773 = vadd.f32 %v2248, %v3772
    %3774 = vmatmul.bf16.gmra.mxu0 %v2810
    %v3775 = vpop.f32.mrf.mxu0
    %v3776 = vadd.f32 %v2253, %v3775
    %v3777 = vpop.f32.mrf.mxu0
    %v3778 = vadd.f32 %v2258, %v3777
    %3779 = vmatmul.bf16.gmra.mxu0 %v2814
    %v3780 = vpop.f32.mrf.mxu0
    %v3781 = vadd.f32 %v2263, %v3780
    %v3782 = vpop.f32.mrf.mxu0
    %v3783 = vadd.f32 %v2268, %v3782
    %3784 = vmatmul.bf16.gmra.mxu0 %v2818
    %v3785 = vpop.f32.mrf.mxu0
    %v3786 = vadd.f32 %v2273, %v3785
    %v3787 = vpop.f32.mrf.mxu0
    %v3788 = vadd.f32 %v2278, %v3787
    %3789 = vmatmul.bf16.gmra.mxu0 %v2822
    %v3790 = vpop.f32.mrf.mxu0
    %v3791 = vadd.f32 %v2283, %v3790
    %v3792 = vpop.f32.mrf.mxu0
    %v3793 = vadd.f32 %v2288, %v3792
    %3794 = vmatmul.bf16.gmra.mxu0 %v2826
    %v3795 = vpop.f32.mrf.mxu0
    %v3796 = vadd.f32 %v2293, %v3795
    %v3797 = vpop.f32.mrf.mxu0
    %v3798 = vadd.f32 %v2298, %v3797
    %3799 = vmatmul.bf16.gmra.mxu0 %v2830
    %v3800 = vpop.f32.mrf.mxu0
    %v3801 = vadd.f32 %v2303, %v3800
    %v3802 = vpop.f32.mrf.mxu0
    %v3803 = vadd.f32 %v2308, %v3802
    %3804 = vmatmul.bf16.gmra.mxu0 %v2834
    %v3805 = vpop.f32.mrf.mxu0
    %v3806 = vadd.f32 %v2313, %v3805
    %v3807 = vpop.f32.mrf.mxu0
    %v3808 = vadd.f32 %v2318, %v3807
    %3809 = vmatmul.bf16.gmra.mxu0 %v2838
    %v3810 = vpop.f32.mrf.mxu0
    %v3811 = vadd.f32 %v2323, %v3810
    %v3812 = vpop.f32.mrf.mxu0
    %v3813 = vadd.f32 %v2328, %v3812
    %3814 = vdwg.mxu0
    %3815 = vmatpush.bf16.msra.mxu0 %v1879
    %3816 = vmatpush.bf16.msra.mxu0 %v1875
    %3817 = vmatpush.bf16.msra.mxu0 %v1871
    %3818 = vmatpush.bf16.msra.mxu0 %v1867
    %3819 = vmatpush.bf16.msra.mxu0 %v1863
    %3820 = vmatpush.bf16.msra.mxu0 %v1859
    %3821 = vmatpush.bf16.msra.mxu0 %v1855
    %3822 = vmatpush.bf16.msra.mxu0 %v1851
    %3823 = vmatmul.bf16.gmra.mxu0 %v2715
    %v3824 = vpop.f32.mrf.mxu0
    %v3825 = vadd.f32 %v3656, %v3824
    %v3826 = vpop.f32.mrf.mxu0
    %v3827 = vadd.f32 %v3658, %v3826
    %3828 = vmatmul.bf16.gmra.mxu0 %v2719
    %v3829 = vpop.f32.mrf.mxu0
    %v3830 = vadd.f32 %v3661, %v3829
    %v3831 = vpop.f32.mrf.mxu0
    %v3832 = vadd.f32 %v3663, %v3831
    %3833 = vmatmul.bf16.gmra.mxu0 %v2723
    %v3834 = vpop.f32.mrf.mxu0
    %v3835 = vadd.f32 %v3666, %v3834
    %v3836 = vpop.f32.mrf.mxu0
    %v3837 = vadd.f32 %v3668, %v3836
    %3838 = vmatmul.bf16.gmra.mxu0 %v2727
    %v3839 = vpop.f32.mrf.mxu0
    %v3840 = vadd.f32 %v3671, %v3839
    %v3841 = vpop.f32.mrf.mxu0
    %v3842 = vadd.f32 %v3673, %v3841
    %3843 = vmatmul.bf16.gmra.mxu0 %v2731
    %v3844 = vpop.f32.mrf.mxu0
    %v3845 = vadd.f32 %v3676, %v3844
    %v3846 = vpop.f32.mrf.mxu0
    %v3847 = vadd.f32 %v3678, %v3846
    %3848 = vmatmul.bf16.gmra.mxu0 %v2735
    %v3849 = vpop.f32.mrf.mxu0
    %v3850 = vadd.f32 %v3681, %v3849
    %v3851 = vpop.f32.mrf.mxu0
    %v3852 = vadd.f32 %v3683, %v3851
    %3853 = vmatmul.bf16.gmra.mxu0 %v2739
    %v3854 = vpop.f32.mrf.mxu0
    %v3855 = vadd.f32 %v3686, %v3854
    %v3856 = vpop.f32.mrf.mxu0
    %v3857 = vadd.f32 %v3688, %v3856
    %3858 = vmatmul.bf16.gmra.mxu0 %v2743
    %v3859 = vpop.f32.mrf.mxu0
    %v3860 = vadd.f32 %v3691, %v3859
    %v3861 = vpop.f32.mrf.mxu0
    %v3862 = vadd.f32 %v3693, %v3861
    %3863 = vmatmul.bf16.gmra.mxu0 %v2747
    %v3864 = vpop.f32.mrf.mxu0
    %v3865 = vadd.f32 %v3696, %v3864
    %v3866 = vpop.f32.mrf.mxu0
    %v3867 = vadd.f32 %v3698, %v3866
    %3868 = vmatmul.bf16.gmra.mxu0 %v2751
    %v3869 = vpop.f32.mrf.mxu0
    %v3870 = vadd.f32 %v3701, %v3869
    %v3871 = vpop.f32.mrf.mxu0
    %v3872 = vadd.f32 %v3703, %v3871
    %3873 = vmatmul.bf16.gmra.mxu0 %v2755
    %v3874 = vpop.f32.mrf.mxu0
    %v3875 = vadd.f32 %v3706, %v3874
    %v3876 = vpop.f32.mrf.mxu0
    %v3877 = vadd.f32 %v3708, %v3876
    %3878 = vmatmul.bf16.gmra.mxu0 %v2759
    %v3879 = vpop.f32.mrf.mxu0
    %v3880 = vadd.f32 %v3711, %v3879
    %v3881 = vpop.f32.mrf.mxu0
    %v3882 = vadd.f32 %v3713, %v3881
    %3883 = vmatmul.bf16.gmra.mxu0 %v2763
    %v3884 = vpop.f32.mrf.mxu0
    %v3885 = vadd.f32 %v3716, %v3884
    %v3886 = vpop.f32.mrf.mxu0
    %v3887 = vadd.f32 %v3718, %v3886
    %3888 = vmatmul.bf16.gmra.mxu0 %v2767
    %v3889 = vpop.f32.mrf.mxu0
    %v3890 = vadd.f32 %v3721, %v3889
    %v3891 = vpop.f32.mrf.mxu0
    %v3892 = vadd.f32 %v3723, %v3891
    %3893 = vmatmul.bf16.gmra.mxu0 %v2771
    %v3894 = vpop.f32.mrf.mxu0
    %v3895 = vadd.f32 %v3726, %v3894
    %v3896 = vpop.f32.mrf.mxu0
    %v3897 = vadd.f32 %v3728, %v3896
    %3898 = vmatmul.bf16.gmra.mxu0 %v2775
    %v3899 = vpop.f32.mrf.mxu0
    %v3900 = vadd.f32 %v3731, %v3899
    %v3901 = vpop.f32.mrf.mxu0
    %v3902 = vadd.f32 %v3733, %v3901
    %3903 = vmatmul.bf16.gmra.mxu0 %v2779
    %v3904 = vpop.f32.mrf.mxu0
    %v3905 = vadd.f32 %v3736, %v3904
    %v3906 = vpop.f32.mrf.mxu0
    %v3907 = vadd.f32 %v3738, %v3906
    %3908 = vmatmul.bf16.gmra.mxu0 %v2783
    %v3909 = vpop.f32.mrf.mxu0
    %v3910 = vadd.f32 %v3741, %v3909
    %v3911 = vpop.f32.mrf.mxu0
    %v3912 = vadd.f32 %v3743, %v3911
    %3913 = vmatmul.bf16.gmra.mxu0 %v2787
    %v3914 = vpop.f32.mrf.mxu0
    %v3915 = vadd.f32 %v3746, %v3914
    %v3916 = vpop.f32.mrf.mxu0
    %v3917 = vadd.f32 %v3748, %v3916
    %3918 = vmatmul.bf16.gmra.mxu0 %v2791
    %v3919 = vpop.f32.mrf.mxu0
    %v3920 = vadd.f32 %v3751, %v3919
    %v3921 = vpop.f32.mrf.mxu0
    %v3922 = vadd.f32 %v3753, %v3921
    %3923 = vmatmul.bf16.gmra.mxu0 %v2795
    %v3924 = vpop.f32.mrf.mxu0
    %v3925 = vadd.f32 %v3756, %v3924
    %v3926 = vpop.f32.mrf.mxu0
    %v3927 = vadd.f32 %v3758, %v3926
    %3928 = vmatmul.bf16.gmra.mxu0 %v2799
    %v3929 = vpop.f32.mrf.mxu0
    %v3930 = vadd.f32 %v3761, %v3929
    %v3931 = vpop.f32.mrf.mxu0
    %v3932 = vadd.f32 %v3763, %v3931
    %3933 = vmatmul.bf16.gmra.mxu0 %v2803
    %v3934 = vpop.f32.mrf.mxu0
    %v3935 = vadd.f32 %v3766, %v3934
    %v3936 = vpop.f32.mrf.mxu0
    %v3937 = vadd.f32 %v3768, %v3936
    %3938 = vmatmul.bf16.gmra.mxu0 %v2807
    %v3939 = vpop.f32.mrf.mxu0
    %v3940 = vadd.f32 %v3771, %v3939
    %v3941 = vpop.f32.mrf.mxu0
    %v3942 = vadd.f32 %v3773, %v3941
    %3943 = vmatmul.bf16.gmra.mxu0 %v2811
    %v3944 = vpop.f32.mrf.mxu0
    %v3945 = vadd.f32 %v3776, %v3944
    %v3946 = vpop.f32.mrf.mxu0
    %v3947 = vadd.f32 %v3778, %v3946
    %3948 = vmatmul.bf16.gmra.mxu0 %v2815
    %v3949 = vpop.f32.mrf.mxu0
    %v3950 = vadd.f32 %v3781, %v3949
    %v3951 = vpop.f32.mrf.mxu0
    %v3952 = vadd.f32 %v3783, %v3951
    %3953 = vmatmul.bf16.gmra.mxu0 %v2819
    %v3954 = vpop.f32.mrf.mxu0
    %v3955 = vadd.f32 %v3786, %v3954
    %v3956 = vpop.f32.mrf.mxu0
    %v3957 = vadd.f32 %v3788, %v3956
    %3958 = vmatmul.bf16.gmra.mxu0 %v2823
    %v3959 = vpop.f32.mrf.mxu0
    %v3960 = vadd.f32 %v3791, %v3959
    %v3961 = vpop.f32.mrf.mxu0
    %v3962 = vadd.f32 %v3793, %v3961
    %3963 = vmatmul.bf16.gmra.mxu0 %v2827
    %v3964 = vpop.f32.mrf.mxu0
    %v3965 = vadd.f32 %v3796, %v3964
    %v3966 = vpop.f32.mrf.mxu0
    %v3967 = vadd.f32 %v3798, %v3966
    %3968 = vmatmul.bf16.gmra.mxu0 %v2831
    %v3969 = vpop.f32.mrf.mxu0
    %v3970 = vadd.f32 %v3801, %v3969
    %v3971 = vpop.f32.mrf.mxu0
    %v3972 = vadd.f32 %v3803, %v3971
    %3973 = vmatmul.bf16.gmra.mxu0 %v2835
    %v3974 = vpop.f32.mrf.mxu0
    %v3975 = vadd.f32 %v3806, %v3974
    %v3976 = vpop.f32.mrf.mxu0
    %v3977 = vadd.f32 %v3808, %v3976
    %3978 = vmatmul.bf16.gmra.mxu0 %v2839
    %v3979 = vpop.f32.mrf.mxu0
    %v3980 = vadd.f32 %v3811, %v3979
    %v3981 = vpop.f32.mrf.mxu0
    %v3982 = vadd.f32 %v3813, %v3981
    %3983 = vdwg.mxu0
    %3984 = vmatpush.bf16.msra.mxu0 %v1911
    %3985 = vmatpush.bf16.msra.mxu0 %v1907
    %3986 = vmatpush.bf16.msra.mxu0 %v1903
    %3987 = vmatpush.bf16.msra.mxu0 %v1899
    %3988 = vmatpush.bf16.msra.mxu0 %v1895
    %3989 = vmatpush.bf16.msra.mxu0 %v1891
    %3990 = vmatpush.bf16.msra.mxu0 %v1887
    %3991 = vmatpush.bf16.msra.mxu0 %v1883
    %3992 = vmatmul.bf16.gmra.mxu0 %v2716
    %v3993 = vpop.f32.mrf.mxu0
    %v3994 = vadd.f32 %v3825, %v3993
    %v3995 = vpop.f32.mrf.mxu0
    %v3996 = vadd.f32 %v3827, %v3995
    %3997 = vmatmul.bf16.gmra.mxu0 %v2720
    %v3998 = vpop.f32.mrf.mxu0
    %v3999 = vadd.f32 %v3830, %v3998
    %v4000 = vpop.f32.mrf.mxu0
    %v4001 = vadd.f32 %v3832, %v4000
    %4002 = vmatmul.bf16.gmra.mxu0 %v2724
    %v4003 = vpop.f32.mrf.mxu0
    %v4004 = vadd.f32 %v3835, %v4003
    %v4005 = vpop.f32.mrf.mxu0
    %v4006 = vadd.f32 %v3837, %v4005
    %4007 = vmatmul.bf16.gmra.mxu0 %v2728
    %v4008 = vpop.f32.mrf.mxu0
    %v4009 = vadd.f32 %v3840, %v4008
    %v4010 = vpop.f32.mrf.mxu0
    %v4011 = vadd.f32 %v3842, %v4010
    %4012 = vmatmul.bf16.gmra.mxu0 %v2732
    %v4013 = vpop.f32.mrf.mxu0
    %v4014 = vadd.f32 %v3845, %v4013
    %v4015 = vpop.f32.mrf.mxu0
    %v4016 = vadd.f32 %v3847, %v4015
    %4017 = vmatmul.bf16.gmra.mxu0 %v2736
    %v4018 = vpop.f32.mrf.mxu0
    %v4019 = vadd.f32 %v3850, %v4018
    %v4020 = vpop.f32.mrf.mxu0
    %v4021 = vadd.f32 %v3852, %v4020
    %4022 = vmatmul.bf16.gmra.mxu0 %v2740
    %v4023 = vpop.f32.mrf.mxu0
    %v4024 = vadd.f32 %v3855, %v4023
    %v4025 = vpop.f32.mrf.mxu0
    %v4026 = vadd.f32 %v3857, %v4025
    %4027 = vmatmul.bf16.gmra.mxu0 %v2744
    %v4028 = vpop.f32.mrf.mxu0
    %v4029 = vadd.f32 %v3860, %v4028
    %v4030 = vpop.f32.mrf.mxu0
    %v4031 = vadd.f32 %v3862, %v4030
    %4032 = vmatmul.bf16.gmra.mxu0 %v2748
    %v4033 = vpop.f32.mrf.mxu0
    %v4034 = vadd.f32 %v3865, %v4033
    %v4035 = vpop.f32.mrf.mxu0
    %v4036 = vadd.f32 %v3867, %v4035
    %4037 = vmatmul.bf16.gmra.mxu0 %v2752
    %v4038 = vpop.f32.mrf.mxu0
    %v4039 = vadd.f32 %v3870, %v4038
    %v4040 = vpop.f32.mrf.mxu0
    %v4041 = vadd.f32 %v3872, %v4040
    %4042 = vmatmul.bf16.gmra.mxu0 %v2756
    %v4043 = vpop.f32.mrf.mxu0
    %v4044 = vadd.f32 %v3875, %v4043
    %v4045 = vpop.f32.mrf.mxu0
    %v4046 = vadd.f32 %v3877, %v4045
    %4047 = vmatmul.bf16.gmra.mxu0 %v2760
    %v4048 = vpop.f32.mrf.mxu0
    %v4049 = vadd.f32 %v3880, %v4048
    %v4050 = vpop.f32.mrf.mxu0
    %v4051 = vadd.f32 %v3882, %v4050
    %4052 = vmatmul.bf16.gmra.mxu0 %v2764
    %v4053 = vpop.f32.mrf.mxu0
    %v4054 = vadd.f32 %v3885, %v4053
    %v4055 = vpop.f32.mrf.mxu0
    %v4056 = vadd.f32 %v3887, %v4055
    %4057 = vmatmul.bf16.gmra.mxu0 %v2768
    %v4058 = vpop.f32.mrf.mxu0
    %v4059 = vadd.f32 %v3890, %v4058
    %v4060 = vpop.f32.mrf.mxu0
    %v4061 = vadd.f32 %v3892, %v4060
    %4062 = vmatmul.bf16.gmra.mxu0 %v2772
    %v4063 = vpop.f32.mrf.mxu0
    %v4064 = vadd.f32 %v3895, %v4063
    %v4065 = vpop.f32.mrf.mxu0
    %v4066 = vadd.f32 %v3897, %v4065
    %4067 = vmatmul.bf16.gmra.mxu0 %v2776
    %v4068 = vpop.f32.mrf.mxu0
    %v4069 = vadd.f32 %v3900, %v4068
    %v4070 = vpop.f32.mrf.mxu0
    %v4071 = vadd.f32 %v3902, %v4070
    %4072 = vmatmul.bf16.gmra.mxu0 %v2780
    %v4073 = vpop.f32.mrf.mxu0
    %v4074 = vadd.f32 %v3905, %v4073
    %v4075 = vpop.f32.mrf.mxu0
    %v4076 = vadd.f32 %v3907, %v4075
    %4077 = vmatmul.bf16.gmra.mxu0 %v2784
    %v4078 = vpop.f32.mrf.mxu0
    %v4079 = vadd.f32 %v3910, %v4078
    %v4080 = vpop.f32.mrf.mxu0
    %v4081 = vadd.f32 %v3912, %v4080
    %4082 = vmatmul.bf16.gmra.mxu0 %v2788
    %v4083 = vpop.f32.mrf.mxu0
    %v4084 = vadd.f32 %v3915, %v4083
    %v4085 = vpop.f32.mrf.mxu0
    %v4086 = vadd.f32 %v3917, %v4085
    %4087 = vmatmul.bf16.gmra.mxu0 %v2792
    %v4088 = vpop.f32.mrf.mxu0
    %v4089 = vadd.f32 %v3920, %v4088
    %v4090 = vpop.f32.mrf.mxu0
    %v4091 = vadd.f32 %v3922, %v4090
    %4092 = vmatmul.bf16.gmra.mxu0 %v2796
    %v4093 = vpop.f32.mrf.mxu0
    %v4094 = vadd.f32 %v3925, %v4093
    %v4095 = vpop.f32.mrf.mxu0
    %v4096 = vadd.f32 %v3927, %v4095
    %4097 = vmatmul.bf16.gmra.mxu0 %v2800
    %v4098 = vpop.f32.mrf.mxu0
    %v4099 = vadd.f32 %v3930, %v4098
    %v4100 = vpop.f32.mrf.mxu0
    %v4101 = vadd.f32 %v3932, %v4100
    %4102 = vmatmul.bf16.gmra.mxu0 %v2804
    %v4103 = vpop.f32.mrf.mxu0
    %v4104 = vadd.f32 %v3935, %v4103
    %v4105 = vpop.f32.mrf.mxu0
    %v4106 = vadd.f32 %v3937, %v4105
    %4107 = vmatmul.bf16.gmra.mxu0 %v2808
    %v4108 = vpop.f32.mrf.mxu0
    %v4109 = vadd.f32 %v3940, %v4108
    %v4110 = vpop.f32.mrf.mxu0
    %v4111 = vadd.f32 %v3942, %v4110
    %4112 = vmatmul.bf16.gmra.mxu0 %v2812
    %v4113 = vpop.f32.mrf.mxu0
    %v4114 = vadd.f32 %v3945, %v4113
    %v4115 = vpop.f32.mrf.mxu0
    %v4116 = vadd.f32 %v3947, %v4115
    %4117 = vmatmul.bf16.gmra.mxu0 %v2816
    %v4118 = vpop.f32.mrf.mxu0
    %v4119 = vadd.f32 %v3950, %v4118
    %v4120 = vpop.f32.mrf.mxu0
    %v4121 = vadd.f32 %v3952, %v4120
    %4122 = vmatmul.bf16.gmra.mxu0 %v2820
    %v4123 = vpop.f32.mrf.mxu0
    %v4124 = vadd.f32 %v3955, %v4123
    %v4125 = vpop.f32.mrf.mxu0
    %v4126 = vadd.f32 %v3957, %v4125
    %4127 = vmatmul.bf16.gmra.mxu0 %v2824
    %v4128 = vpop.f32.mrf.mxu0
    %v4129 = vadd.f32 %v3960, %v4128
    %v4130 = vpop.f32.mrf.mxu0
    %v4131 = vadd.f32 %v3962, %v4130
    %4132 = vmatmul.bf16.gmra.mxu0 %v2828
    %v4133 = vpop.f32.mrf.mxu0
    %v4134 = vadd.f32 %v3965, %v4133
    %v4135 = vpop.f32.mrf.mxu0
    %v4136 = vadd.f32 %v3967, %v4135
    %4137 = vmatmul.bf16.gmra.mxu0 %v2832
    %v4138 = vpop.f32.mrf.mxu0
    %v4139 = vadd.f32 %v3970, %v4138
    %v4140 = vpop.f32.mrf.mxu0
    %v4141 = vadd.f32 %v3972, %v4140
    %4142 = vmatmul.bf16.gmra.mxu0 %v2836
    %v4143 = vpop.f32.mrf.mxu0
    %v4144 = vadd.f32 %v3975, %v4143
    %v4145 = vpop.f32.mrf.mxu0
    %v4146 = vadd.f32 %v3977, %v4145
    %4147 = vmatmul.bf16.gmra.mxu0 %v2840
    %v4148 = vpop.f32.mrf.mxu0
    %v4149 = vadd.f32 %v3980, %v4148
    %v4150 = vpop.f32.mrf.mxu0
    %v4151 = vadd.f32 %v3982, %v4150
    %4152 = vdwg.mxu0
    %4153 = vmatpush.bf16.msra.mxu0 %v1943
    %4154 = vmatpush.bf16.msra.mxu0 %v1939
    %4155 = vmatpush.bf16.msra.mxu0 %v1935
    %4156 = vmatpush.bf16.msra.mxu0 %v1931
    %4157 = vmatpush.bf16.msra.mxu0 %v1927
    %4158 = vmatpush.bf16.msra.mxu0 %v1923
    %4159 = vmatpush.bf16.msra.mxu0 %v1919
    %4160 = vmatpush.bf16.msra.mxu0 %v1915
    %4161 = vmatmul.bf16.gmra.mxu0 %v2717
    %v4162 = vpop.f32.mrf.mxu0
    %v4163 = vadd.f32 %v3994, %v4162
    %v4164 = vpop.f32.mrf.mxu0
    %v4165 = vadd.f32 %v3996, %v4164
    %4166 = vmatmul.bf16.gmra.mxu0 %v2721
    %v4167 = vpop.f32.mrf.mxu0
    %v4168 = vadd.f32 %v3999, %v4167
    %v4169 = vpop.f32.mrf.mxu0
    %v4170 = vadd.f32 %v4001, %v4169
    %4171 = vmatmul.bf16.gmra.mxu0 %v2725
    %v4172 = vpop.f32.mrf.mxu0
    %v4173 = vadd.f32 %v4004, %v4172
    %v4174 = vpop.f32.mrf.mxu0
    %v4175 = vadd.f32 %v4006, %v4174
    %4176 = vmatmul.bf16.gmra.mxu0 %v2729
    %v4177 = vpop.f32.mrf.mxu0
    %v4178 = vadd.f32 %v4009, %v4177
    %v4179 = vpop.f32.mrf.mxu0
    %v4180 = vadd.f32 %v4011, %v4179
    %4181 = vmatmul.bf16.gmra.mxu0 %v2733
    %v4182 = vpop.f32.mrf.mxu0
    %v4183 = vadd.f32 %v4014, %v4182
    %v4184 = vpop.f32.mrf.mxu0
    %v4185 = vadd.f32 %v4016, %v4184
    %4186 = vmatmul.bf16.gmra.mxu0 %v2737
    %v4187 = vpop.f32.mrf.mxu0
    %v4188 = vadd.f32 %v4019, %v4187
    %v4189 = vpop.f32.mrf.mxu0
    %v4190 = vadd.f32 %v4021, %v4189
    %4191 = vmatmul.bf16.gmra.mxu0 %v2741
    %v4192 = vpop.f32.mrf.mxu0
    %v4193 = vadd.f32 %v4024, %v4192
    %v4194 = vpop.f32.mrf.mxu0
    %v4195 = vadd.f32 %v4026, %v4194
    %4196 = vmatmul.bf16.gmra.mxu0 %v2745
    %v4197 = vpop.f32.mrf.mxu0
    %v4198 = vadd.f32 %v4029, %v4197
    %v4199 = vpop.f32.mrf.mxu0
    %v4200 = vadd.f32 %v4031, %v4199
    %4201 = vmatmul.bf16.gmra.mxu0 %v2749
    %v4202 = vpop.f32.mrf.mxu0
    %v4203 = vadd.f32 %v4034, %v4202
    %v4204 = vpop.f32.mrf.mxu0
    %v4205 = vadd.f32 %v4036, %v4204
    %4206 = vmatmul.bf16.gmra.mxu0 %v2753
    %v4207 = vpop.f32.mrf.mxu0
    %v4208 = vadd.f32 %v4039, %v4207
    %v4209 = vpop.f32.mrf.mxu0
    %v4210 = vadd.f32 %v4041, %v4209
    %4211 = vmatmul.bf16.gmra.mxu0 %v2757
    %v4212 = vpop.f32.mrf.mxu0
    %v4213 = vadd.f32 %v4044, %v4212
    %v4214 = vpop.f32.mrf.mxu0
    %v4215 = vadd.f32 %v4046, %v4214
    %4216 = vmatmul.bf16.gmra.mxu0 %v2761
    %v4217 = vpop.f32.mrf.mxu0
    %v4218 = vadd.f32 %v4049, %v4217
    %v4219 = vpop.f32.mrf.mxu0
    %v4220 = vadd.f32 %v4051, %v4219
    %4221 = vmatmul.bf16.gmra.mxu0 %v2765
    %v4222 = vpop.f32.mrf.mxu0
    %v4223 = vadd.f32 %v4054, %v4222
    %v4224 = vpop.f32.mrf.mxu0
    %v4225 = vadd.f32 %v4056, %v4224
    %4226 = vmatmul.bf16.gmra.mxu0 %v2769
    %v4227 = vpop.f32.mrf.mxu0
    %v4228 = vadd.f32 %v4059, %v4227
    %v4229 = vpop.f32.mrf.mxu0
    %v4230 = vadd.f32 %v4061, %v4229
    %4231 = vmatmul.bf16.gmra.mxu0 %v2773
    %v4232 = vpop.f32.mrf.mxu0
    %v4233 = vadd.f32 %v4064, %v4232
    %v4234 = vpop.f32.mrf.mxu0
    %v4235 = vadd.f32 %v4066, %v4234
    %4236 = vmatmul.bf16.gmra.mxu0 %v2777
    %v4237 = vpop.f32.mrf.mxu0
    %v4238 = vadd.f32 %v4069, %v4237
    %v4239 = vpop.f32.mrf.mxu0
    %v4240 = vadd.f32 %v4071, %v4239
    %4241 = vmatmul.bf16.gmra.mxu0 %v2781
    %v4242 = vpop.f32.mrf.mxu0
    %v4243 = vadd.f32 %v4074, %v4242
    %v4244 = vpop.f32.mrf.mxu0
    %v4245 = vadd.f32 %v4076, %v4244
    %4246 = vmatmul.bf16.gmra.mxu0 %v2785
    %v4247 = vpop.f32.mrf.mxu0
    %v4248 = vadd.f32 %v4079, %v4247
    %v4249 = vpop.f32.mrf.mxu0
    %v4250 = vadd.f32 %v4081, %v4249
    %4251 = vmatmul.bf16.gmra.mxu0 %v2789
    %v4252 = vpop.f32.mrf.mxu0
    %v4253 = vadd.f32 %v4084, %v4252
    %v4254 = vpop.f32.mrf.mxu0
    %v4255 = vadd.f32 %v4086, %v4254
    %4256 = vmatmul.bf16.gmra.mxu0 %v2793
    %v4257 = vpop.f32.mrf.mxu0
    %v4258 = vadd.f32 %v4089, %v4257
    %v4259 = vpop.f32.mrf.mxu0
    %v4260 = vadd.f32 %v4091, %v4259
    %4261 = vmatmul.bf16.gmra.mxu0 %v2797
    %v4262 = vpop.f32.mrf.mxu0
    %v4263 = vadd.f32 %v4094, %v4262
    %v4264 = vpop.f32.mrf.mxu0
    %v4265 = vadd.f32 %v4096, %v4264
    %4266 = vmatmul.bf16.gmra.mxu0 %v2801
    %v4267 = vpop.f32.mrf.mxu0
    %v4268 = vadd.f32 %v4099, %v4267
    %v4269 = vpop.f32.mrf.mxu0
    %v4270 = vadd.f32 %v4101, %v4269
    %4271 = vmatmul.bf16.gmra.mxu0 %v2805
    %v4272 = vpop.f32.mrf.mxu0
    %v4273 = vadd.f32 %v4104, %v4272
    %v4274 = vpop.f32.mrf.mxu0
    %v4275 = vadd.f32 %v4106, %v4274
    %4276 = vmatmul.bf16.gmra.mxu0 %v2809
    %v4277 = vpop.f32.mrf.mxu0
    %v4278 = vadd.f32 %v4109, %v4277
    %v4279 = vpop.f32.mrf.mxu0
    %v4280 = vadd.f32 %v4111, %v4279
    %4281 = vmatmul.bf16.gmra.mxu0 %v2813
    %v4282 = vpop.f32.mrf.mxu0
    %v4283 = vadd.f32 %v4114, %v4282
    %v4284 = vpop.f32.mrf.mxu0
    %v4285 = vadd.f32 %v4116, %v4284
    %4286 = vmatmul.bf16.gmra.mxu0 %v2817
    %v4287 = vpop.f32.mrf.mxu0
    %v4288 = vadd.f32 %v4119, %v4287
    %v4289 = vpop.f32.mrf.mxu0
    %v4290 = vadd.f32 %v4121, %v4289
    %4291 = vmatmul.bf16.gmra.mxu0 %v2821
    %v4292 = vpop.f32.mrf.mxu0
    %v4293 = vadd.f32 %v4124, %v4292
    %v4294 = vpop.f32.mrf.mxu0
    %v4295 = vadd.f32 %v4126, %v4294
    %4296 = vmatmul.bf16.gmra.mxu0 %v2825
    %v4297 = vpop.f32.mrf.mxu0
    %v4298 = vadd.f32 %v4129, %v4297
    %v4299 = vpop.f32.mrf.mxu0
    %v4300 = vadd.f32 %v4131, %v4299
    %4301 = vmatmul.bf16.gmra.mxu0 %v2829
    %v4302 = vpop.f32.mrf.mxu0
    %v4303 = vadd.f32 %v4134, %v4302
    %v4304 = vpop.f32.mrf.mxu0
    %v4305 = vadd.f32 %v4136, %v4304
    %4306 = vmatmul.bf16.gmra.mxu0 %v2833
    %v4307 = vpop.f32.mrf.mxu0
    %v4308 = vadd.f32 %v4139, %v4307
    %v4309 = vpop.f32.mrf.mxu0
    %v4310 = vadd.f32 %v4141, %v4309
    %4311 = vmatmul.bf16.gmra.mxu0 %v2837
    %v4312 = vpop.f32.mrf.mxu0
    %v4313 = vadd.f32 %v4144, %v4312
    %v4314 = vpop.f32.mrf.mxu0
    %v4315 = vadd.f32 %v4146, %v4314
    %4316 = vmatmul.bf16.gmra.mxu0 %v2841
    %v4317 = vpop.f32.mrf.mxu0
    %v4318 = vadd.f32 %v4149, %v4317
    %v4319 = vpop.f32.mrf.mxu0
    %v4320 = vadd.f32 %v4151, %v4319
    %4321 = vdwg.mxu0
    %4322 = vmatpush.bf16.msra.mxu0 %v1848
    %4323 = vmatpush.bf16.msra.mxu0 %v1844
    %4324 = vmatpush.bf16.msra.mxu0 %v1840
    %4325 = vmatpush.bf16.msra.mxu0 %v1836
    %4326 = vmatpush.bf16.msra.mxu0 %v1832
    %4327 = vmatpush.bf16.msra.mxu0 %v1828
    %4328 = vmatpush.bf16.msra.mxu0 %v1824
    %4329 = vmatpush.bf16.msra.mxu0 %v1820
    %4330 = vmatmul.bf16.gmra.mxu0 %v2714
    %v4331 = vpop.f32.mrf.mxu0
    %v4332 = vadd.f32 %v2013, %v4331
    %v4333 = vpop.f32.mrf.mxu0
    %v4334 = vadd.f32 %v2018, %v4333
    %4335 = vmatmul.bf16.gmra.mxu0 %v2718
    %v4336 = vpop.f32.mrf.mxu0
    %v4337 = vadd.f32 %v2023, %v4336
    %v4338 = vpop.f32.mrf.mxu0
    %v4339 = vadd.f32 %v2028, %v4338
    %4340 = vmatmul.bf16.gmra.mxu0 %v2722
    %v4341 = vpop.f32.mrf.mxu0
    %v4342 = vadd.f32 %v2033, %v4341
    %v4343 = vpop.f32.mrf.mxu0
    %v4344 = vadd.f32 %v2038, %v4343
    %4345 = vmatmul.bf16.gmra.mxu0 %v2726
    %v4346 = vpop.f32.mrf.mxu0
    %v4347 = vadd.f32 %v2043, %v4346
    %v4348 = vpop.f32.mrf.mxu0
    %v4349 = vadd.f32 %v2048, %v4348
    %4350 = vmatmul.bf16.gmra.mxu0 %v2730
    %v4351 = vpop.f32.mrf.mxu0
    %v4352 = vadd.f32 %v2053, %v4351
    %v4353 = vpop.f32.mrf.mxu0
    %v4354 = vadd.f32 %v2058, %v4353
    %4355 = vmatmul.bf16.gmra.mxu0 %v2734
    %v4356 = vpop.f32.mrf.mxu0
    %v4357 = vadd.f32 %v2063, %v4356
    %v4358 = vpop.f32.mrf.mxu0
    %v4359 = vadd.f32 %v2068, %v4358
    %4360 = vmatmul.bf16.gmra.mxu0 %v2738
    %v4361 = vpop.f32.mrf.mxu0
    %v4362 = vadd.f32 %v2073, %v4361
    %v4363 = vpop.f32.mrf.mxu0
    %v4364 = vadd.f32 %v2078, %v4363
    %4365 = vmatmul.bf16.gmra.mxu0 %v2742
    %v4366 = vpop.f32.mrf.mxu0
    %v4367 = vadd.f32 %v2083, %v4366
    %v4368 = vpop.f32.mrf.mxu0
    %v4369 = vadd.f32 %v2088, %v4368
    %4370 = vmatmul.bf16.gmra.mxu0 %v2746
    %v4371 = vpop.f32.mrf.mxu0
    %v4372 = vadd.f32 %v2093, %v4371
    %v4373 = vpop.f32.mrf.mxu0
    %v4374 = vadd.f32 %v2098, %v4373
    %4375 = vmatmul.bf16.gmra.mxu0 %v2750
    %v4376 = vpop.f32.mrf.mxu0
    %v4377 = vadd.f32 %v2103, %v4376
    %v4378 = vpop.f32.mrf.mxu0
    %v4379 = vadd.f32 %v2108, %v4378
    %4380 = vmatmul.bf16.gmra.mxu0 %v2754
    %v4381 = vpop.f32.mrf.mxu0
    %v4382 = vadd.f32 %v2113, %v4381
    %v4383 = vpop.f32.mrf.mxu0
    %v4384 = vadd.f32 %v2118, %v4383
    %4385 = vmatmul.bf16.gmra.mxu0 %v2758
    %v4386 = vpop.f32.mrf.mxu0
    %v4387 = vadd.f32 %v2123, %v4386
    %v4388 = vpop.f32.mrf.mxu0
    %v4389 = vadd.f32 %v2128, %v4388
    %4390 = vmatmul.bf16.gmra.mxu0 %v2762
    %v4391 = vpop.f32.mrf.mxu0
    %v4392 = vadd.f32 %v2133, %v4391
    %v4393 = vpop.f32.mrf.mxu0
    %v4394 = vadd.f32 %v2138, %v4393
    %4395 = vmatmul.bf16.gmra.mxu0 %v2766
    %v4396 = vpop.f32.mrf.mxu0
    %v4397 = vadd.f32 %v2143, %v4396
    %v4398 = vpop.f32.mrf.mxu0
    %v4399 = vadd.f32 %v2148, %v4398
    %4400 = vmatmul.bf16.gmra.mxu0 %v2770
    %v4401 = vpop.f32.mrf.mxu0
    %v4402 = vadd.f32 %v2153, %v4401
    %v4403 = vpop.f32.mrf.mxu0
    %v4404 = vadd.f32 %v2158, %v4403
    %4405 = vmatmul.bf16.gmra.mxu0 %v2774
    %v4406 = vpop.f32.mrf.mxu0
    %v4407 = vadd.f32 %v2163, %v4406
    %v4408 = vpop.f32.mrf.mxu0
    %v4409 = vadd.f32 %v2168, %v4408
    %4410 = vmatmul.bf16.gmra.mxu0 %v2778
    %v4411 = vpop.f32.mrf.mxu0
    %v4412 = vadd.f32 %v2173, %v4411
    %v4413 = vpop.f32.mrf.mxu0
    %v4414 = vadd.f32 %v2178, %v4413
    %4415 = vmatmul.bf16.gmra.mxu0 %v2782
    %v4416 = vpop.f32.mrf.mxu0
    %v4417 = vadd.f32 %v2183, %v4416
    %v4418 = vpop.f32.mrf.mxu0
    %v4419 = vadd.f32 %v2188, %v4418
    %4420 = vmatmul.bf16.gmra.mxu0 %v2786
    %v4421 = vpop.f32.mrf.mxu0
    %v4422 = vadd.f32 %v2193, %v4421
    %v4423 = vpop.f32.mrf.mxu0
    %v4424 = vadd.f32 %v2198, %v4423
    %4425 = vmatmul.bf16.gmra.mxu0 %v2790
    %v4426 = vpop.f32.mrf.mxu0
    %v4427 = vadd.f32 %v2203, %v4426
    %v4428 = vpop.f32.mrf.mxu0
    %v4429 = vadd.f32 %v2208, %v4428
    %4430 = vmatmul.bf16.gmra.mxu0 %v2794
    %v4431 = vpop.f32.mrf.mxu0
    %v4432 = vadd.f32 %v2213, %v4431
    %v4433 = vpop.f32.mrf.mxu0
    %v4434 = vadd.f32 %v2218, %v4433
    %4435 = vmatmul.bf16.gmra.mxu0 %v2798
    %v4436 = vpop.f32.mrf.mxu0
    %v4437 = vadd.f32 %v2223, %v4436
    %v4438 = vpop.f32.mrf.mxu0
    %v4439 = vadd.f32 %v2228, %v4438
    %4440 = vmatmul.bf16.gmra.mxu0 %v2802
    %v4441 = vpop.f32.mrf.mxu0
    %v4442 = vadd.f32 %v2233, %v4441
    %v4443 = vpop.f32.mrf.mxu0
    %v4444 = vadd.f32 %v2238, %v4443
    %4445 = vmatmul.bf16.gmra.mxu0 %v2806
    %v4446 = vpop.f32.mrf.mxu0
    %v4447 = vadd.f32 %v2243, %v4446
    %v4448 = vpop.f32.mrf.mxu0
    %v4449 = vadd.f32 %v2248, %v4448
    %4450 = vmatmul.bf16.gmra.mxu0 %v2810
    %v4451 = vpop.f32.mrf.mxu0
    %v4452 = vadd.f32 %v2253, %v4451
    %v4453 = vpop.f32.mrf.mxu0
    %v4454 = vadd.f32 %v2258, %v4453
    %4455 = vmatmul.bf16.gmra.mxu0 %v2814
    %v4456 = vpop.f32.mrf.mxu0
    %v4457 = vadd.f32 %v2263, %v4456
    %v4458 = vpop.f32.mrf.mxu0
    %v4459 = vadd.f32 %v2268, %v4458
    %4460 = vmatmul.bf16.gmra.mxu0 %v2818
    %v4461 = vpop.f32.mrf.mxu0
    %v4462 = vadd.f32 %v2273, %v4461
    %v4463 = vpop.f32.mrf.mxu0
    %v4464 = vadd.f32 %v2278, %v4463
    %4465 = vmatmul.bf16.gmra.mxu0 %v2822
    %v4466 = vpop.f32.mrf.mxu0
    %v4467 = vadd.f32 %v2283, %v4466
    %v4468 = vpop.f32.mrf.mxu0
    %v4469 = vadd.f32 %v2288, %v4468
    %4470 = vmatmul.bf16.gmra.mxu0 %v2826
    %v4471 = vpop.f32.mrf.mxu0
    %v4472 = vadd.f32 %v2293, %v4471
    %v4473 = vpop.f32.mrf.mxu0
    %v4474 = vadd.f32 %v2298, %v4473
    %4475 = vmatmul.bf16.gmra.mxu0 %v2830
    %v4476 = vpop.f32.mrf.mxu0
    %v4477 = vadd.f32 %v2303, %v4476
    %v4478 = vpop.f32.mrf.mxu0
    %v4479 = vadd.f32 %v2308, %v4478
    %4480 = vmatmul.bf16.gmra.mxu0 %v2834
    %v4481 = vpop.f32.mrf.mxu0
    %v4482 = vadd.f32 %v2313, %v4481
    %v4483 = vpop.f32.mrf.mxu0
    %v4484 = vadd.f32 %v2318, %v4483
    %4485 = vmatmul.bf16.gmra.mxu0 %v2838
    %v4486 = vpop.f32.mrf.mxu0
    %v4487 = vadd.f32 %v2323, %v4486
    %v4488 = vpop.f32.mrf.mxu0
    %v4489 = vadd.f32 %v2328, %v4488
    %4490 = vdwg.mxu0
    %4491 = vmatpush.bf16.msra.mxu0 %v1880
    %4492 = vmatpush.bf16.msra.mxu0 %v1876
    %4493 = vmatpush.bf16.msra.mxu0 %v1872
    %4494 = vmatpush.bf16.msra.mxu0 %v1868
    %4495 = vmatpush.bf16.msra.mxu0 %v1864
    %4496 = vmatpush.bf16.msra.mxu0 %v1860
    %4497 = vmatpush.bf16.msra.mxu0 %v1856
    %4498 = vmatpush.bf16.msra.mxu0 %v1852
    %4499 = vmatmul.bf16.gmra.mxu0 %v2715
    %v4500 = vpop.f32.mrf.mxu0
    %v4501 = vadd.f32 %v4332, %v4500
    %v4502 = vpop.f32.mrf.mxu0
    %v4503 = vadd.f32 %v4334, %v4502
    %4504 = vmatmul.bf16.gmra.mxu0 %v2719
    %v4505 = vpop.f32.mrf.mxu0
    %v4506 = vadd.f32 %v4337, %v4505
    %v4507 = vpop.f32.mrf.mxu0
    %v4508 = vadd.f32 %v4339, %v4507
    %4509 = vmatmul.bf16.gmra.mxu0 %v2723
    %v4510 = vpop.f32.mrf.mxu0
    %v4511 = vadd.f32 %v4342, %v4510
    %v4512 = vpop.f32.mrf.mxu0
    %v4513 = vadd.f32 %v4344, %v4512
    %4514 = vmatmul.bf16.gmra.mxu0 %v2727
    %v4515 = vpop.f32.mrf.mxu0
    %v4516 = vadd.f32 %v4347, %v4515
    %v4517 = vpop.f32.mrf.mxu0
    %v4518 = vadd.f32 %v4349, %v4517
    %4519 = vmatmul.bf16.gmra.mxu0 %v2731
    %v4520 = vpop.f32.mrf.mxu0
    %v4521 = vadd.f32 %v4352, %v4520
    %v4522 = vpop.f32.mrf.mxu0
    %v4523 = vadd.f32 %v4354, %v4522
    %4524 = vmatmul.bf16.gmra.mxu0 %v2735
    %v4525 = vpop.f32.mrf.mxu0
    %v4526 = vadd.f32 %v4357, %v4525
    %v4527 = vpop.f32.mrf.mxu0
    %v4528 = vadd.f32 %v4359, %v4527
    %4529 = vmatmul.bf16.gmra.mxu0 %v2739
    %v4530 = vpop.f32.mrf.mxu0
    %v4531 = vadd.f32 %v4362, %v4530
    %v4532 = vpop.f32.mrf.mxu0
    %v4533 = vadd.f32 %v4364, %v4532
    %4534 = vmatmul.bf16.gmra.mxu0 %v2743
    %v4535 = vpop.f32.mrf.mxu0
    %v4536 = vadd.f32 %v4367, %v4535
    %v4537 = vpop.f32.mrf.mxu0
    %v4538 = vadd.f32 %v4369, %v4537
    %4539 = vmatmul.bf16.gmra.mxu0 %v2747
    %v4540 = vpop.f32.mrf.mxu0
    %v4541 = vadd.f32 %v4372, %v4540
    %v4542 = vpop.f32.mrf.mxu0
    %v4543 = vadd.f32 %v4374, %v4542
    %4544 = vmatmul.bf16.gmra.mxu0 %v2751
    %v4545 = vpop.f32.mrf.mxu0
    %v4546 = vadd.f32 %v4377, %v4545
    %v4547 = vpop.f32.mrf.mxu0
    %v4548 = vadd.f32 %v4379, %v4547
    %4549 = vmatmul.bf16.gmra.mxu0 %v2755
    %v4550 = vpop.f32.mrf.mxu0
    %v4551 = vadd.f32 %v4382, %v4550
    %v4552 = vpop.f32.mrf.mxu0
    %v4553 = vadd.f32 %v4384, %v4552
    %4554 = vmatmul.bf16.gmra.mxu0 %v2759
    %v4555 = vpop.f32.mrf.mxu0
    %v4556 = vadd.f32 %v4387, %v4555
    %v4557 = vpop.f32.mrf.mxu0
    %v4558 = vadd.f32 %v4389, %v4557
    %4559 = vmatmul.bf16.gmra.mxu0 %v2763
    %v4560 = vpop.f32.mrf.mxu0
    %v4561 = vadd.f32 %v4392, %v4560
    %v4562 = vpop.f32.mrf.mxu0
    %v4563 = vadd.f32 %v4394, %v4562
    %4564 = vmatmul.bf16.gmra.mxu0 %v2767
    %v4565 = vpop.f32.mrf.mxu0
    %v4566 = vadd.f32 %v4397, %v4565
    %v4567 = vpop.f32.mrf.mxu0
    %v4568 = vadd.f32 %v4399, %v4567
    %4569 = vmatmul.bf16.gmra.mxu0 %v2771
    %v4570 = vpop.f32.mrf.mxu0
    %v4571 = vadd.f32 %v4402, %v4570
    %v4572 = vpop.f32.mrf.mxu0
    %v4573 = vadd.f32 %v4404, %v4572
    %4574 = vmatmul.bf16.gmra.mxu0 %v2775
    %v4575 = vpop.f32.mrf.mxu0
    %v4576 = vadd.f32 %v4407, %v4575
    %v4577 = vpop.f32.mrf.mxu0
    %v4578 = vadd.f32 %v4409, %v4577
    %4579 = vmatmul.bf16.gmra.mxu0 %v2779
    %v4580 = vpop.f32.mrf.mxu0
    %v4581 = vadd.f32 %v4412, %v4580
    %v4582 = vpop.f32.mrf.mxu0
    %v4583 = vadd.f32 %v4414, %v4582
    %4584 = vmatmul.bf16.gmra.mxu0 %v2783
    %v4585 = vpop.f32.mrf.mxu0
    %v4586 = vadd.f32 %v4417, %v4585
    %v4587 = vpop.f32.mrf.mxu0
    %v4588 = vadd.f32 %v4419, %v4587
    %4589 = vmatmul.bf16.gmra.mxu0 %v2787
    %v4590 = vpop.f32.mrf.mxu0
    %v4591 = vadd.f32 %v4422, %v4590
    %v4592 = vpop.f32.mrf.mxu0
    %v4593 = vadd.f32 %v4424, %v4592
    %4594 = vmatmul.bf16.gmra.mxu0 %v2791
    %v4595 = vpop.f32.mrf.mxu0
    %v4596 = vadd.f32 %v4427, %v4595
    %v4597 = vpop.f32.mrf.mxu0
    %v4598 = vadd.f32 %v4429, %v4597
    %4599 = vmatmul.bf16.gmra.mxu0 %v2795
    %v4600 = vpop.f32.mrf.mxu0
    %v4601 = vadd.f32 %v4432, %v4600
    %v4602 = vpop.f32.mrf.mxu0
    %v4603 = vadd.f32 %v4434, %v4602
    %4604 = vmatmul.bf16.gmra.mxu0 %v2799
    %v4605 = vpop.f32.mrf.mxu0
    %v4606 = vadd.f32 %v4437, %v4605
    %v4607 = vpop.f32.mrf.mxu0
    %v4608 = vadd.f32 %v4439, %v4607
    %4609 = vmatmul.bf16.gmra.mxu0 %v2803
    %v4610 = vpop.f32.mrf.mxu0
    %v4611 = vadd.f32 %v4442, %v4610
    %v4612 = vpop.f32.mrf.mxu0
    %v4613 = vadd.f32 %v4444, %v4612
    %4614 = vmatmul.bf16.gmra.mxu0 %v2807
    %v4615 = vpop.f32.mrf.mxu0
    %v4616 = vadd.f32 %v4447, %v4615
    %v4617 = vpop.f32.mrf.mxu0
    %v4618 = vadd.f32 %v4449, %v4617
    %4619 = vmatmul.bf16.gmra.mxu0 %v2811
    %v4620 = vpop.f32.mrf.mxu0
    %v4621 = vadd.f32 %v4452, %v4620
    %v4622 = vpop.f32.mrf.mxu0
    %v4623 = vadd.f32 %v4454, %v4622
    %4624 = vmatmul.bf16.gmra.mxu0 %v2815
    %v4625 = vpop.f32.mrf.mxu0
    %v4626 = vadd.f32 %v4457, %v4625
    %v4627 = vpop.f32.mrf.mxu0
    %v4628 = vadd.f32 %v4459, %v4627
    %4629 = vmatmul.bf16.gmra.mxu0 %v2819
    %v4630 = vpop.f32.mrf.mxu0
    %v4631 = vadd.f32 %v4462, %v4630
    %v4632 = vpop.f32.mrf.mxu0
    %v4633 = vadd.f32 %v4464, %v4632
    %4634 = vmatmul.bf16.gmra.mxu0 %v2823
    %v4635 = vpop.f32.mrf.mxu0
    %v4636 = vadd.f32 %v4467, %v4635
    %v4637 = vpop.f32.mrf.mxu0
    %v4638 = vadd.f32 %v4469, %v4637
    %4639 = vmatmul.bf16.gmra.mxu0 %v2827
    %v4640 = vpop.f32.mrf.mxu0
    %v4641 = vadd.f32 %v4472, %v4640
    %v4642 = vpop.f32.mrf.mxu0
    %v4643 = vadd.f32 %v4474, %v4642
    %4644 = vmatmul.bf16.gmra.mxu0 %v2831
    %v4645 = vpop.f32.mrf.mxu0
    %v4646 = vadd.f32 %v4477, %v4645
    %v4647 = vpop.f32.mrf.mxu0
    %v4648 = vadd.f32 %v4479, %v4647
    %4649 = vmatmul.bf16.gmra.mxu0 %v2835
    %v4650 = vpop.f32.mrf.mxu0
    %v4651 = vadd.f32 %v4482, %v4650
    %v4652 = vpop.f32.mrf.mxu0
    %v4653 = vadd.f32 %v4484, %v4652
    %4654 = vmatmul.bf16.gmra.mxu0 %v2839
    %v4655 = vpop.f32.mrf.mxu0
    %v4656 = vadd.f32 %v4487, %v4655
    %v4657 = vpop.f32.mrf.mxu0
    %v4658 = vadd.f32 %v4489, %v4657
    %4659 = vdwg.mxu0
    %4660 = vmatpush.bf16.msra.mxu0 %v1912
    %4661 = vmatpush.bf16.msra.mxu0 %v1908
    %4662 = vmatpush.bf16.msra.mxu0 %v1904
    %4663 = vmatpush.bf16.msra.mxu0 %v1900
    %4664 = vmatpush.bf16.msra.mxu0 %v1896
    %4665 = vmatpush.bf16.msra.mxu0 %v1892
    %4666 = vmatpush.bf16.msra.mxu0 %v1888
    %4667 = vmatpush.bf16.msra.mxu0 %v1884
    %4668 = vmatmul.bf16.gmra.mxu0 %v2716
    %v4669 = vpop.f32.mrf.mxu0
    %v4670 = vadd.f32 %v4501, %v4669
    %v4671 = vpop.f32.mrf.mxu0
    %v4672 = vadd.f32 %v4503, %v4671
    %4673 = vmatmul.bf16.gmra.mxu0 %v2720
    %v4674 = vpop.f32.mrf.mxu0
    %v4675 = vadd.f32 %v4506, %v4674
    %v4676 = vpop.f32.mrf.mxu0
    %v4677 = vadd.f32 %v4508, %v4676
    %4678 = vmatmul.bf16.gmra.mxu0 %v2724
    %v4679 = vpop.f32.mrf.mxu0
    %v4680 = vadd.f32 %v4511, %v4679
    %v4681 = vpop.f32.mrf.mxu0
    %v4682 = vadd.f32 %v4513, %v4681
    %4683 = vmatmul.bf16.gmra.mxu0 %v2728
    %v4684 = vpop.f32.mrf.mxu0
    %v4685 = vadd.f32 %v4516, %v4684
    %v4686 = vpop.f32.mrf.mxu0
    %v4687 = vadd.f32 %v4518, %v4686
    %4688 = vmatmul.bf16.gmra.mxu0 %v2732
    %v4689 = vpop.f32.mrf.mxu0
    %v4690 = vadd.f32 %v4521, %v4689
    %v4691 = vpop.f32.mrf.mxu0
    %v4692 = vadd.f32 %v4523, %v4691
    %4693 = vmatmul.bf16.gmra.mxu0 %v2736
    %v4694 = vpop.f32.mrf.mxu0
    %v4695 = vadd.f32 %v4526, %v4694
    %v4696 = vpop.f32.mrf.mxu0
    %v4697 = vadd.f32 %v4528, %v4696
    %4698 = vmatmul.bf16.gmra.mxu0 %v2740
    %v4699 = vpop.f32.mrf.mxu0
    %v4700 = vadd.f32 %v4531, %v4699
    %v4701 = vpop.f32.mrf.mxu0
    %v4702 = vadd.f32 %v4533, %v4701
    %4703 = vmatmul.bf16.gmra.mxu0 %v2744
    %v4704 = vpop.f32.mrf.mxu0
    %v4705 = vadd.f32 %v4536, %v4704
    %v4706 = vpop.f32.mrf.mxu0
    %v4707 = vadd.f32 %v4538, %v4706
    %4708 = vmatmul.bf16.gmra.mxu0 %v2748
    %v4709 = vpop.f32.mrf.mxu0
    %v4710 = vadd.f32 %v4541, %v4709
    %v4711 = vpop.f32.mrf.mxu0
    %v4712 = vadd.f32 %v4543, %v4711
    %4713 = vmatmul.bf16.gmra.mxu0 %v2752
    %v4714 = vpop.f32.mrf.mxu0
    %v4715 = vadd.f32 %v4546, %v4714
    %v4716 = vpop.f32.mrf.mxu0
    %v4717 = vadd.f32 %v4548, %v4716
    %4718 = vmatmul.bf16.gmra.mxu0 %v2756
    %v4719 = vpop.f32.mrf.mxu0
    %v4720 = vadd.f32 %v4551, %v4719
    %v4721 = vpop.f32.mrf.mxu0
    %v4722 = vadd.f32 %v4553, %v4721
    %4723 = vmatmul.bf16.gmra.mxu0 %v2760
    %v4724 = vpop.f32.mrf.mxu0
    %v4725 = vadd.f32 %v4556, %v4724
    %v4726 = vpop.f32.mrf.mxu0
    %v4727 = vadd.f32 %v4558, %v4726
    %4728 = vmatmul.bf16.gmra.mxu0 %v2764
    %v4729 = vpop.f32.mrf.mxu0
    %v4730 = vadd.f32 %v4561, %v4729
    %v4731 = vpop.f32.mrf.mxu0
    %v4732 = vadd.f32 %v4563, %v4731
    %4733 = vmatmul.bf16.gmra.mxu0 %v2768
    %v4734 = vpop.f32.mrf.mxu0
    %v4735 = vadd.f32 %v4566, %v4734
    %v4736 = vpop.f32.mrf.mxu0
    %v4737 = vadd.f32 %v4568, %v4736
    %4738 = vmatmul.bf16.gmra.mxu0 %v2772
    %v4739 = vpop.f32.mrf.mxu0
    %v4740 = vadd.f32 %v4571, %v4739
    %v4741 = vpop.f32.mrf.mxu0
    %v4742 = vadd.f32 %v4573, %v4741
    %4743 = vmatmul.bf16.gmra.mxu0 %v2776
    %v4744 = vpop.f32.mrf.mxu0
    %v4745 = vadd.f32 %v4576, %v4744
    %v4746 = vpop.f32.mrf.mxu0
    %v4747 = vadd.f32 %v4578, %v4746
    %4748 = vmatmul.bf16.gmra.mxu0 %v2780
    %v4749 = vpop.f32.mrf.mxu0
    %v4750 = vadd.f32 %v4581, %v4749
    %v4751 = vpop.f32.mrf.mxu0
    %v4752 = vadd.f32 %v4583, %v4751
    %4753 = vmatmul.bf16.gmra.mxu0 %v2784
    %v4754 = vpop.f32.mrf.mxu0
    %v4755 = vadd.f32 %v4586, %v4754
    %v4756 = vpop.f32.mrf.mxu0
    %v4757 = vadd.f32 %v4588, %v4756
    %4758 = vmatmul.bf16.gmra.mxu0 %v2788
    %v4759 = vpop.f32.mrf.mxu0
    %v4760 = vadd.f32 %v4591, %v4759
    %v4761 = vpop.f32.mrf.mxu0
    %v4762 = vadd.f32 %v4593, %v4761
    %4763 = vmatmul.bf16.gmra.mxu0 %v2792
    %v4764 = vpop.f32.mrf.mxu0
    %v4765 = vadd.f32 %v4596, %v4764
    %v4766 = vpop.f32.mrf.mxu0
    %v4767 = vadd.f32 %v4598, %v4766
    %4768 = vmatmul.bf16.gmra.mxu0 %v2796
    %v4769 = vpop.f32.mrf.mxu0
    %v4770 = vadd.f32 %v4601, %v4769
    %v4771 = vpop.f32.mrf.mxu0
    %v4772 = vadd.f32 %v4603, %v4771
    %4773 = vmatmul.bf16.gmra.mxu0 %v2800
    %v4774 = vpop.f32.mrf.mxu0
    %v4775 = vadd.f32 %v4606, %v4774
    %v4776 = vpop.f32.mrf.mxu0
    %v4777 = vadd.f32 %v4608, %v4776
    %4778 = vmatmul.bf16.gmra.mxu0 %v2804
    %v4779 = vpop.f32.mrf.mxu0
    %v4780 = vadd.f32 %v4611, %v4779
    %v4781 = vpop.f32.mrf.mxu0
    %v4782 = vadd.f32 %v4613, %v4781
    %4783 = vmatmul.bf16.gmra.mxu0 %v2808
    %v4784 = vpop.f32.mrf.mxu0
    %v4785 = vadd.f32 %v4616, %v4784
    %v4786 = vpop.f32.mrf.mxu0
    %v4787 = vadd.f32 %v4618, %v4786
    %4788 = vmatmul.bf16.gmra.mxu0 %v2812
    %v4789 = vpop.f32.mrf.mxu0
    %v4790 = vadd.f32 %v4621, %v4789
    %v4791 = vpop.f32.mrf.mxu0
    %v4792 = vadd.f32 %v4623, %v4791
    %4793 = vmatmul.bf16.gmra.mxu0 %v2816
    %v4794 = vpop.f32.mrf.mxu0
    %v4795 = vadd.f32 %v4626, %v4794
    %v4796 = vpop.f32.mrf.mxu0
    %v4797 = vadd.f32 %v4628, %v4796
    %4798 = vmatmul.bf16.gmra.mxu0 %v2820
    %v4799 = vpop.f32.mrf.mxu0
    %v4800 = vadd.f32 %v4631, %v4799
    %v4801 = vpop.f32.mrf.mxu0
    %v4802 = vadd.f32 %v4633, %v4801
    %4803 = vmatmul.bf16.gmra.mxu0 %v2824
    %v4804 = vpop.f32.mrf.mxu0
    %v4805 = vadd.f32 %v4636, %v4804
    %v4806 = vpop.f32.mrf.mxu0
    %v4807 = vadd.f32 %v4638, %v4806
    %4808 = vmatmul.bf16.gmra.mxu0 %v2828
    %v4809 = vpop.f32.mrf.mxu0
    %v4810 = vadd.f32 %v4641, %v4809
    %v4811 = vpop.f32.mrf.mxu0
    %v4812 = vadd.f32 %v4643, %v4811
    %4813 = vmatmul.bf16.gmra.mxu0 %v2832
    %v4814 = vpop.f32.mrf.mxu0
    %v4815 = vadd.f32 %v4646, %v4814
    %v4816 = vpop.f32.mrf.mxu0
    %v4817 = vadd.f32 %v4648, %v4816
    %4818 = vmatmul.bf16.gmra.mxu0 %v2836
    %v4819 = vpop.f32.mrf.mxu0
    %v4820 = vadd.f32 %v4651, %v4819
    %v4821 = vpop.f32.mrf.mxu0
    %v4822 = vadd.f32 %v4653, %v4821
    %4823 = vmatmul.bf16.gmra.mxu0 %v2840
    %v4824 = vpop.f32.mrf.mxu0
    %v4825 = vadd.f32 %v4656, %v4824
    %v4826 = vpop.f32.mrf.mxu0
    %v4827 = vadd.f32 %v4658, %v4826
    %4828 = vdwg.mxu0
    %4829 = vmatpush.bf16.msra.mxu0 %v1944
    %4830 = vmatpush.bf16.msra.mxu0 %v1940
    %4831 = vmatpush.bf16.msra.mxu0 %v1936
    %4832 = vmatpush.bf16.msra.mxu0 %v1932
    %4833 = vmatpush.bf16.msra.mxu0 %v1928
    %4834 = vmatpush.bf16.msra.mxu0 %v1924
    %4835 = vmatpush.bf16.msra.mxu0 %v1920
    %4836 = vmatpush.bf16.msra.mxu0 %v1916
    %4837 = vmatmul.bf16.gmra.mxu0 %v2717
    %v4838 = vpop.f32.mrf.mxu0
    %v4839 = vadd.f32 %v4670, %v4838
    %v4840 = vpop.f32.mrf.mxu0
    %v4841 = vadd.f32 %v4672, %v4840
    %4842 = vmatmul.bf16.gmra.mxu0 %v2721
    %v4843 = vpop.f32.mrf.mxu0
    %v4844 = vadd.f32 %v4675, %v4843
    %v4845 = vpop.f32.mrf.mxu0
    %v4846 = vadd.f32 %v4677, %v4845
    %4847 = vmatmul.bf16.gmra.mxu0 %v2725
    %v4848 = vpop.f32.mrf.mxu0
    %v4849 = vadd.f32 %v4680, %v4848
    %v4850 = vpop.f32.mrf.mxu0
    %v4851 = vadd.f32 %v4682, %v4850
    %4852 = vmatmul.bf16.gmra.mxu0 %v2729
    %v4853 = vpop.f32.mrf.mxu0
    %v4854 = vadd.f32 %v4685, %v4853
    %v4855 = vpop.f32.mrf.mxu0
    %v4856 = vadd.f32 %v4687, %v4855
    %4857 = vmatmul.bf16.gmra.mxu0 %v2733
    %v4858 = vpop.f32.mrf.mxu0
    %v4859 = vadd.f32 %v4690, %v4858
    %v4860 = vpop.f32.mrf.mxu0
    %v4861 = vadd.f32 %v4692, %v4860
    %4862 = vmatmul.bf16.gmra.mxu0 %v2737
    %v4863 = vpop.f32.mrf.mxu0
    %v4864 = vadd.f32 %v4695, %v4863
    %v4865 = vpop.f32.mrf.mxu0
    %v4866 = vadd.f32 %v4697, %v4865
    %4867 = vmatmul.bf16.gmra.mxu0 %v2741
    %v4868 = vpop.f32.mrf.mxu0
    %v4869 = vadd.f32 %v4700, %v4868
    %v4870 = vpop.f32.mrf.mxu0
    %v4871 = vadd.f32 %v4702, %v4870
    %4872 = vmatmul.bf16.gmra.mxu0 %v2745
    %v4873 = vpop.f32.mrf.mxu0
    %v4874 = vadd.f32 %v4705, %v4873
    %v4875 = vpop.f32.mrf.mxu0
    %v4876 = vadd.f32 %v4707, %v4875
    %4877 = vmatmul.bf16.gmra.mxu0 %v2749
    %v4878 = vpop.f32.mrf.mxu0
    %v4879 = vadd.f32 %v4710, %v4878
    %v4880 = vpop.f32.mrf.mxu0
    %v4881 = vadd.f32 %v4712, %v4880
    %4882 = vmatmul.bf16.gmra.mxu0 %v2753
    %v4883 = vpop.f32.mrf.mxu0
    %v4884 = vadd.f32 %v4715, %v4883
    %v4885 = vpop.f32.mrf.mxu0
    %v4886 = vadd.f32 %v4717, %v4885
    %4887 = vmatmul.bf16.gmra.mxu0 %v2757
    %v4888 = vpop.f32.mrf.mxu0
    %v4889 = vadd.f32 %v4720, %v4888
    %v4890 = vpop.f32.mrf.mxu0
    %v4891 = vadd.f32 %v4722, %v4890
    %4892 = vmatmul.bf16.gmra.mxu0 %v2761
    %v4893 = vpop.f32.mrf.mxu0
    %v4894 = vadd.f32 %v4725, %v4893
    %v4895 = vpop.f32.mrf.mxu0
    %v4896 = vadd.f32 %v4727, %v4895
    %4897 = vmatmul.bf16.gmra.mxu0 %v2765
    %v4898 = vpop.f32.mrf.mxu0
    %v4899 = vadd.f32 %v4730, %v4898
    %v4900 = vpop.f32.mrf.mxu0
    %v4901 = vadd.f32 %v4732, %v4900
    %4902 = vmatmul.bf16.gmra.mxu0 %v2769
    %v4903 = vpop.f32.mrf.mxu0
    %v4904 = vadd.f32 %v4735, %v4903
    %v4905 = vpop.f32.mrf.mxu0
    %v4906 = vadd.f32 %v4737, %v4905
    %4907 = vmatmul.bf16.gmra.mxu0 %v2773
    %v4908 = vpop.f32.mrf.mxu0
    %v4909 = vadd.f32 %v4740, %v4908
    %v4910 = vpop.f32.mrf.mxu0
    %v4911 = vadd.f32 %v4742, %v4910
    %4912 = vmatmul.bf16.gmra.mxu0 %v2777
    %v4913 = vpop.f32.mrf.mxu0
    %v4914 = vadd.f32 %v4745, %v4913
    %v4915 = vpop.f32.mrf.mxu0
    %v4916 = vadd.f32 %v4747, %v4915
    %4917 = vmatmul.bf16.gmra.mxu0 %v2781
    %v4918 = vpop.f32.mrf.mxu0
    %v4919 = vadd.f32 %v4750, %v4918
    %v4920 = vpop.f32.mrf.mxu0
    %v4921 = vadd.f32 %v4752, %v4920
    %4922 = vmatmul.bf16.gmra.mxu0 %v2785
    %v4923 = vpop.f32.mrf.mxu0
    %v4924 = vadd.f32 %v4755, %v4923
    %v4925 = vpop.f32.mrf.mxu0
    %v4926 = vadd.f32 %v4757, %v4925
    %4927 = vmatmul.bf16.gmra.mxu0 %v2789
    %v4928 = vpop.f32.mrf.mxu0
    %v4929 = vadd.f32 %v4760, %v4928
    %v4930 = vpop.f32.mrf.mxu0
    %v4931 = vadd.f32 %v4762, %v4930
    %4932 = vmatmul.bf16.gmra.mxu0 %v2793
    %v4933 = vpop.f32.mrf.mxu0
    %v4934 = vadd.f32 %v4765, %v4933
    %v4935 = vpop.f32.mrf.mxu0
    %v4936 = vadd.f32 %v4767, %v4935
    %4937 = vmatmul.bf16.gmra.mxu0 %v2797
    %v4938 = vpop.f32.mrf.mxu0
    %v4939 = vadd.f32 %v4770, %v4938
    %v4940 = vpop.f32.mrf.mxu0
    %v4941 = vadd.f32 %v4772, %v4940
    %4942 = vmatmul.bf16.gmra.mxu0 %v2801
    %v4943 = vpop.f32.mrf.mxu0
    %v4944 = vadd.f32 %v4775, %v4943
    %v4945 = vpop.f32.mrf.mxu0
    %v4946 = vadd.f32 %v4777, %v4945
    %4947 = vmatmul.bf16.gmra.mxu0 %v2805
    %v4948 = vpop.f32.mrf.mxu0
    %v4949 = vadd.f32 %v4780, %v4948
    %v4950 = vpop.f32.mrf.mxu0
    %v4951 = vadd.f32 %v4782, %v4950
    %4952 = vmatmul.bf16.gmra.mxu0 %v2809
    %v4953 = vpop.f32.mrf.mxu0
    %v4954 = vadd.f32 %v4785, %v4953
    %v4955 = vpop.f32.mrf.mxu0
    %v4956 = vadd.f32 %v4787, %v4955
    %4957 = vmatmul.bf16.gmra.mxu0 %v2813
    %v4958 = vpop.f32.mrf.mxu0
    %v4959 = vadd.f32 %v4790, %v4958
    %v4960 = vpop.f32.mrf.mxu0
    %v4961 = vadd.f32 %v4792, %v4960
    %4962 = vmatmul.bf16.gmra.mxu0 %v2817
    %v4963 = vpop.f32.mrf.mxu0
    %v4964 = vadd.f32 %v4795, %v4963
    %v4965 = vpop.f32.mrf.mxu0
    %v4966 = vadd.f32 %v4797, %v4965
    %4967 = vmatmul.bf16.gmra.mxu0 %v2821
    %v4968 = vpop.f32.mrf.mxu0
    %v4969 = vadd.f32 %v4800, %v4968
    %v4970 = vpop.f32.mrf.mxu0
    %v4971 = vadd.f32 %v4802, %v4970
    %4972 = vmatmul.bf16.gmra.mxu0 %v2825
    %v4973 = vpop.f32.mrf.mxu0
    %v4974 = vadd.f32 %v4805, %v4973
    %v4975 = vpop.f32.mrf.mxu0
    %v4976 = vadd.f32 %v4807, %v4975
    %4977 = vmatmul.bf16.gmra.mxu0 %v2829
    %v4978 = vpop.f32.mrf.mxu0
    %v4979 = vadd.f32 %v4810, %v4978
    %v4980 = vpop.f32.mrf.mxu0
    %v4981 = vadd.f32 %v4812, %v4980
    %4982 = vmatmul.bf16.gmra.mxu0 %v2833
    %v4983 = vpop.f32.mrf.mxu0
    %v4984 = vadd.f32 %v4815, %v4983
    %v4985 = vpop.f32.mrf.mxu0
    %v4986 = vadd.f32 %v4817, %v4985
    %4987 = vmatmul.bf16.gmra.mxu0 %v2837
    %v4988 = vpop.f32.mrf.mxu0
    %v4989 = vadd.f32 %v4820, %v4988
    %v4990 = vpop.f32.mrf.mxu0
    %v4991 = vadd.f32 %v4822, %v4990
    %4992 = vmatmul.bf16.gmra.mxu0 %v2841
    %v4993 = vpop.f32.mrf.mxu0
    %v4994 = vadd.f32 %v4825, %v4993
    %v4995 = vpop.f32.mrf.mxu0
    %v4996 = vadd.f32 %v4827, %v4995
    %4997 = vdwg.mxu0
    %4998 = vmatpush.bf16.msra.mxu0 %v1849
    %4999 = vmatpush.bf16.msra.mxu0 %v1845
    %5000 = vmatpush.bf16.msra.mxu0 %v1841
    %5001 = vmatpush.bf16.msra.mxu0 %v1837
    %5002 = vmatpush.bf16.msra.mxu0 %v1833
    %5003 = vmatpush.bf16.msra.mxu0 %v1829
    %5004 = vmatpush.bf16.msra.mxu0 %v1825
    %5005 = vmatpush.bf16.msra.mxu0 %v1821
    %5006 = vmatmul.bf16.gmra.mxu0 %v2714
    %v5007 = vpop.f32.mrf.mxu0
    %v5008 = vadd.f32 %v2013, %v5007
    %v5009 = vpop.f32.mrf.mxu0
    %v5010 = vadd.f32 %v2018, %v5009
    %5011 = vmatmul.bf16.gmra.mxu0 %v2718
    %v5012 = vpop.f32.mrf.mxu0
    %v5013 = vadd.f32 %v2023, %v5012
    %v5014 = vpop.f32.mrf.mxu0
    %v5015 = vadd.f32 %v2028, %v5014
    %5016 = vmatmul.bf16.gmra.mxu0 %v2722
    %v5017 = vpop.f32.mrf.mxu0
    %v5018 = vadd.f32 %v2033, %v5017
    %v5019 = vpop.f32.mrf.mxu0
    %v5020 = vadd.f32 %v2038, %v5019
    %5021 = vmatmul.bf16.gmra.mxu0 %v2726
    %v5022 = vpop.f32.mrf.mxu0
    %v5023 = vadd.f32 %v2043, %v5022
    %v5024 = vpop.f32.mrf.mxu0
    %v5025 = vadd.f32 %v2048, %v5024
    %5026 = vmatmul.bf16.gmra.mxu0 %v2730
    %v5027 = vpop.f32.mrf.mxu0
    %v5028 = vadd.f32 %v2053, %v5027
    %v5029 = vpop.f32.mrf.mxu0
    %v5030 = vadd.f32 %v2058, %v5029
    %5031 = vmatmul.bf16.gmra.mxu0 %v2734
    %v5032 = vpop.f32.mrf.mxu0
    %v5033 = vadd.f32 %v2063, %v5032
    %v5034 = vpop.f32.mrf.mxu0
    %v5035 = vadd.f32 %v2068, %v5034
    %5036 = vmatmul.bf16.gmra.mxu0 %v2738
    %v5037 = vpop.f32.mrf.mxu0
    %v5038 = vadd.f32 %v2073, %v5037
    %v5039 = vpop.f32.mrf.mxu0
    %v5040 = vadd.f32 %v2078, %v5039
    %5041 = vmatmul.bf16.gmra.mxu0 %v2742
    %v5042 = vpop.f32.mrf.mxu0
    %v5043 = vadd.f32 %v2083, %v5042
    %v5044 = vpop.f32.mrf.mxu0
    %v5045 = vadd.f32 %v2088, %v5044
    %5046 = vmatmul.bf16.gmra.mxu0 %v2746
    %v5047 = vpop.f32.mrf.mxu0
    %v5048 = vadd.f32 %v2093, %v5047
    %v5049 = vpop.f32.mrf.mxu0
    %v5050 = vadd.f32 %v2098, %v5049
    %5051 = vmatmul.bf16.gmra.mxu0 %v2750
    %v5052 = vpop.f32.mrf.mxu0
    %v5053 = vadd.f32 %v2103, %v5052
    %v5054 = vpop.f32.mrf.mxu0
    %v5055 = vadd.f32 %v2108, %v5054
    %5056 = vmatmul.bf16.gmra.mxu0 %v2754
    %v5057 = vpop.f32.mrf.mxu0
    %v5058 = vadd.f32 %v2113, %v5057
    %v5059 = vpop.f32.mrf.mxu0
    %v5060 = vadd.f32 %v2118, %v5059
    %5061 = vmatmul.bf16.gmra.mxu0 %v2758
    %v5062 = vpop.f32.mrf.mxu0
    %v5063 = vadd.f32 %v2123, %v5062
    %v5064 = vpop.f32.mrf.mxu0
    %v5065 = vadd.f32 %v2128, %v5064
    %5066 = vmatmul.bf16.gmra.mxu0 %v2762
    %v5067 = vpop.f32.mrf.mxu0
    %v5068 = vadd.f32 %v2133, %v5067
    %v5069 = vpop.f32.mrf.mxu0
    %v5070 = vadd.f32 %v2138, %v5069
    %5071 = vmatmul.bf16.gmra.mxu0 %v2766
    %v5072 = vpop.f32.mrf.mxu0
    %v5073 = vadd.f32 %v2143, %v5072
    %v5074 = vpop.f32.mrf.mxu0
    %v5075 = vadd.f32 %v2148, %v5074
    %5076 = vmatmul.bf16.gmra.mxu0 %v2770
    %v5077 = vpop.f32.mrf.mxu0
    %v5078 = vadd.f32 %v2153, %v5077
    %v5079 = vpop.f32.mrf.mxu0
    %v5080 = vadd.f32 %v2158, %v5079
    %5081 = vmatmul.bf16.gmra.mxu0 %v2774
    %v5082 = vpop.f32.mrf.mxu0
    %v5083 = vadd.f32 %v2163, %v5082
    %v5084 = vpop.f32.mrf.mxu0
    %v5085 = vadd.f32 %v2168, %v5084
    %5086 = vmatmul.bf16.gmra.mxu0 %v2778
    %v5087 = vpop.f32.mrf.mxu0
    %v5088 = vadd.f32 %v2173, %v5087
    %v5089 = vpop.f32.mrf.mxu0
    %v5090 = vadd.f32 %v2178, %v5089
    %5091 = vmatmul.bf16.gmra.mxu0 %v2782
    %v5092 = vpop.f32.mrf.mxu0
    %v5093 = vadd.f32 %v2183, %v5092
    %v5094 = vpop.f32.mrf.mxu0
    %v5095 = vadd.f32 %v2188, %v5094
    %5096 = vmatmul.bf16.gmra.mxu0 %v2786
    %v5097 = vpop.f32.mrf.mxu0
    %v5098 = vadd.f32 %v2193, %v5097
    %v5099 = vpop.f32.mrf.mxu0
    %v5100 = vadd.f32 %v2198, %v5099
    %5101 = vmatmul.bf16.gmra.mxu0 %v2790
    %v5102 = vpop.f32.mrf.mxu0
    %v5103 = vadd.f32 %v2203, %v5102
    %v5104 = vpop.f32.mrf.mxu0
    %v5105 = vadd.f32 %v2208, %v5104
    %5106 = vmatmul.bf16.gmra.mxu0 %v2794
    %v5107 = vpop.f32.mrf.mxu0
    %v5108 = vadd.f32 %v2213, %v5107
    %v5109 = vpop.f32.mrf.mxu0
    %v5110 = vadd.f32 %v2218, %v5109
    %5111 = vmatmul.bf16.gmra.mxu0 %v2798
    %v5112 = vpop.f32.mrf.mxu0
    %v5113 = vadd.f32 %v2223, %v5112
    %v5114 = vpop.f32.mrf.mxu0
    %v5115 = vadd.f32 %v2228, %v5114
    %5116 = vmatmul.bf16.gmra.mxu0 %v2802
    %v5117 = vpop.f32.mrf.mxu0
    %v5118 = vadd.f32 %v2233, %v5117
    %v5119 = vpop.f32.mrf.mxu0
    %v5120 = vadd.f32 %v2238, %v5119
    %5121 = vmatmul.bf16.gmra.mxu0 %v2806
    %v5122 = vpop.f32.mrf.mxu0
    %v5123 = vadd.f32 %v2243, %v5122
    %v5124 = vpop.f32.mrf.mxu0
    %v5125 = vadd.f32 %v2248, %v5124
    %5126 = vmatmul.bf16.gmra.mxu0 %v2810
    %v5127 = vpop.f32.mrf.mxu0
    %v5128 = vadd.f32 %v2253, %v5127
    %v5129 = vpop.f32.mrf.mxu0
    %v5130 = vadd.f32 %v2258, %v5129
    %5131 = vmatmul.bf16.gmra.mxu0 %v2814
    %v5132 = vpop.f32.mrf.mxu0
    %v5133 = vadd.f32 %v2263, %v5132
    %v5134 = vpop.f32.mrf.mxu0
    %v5135 = vadd.f32 %v2268, %v5134
    %5136 = vmatmul.bf16.gmra.mxu0 %v2818
    %v5137 = vpop.f32.mrf.mxu0
    %v5138 = vadd.f32 %v2273, %v5137
    %v5139 = vpop.f32.mrf.mxu0
    %v5140 = vadd.f32 %v2278, %v5139
    %5141 = vmatmul.bf16.gmra.mxu0 %v2822
    %v5142 = vpop.f32.mrf.mxu0
    %v5143 = vadd.f32 %v2283, %v5142
    %v5144 = vpop.f32.mrf.mxu0
    %v5145 = vadd.f32 %v2288, %v5144
    %5146 = vmatmul.bf16.gmra.mxu0 %v2826
    %v5147 = vpop.f32.mrf.mxu0
    %v5148 = vadd.f32 %v2293, %v5147
    %v5149 = vpop.f32.mrf.mxu0
    %v5150 = vadd.f32 %v2298, %v5149
    %5151 = vmatmul.bf16.gmra.mxu0 %v2830
    %v5152 = vpop.f32.mrf.mxu0
    %v5153 = vadd.f32 %v2303, %v5152
    %v5154 = vpop.f32.mrf.mxu0
    %v5155 = vadd.f32 %v2308, %v5154
    %5156 = vmatmul.bf16.gmra.mxu0 %v2834
    %v5157 = vpop.f32.mrf.mxu0
    %v5158 = vadd.f32 %v2313, %v5157
    %v5159 = vpop.f32.mrf.mxu0
    %v5160 = vadd.f32 %v2318, %v5159
    %5161 = vmatmul.bf16.gmra.mxu0 %v2838
    %v5162 = vpop.f32.mrf.mxu0
    %v5163 = vadd.f32 %v2323, %v5162
    %v5164 = vpop.f32.mrf.mxu0
    %v5165 = vadd.f32 %v2328, %v5164
    %5166 = vdwg.mxu0
    %5167 = vmatpush.bf16.msra.mxu0 %v1881
    %5168 = vmatpush.bf16.msra.mxu0 %v1877
    %5169 = vmatpush.bf16.msra.mxu0 %v1873
    %5170 = vmatpush.bf16.msra.mxu0 %v1869
    %5171 = vmatpush.bf16.msra.mxu0 %v1865
    %5172 = vmatpush.bf16.msra.mxu0 %v1861
    %5173 = vmatpush.bf16.msra.mxu0 %v1857
    %5174 = vmatpush.bf16.msra.mxu0 %v1853
    %5175 = vmatmul.bf16.gmra.mxu0 %v2715
    %v5176 = vpop.f32.mrf.mxu0
    %v5177 = vadd.f32 %v5008, %v5176
    %v5178 = vpop.f32.mrf.mxu0
    %v5179 = vadd.f32 %v5010, %v5178
    %5180 = vmatmul.bf16.gmra.mxu0 %v2719
    %v5181 = vpop.f32.mrf.mxu0
    %v5182 = vadd.f32 %v5013, %v5181
    %v5183 = vpop.f32.mrf.mxu0
    %v5184 = vadd.f32 %v5015, %v5183
    %5185 = vmatmul.bf16.gmra.mxu0 %v2723
    %v5186 = vpop.f32.mrf.mxu0
    %v5187 = vadd.f32 %v5018, %v5186
    %v5188 = vpop.f32.mrf.mxu0
    %v5189 = vadd.f32 %v5020, %v5188
    %5190 = vmatmul.bf16.gmra.mxu0 %v2727
    %v5191 = vpop.f32.mrf.mxu0
    %v5192 = vadd.f32 %v5023, %v5191
    %v5193 = vpop.f32.mrf.mxu0
    %v5194 = vadd.f32 %v5025, %v5193
    %5195 = vmatmul.bf16.gmra.mxu0 %v2731
    %v5196 = vpop.f32.mrf.mxu0
    %v5197 = vadd.f32 %v5028, %v5196
    %v5198 = vpop.f32.mrf.mxu0
    %v5199 = vadd.f32 %v5030, %v5198
    %5200 = vmatmul.bf16.gmra.mxu0 %v2735
    %v5201 = vpop.f32.mrf.mxu0
    %v5202 = vadd.f32 %v5033, %v5201
    %v5203 = vpop.f32.mrf.mxu0
    %v5204 = vadd.f32 %v5035, %v5203
    %5205 = vmatmul.bf16.gmra.mxu0 %v2739
    %v5206 = vpop.f32.mrf.mxu0
    %v5207 = vadd.f32 %v5038, %v5206
    %v5208 = vpop.f32.mrf.mxu0
    %v5209 = vadd.f32 %v5040, %v5208
    %5210 = vmatmul.bf16.gmra.mxu0 %v2743
    %v5211 = vpop.f32.mrf.mxu0
    %v5212 = vadd.f32 %v5043, %v5211
    %v5213 = vpop.f32.mrf.mxu0
    %v5214 = vadd.f32 %v5045, %v5213
    %5215 = vmatmul.bf16.gmra.mxu0 %v2747
    %v5216 = vpop.f32.mrf.mxu0
    %v5217 = vadd.f32 %v5048, %v5216
    %v5218 = vpop.f32.mrf.mxu0
    %v5219 = vadd.f32 %v5050, %v5218
    %5220 = vmatmul.bf16.gmra.mxu0 %v2751
    %v5221 = vpop.f32.mrf.mxu0
    %v5222 = vadd.f32 %v5053, %v5221
    %v5223 = vpop.f32.mrf.mxu0
    %v5224 = vadd.f32 %v5055, %v5223
    %5225 = vmatmul.bf16.gmra.mxu0 %v2755
    %v5226 = vpop.f32.mrf.mxu0
    %v5227 = vadd.f32 %v5058, %v5226
    %v5228 = vpop.f32.mrf.mxu0
    %v5229 = vadd.f32 %v5060, %v5228
    %5230 = vmatmul.bf16.gmra.mxu0 %v2759
    %v5231 = vpop.f32.mrf.mxu0
    %v5232 = vadd.f32 %v5063, %v5231
    %v5233 = vpop.f32.mrf.mxu0
    %v5234 = vadd.f32 %v5065, %v5233
    %5235 = vmatmul.bf16.gmra.mxu0 %v2763
    %v5236 = vpop.f32.mrf.mxu0
    %v5237 = vadd.f32 %v5068, %v5236
    %v5238 = vpop.f32.mrf.mxu0
    %v5239 = vadd.f32 %v5070, %v5238
    %5240 = vmatmul.bf16.gmra.mxu0 %v2767
    %v5241 = vpop.f32.mrf.mxu0
    %v5242 = vadd.f32 %v5073, %v5241
    %v5243 = vpop.f32.mrf.mxu0
    %v5244 = vadd.f32 %v5075, %v5243
    %5245 = vmatmul.bf16.gmra.mxu0 %v2771
    %v5246 = vpop.f32.mrf.mxu0
    %v5247 = vadd.f32 %v5078, %v5246
    %v5248 = vpop.f32.mrf.mxu0
    %v5249 = vadd.f32 %v5080, %v5248
    %5250 = vmatmul.bf16.gmra.mxu0 %v2775
    %v5251 = vpop.f32.mrf.mxu0
    %v5252 = vadd.f32 %v5083, %v5251
    %v5253 = vpop.f32.mrf.mxu0
    %v5254 = vadd.f32 %v5085, %v5253
    %5255 = vmatmul.bf16.gmra.mxu0 %v2779
    %v5256 = vpop.f32.mrf.mxu0
    %v5257 = vadd.f32 %v5088, %v5256
    %v5258 = vpop.f32.mrf.mxu0
    %v5259 = vadd.f32 %v5090, %v5258
    %5260 = vmatmul.bf16.gmra.mxu0 %v2783
    %v5261 = vpop.f32.mrf.mxu0
    %v5262 = vadd.f32 %v5093, %v5261
    %v5263 = vpop.f32.mrf.mxu0
    %v5264 = vadd.f32 %v5095, %v5263
    %5265 = vmatmul.bf16.gmra.mxu0 %v2787
    %v5266 = vpop.f32.mrf.mxu0
    %v5267 = vadd.f32 %v5098, %v5266
    %v5268 = vpop.f32.mrf.mxu0
    %v5269 = vadd.f32 %v5100, %v5268
    %5270 = vmatmul.bf16.gmra.mxu0 %v2791
    %v5271 = vpop.f32.mrf.mxu0
    %v5272 = vadd.f32 %v5103, %v5271
    %v5273 = vpop.f32.mrf.mxu0
    %v5274 = vadd.f32 %v5105, %v5273
    %5275 = vmatmul.bf16.gmra.mxu0 %v2795
    %v5276 = vpop.f32.mrf.mxu0
    %v5277 = vadd.f32 %v5108, %v5276
    %v5278 = vpop.f32.mrf.mxu0
    %v5279 = vadd.f32 %v5110, %v5278
    %5280 = vmatmul.bf16.gmra.mxu0 %v2799
    %v5281 = vpop.f32.mrf.mxu0
    %v5282 = vadd.f32 %v5113, %v5281
    %v5283 = vpop.f32.mrf.mxu0
    %v5284 = vadd.f32 %v5115, %v5283
    %5285 = vmatmul.bf16.gmra.mxu0 %v2803
    %v5286 = vpop.f32.mrf.mxu0
    %v5287 = vadd.f32 %v5118, %v5286
    %v5288 = vpop.f32.mrf.mxu0
    %v5289 = vadd.f32 %v5120, %v5288
    %5290 = vmatmul.bf16.gmra.mxu0 %v2807
    %v5291 = vpop.f32.mrf.mxu0
    %v5292 = vadd.f32 %v5123, %v5291
    %v5293 = vpop.f32.mrf.mxu0
    %v5294 = vadd.f32 %v5125, %v5293
    %5295 = vmatmul.bf16.gmra.mxu0 %v2811
    %v5296 = vpop.f32.mrf.mxu0
    %v5297 = vadd.f32 %v5128, %v5296
    %v5298 = vpop.f32.mrf.mxu0
    %v5299 = vadd.f32 %v5130, %v5298
    %5300 = vmatmul.bf16.gmra.mxu0 %v2815
    %v5301 = vpop.f32.mrf.mxu0
    %v5302 = vadd.f32 %v5133, %v5301
    %v5303 = vpop.f32.mrf.mxu0
    %v5304 = vadd.f32 %v5135, %v5303
    %5305 = vmatmul.bf16.gmra.mxu0 %v2819
    %v5306 = vpop.f32.mrf.mxu0
    %v5307 = vadd.f32 %v5138, %v5306
    %v5308 = vpop.f32.mrf.mxu0
    %v5309 = vadd.f32 %v5140, %v5308
    %5310 = vmatmul.bf16.gmra.mxu0 %v2823
    %v5311 = vpop.f32.mrf.mxu0
    %v5312 = vadd.f32 %v5143, %v5311
    %v5313 = vpop.f32.mrf.mxu0
    %v5314 = vadd.f32 %v5145, %v5313
    %5315 = vmatmul.bf16.gmra.mxu0 %v2827
    %v5316 = vpop.f32.mrf.mxu0
    %v5317 = vadd.f32 %v5148, %v5316
    %v5318 = vpop.f32.mrf.mxu0
    %v5319 = vadd.f32 %v5150, %v5318
    %5320 = vmatmul.bf16.gmra.mxu0 %v2831
    %v5321 = vpop.f32.mrf.mxu0
    %v5322 = vadd.f32 %v5153, %v5321
    %v5323 = vpop.f32.mrf.mxu0
    %v5324 = vadd.f32 %v5155, %v5323
    %5325 = vmatmul.bf16.gmra.mxu0 %v2835
    %v5326 = vpop.f32.mrf.mxu0
    %v5327 = vadd.f32 %v5158, %v5326
    %v5328 = vpop.f32.mrf.mxu0
    %v5329 = vadd.f32 %v5160, %v5328
    %5330 = vmatmul.bf16.gmra.mxu0 %v2839
    %v5331 = vpop.f32.mrf.mxu0
    %v5332 = vadd.f32 %v5163, %v5331
    %v5333 = vpop.f32.mrf.mxu0
    %v5334 = vadd.f32 %v5165, %v5333
    %5335 = vdwg.mxu0
    %5336 = vmatpush.bf16.msra.mxu0 %v1913
    %5337 = vmatpush.bf16.msra.mxu0 %v1909
    %5338 = vmatpush.bf16.msra.mxu0 %v1905
    %5339 = vmatpush.bf16.msra.mxu0 %v1901
    %5340 = vmatpush.bf16.msra.mxu0 %v1897
    %5341 = vmatpush.bf16.msra.mxu0 %v1893
    %5342 = vmatpush.bf16.msra.mxu0 %v1889
    %5343 = vmatpush.bf16.msra.mxu0 %v1885
    %5344 = vmatmul.bf16.gmra.mxu0 %v2716
    %v5345 = vpop.f32.mrf.mxu0
    %v5346 = vadd.f32 %v5177, %v5345
    %v5347 = vpop.f32.mrf.mxu0
    %v5348 = vadd.f32 %v5179, %v5347
    %5349 = vmatmul.bf16.gmra.mxu0 %v2720
    %v5350 = vpop.f32.mrf.mxu0
    %v5351 = vadd.f32 %v5182, %v5350
    %v5352 = vpop.f32.mrf.mxu0
    %v5353 = vadd.f32 %v5184, %v5352
    %5354 = vmatmul.bf16.gmra.mxu0 %v2724
    %v5355 = vpop.f32.mrf.mxu0
    %v5356 = vadd.f32 %v5187, %v5355
    %v5357 = vpop.f32.mrf.mxu0
    %v5358 = vadd.f32 %v5189, %v5357
    %5359 = vmatmul.bf16.gmra.mxu0 %v2728
    %v5360 = vpop.f32.mrf.mxu0
    %v5361 = vadd.f32 %v5192, %v5360
    %v5362 = vpop.f32.mrf.mxu0
    %v5363 = vadd.f32 %v5194, %v5362
    %5364 = vmatmul.bf16.gmra.mxu0 %v2732
    %v5365 = vpop.f32.mrf.mxu0
    %v5366 = vadd.f32 %v5197, %v5365
    %v5367 = vpop.f32.mrf.mxu0
    %v5368 = vadd.f32 %v5199, %v5367
    %5369 = vmatmul.bf16.gmra.mxu0 %v2736
    %v5370 = vpop.f32.mrf.mxu0
    %v5371 = vadd.f32 %v5202, %v5370
    %v5372 = vpop.f32.mrf.mxu0
    %v5373 = vadd.f32 %v5204, %v5372
    %5374 = vmatmul.bf16.gmra.mxu0 %v2740
    %v5375 = vpop.f32.mrf.mxu0
    %v5376 = vadd.f32 %v5207, %v5375
    %v5377 = vpop.f32.mrf.mxu0
    %v5378 = vadd.f32 %v5209, %v5377
    %5379 = vmatmul.bf16.gmra.mxu0 %v2744
    %v5380 = vpop.f32.mrf.mxu0
    %v5381 = vadd.f32 %v5212, %v5380
    %v5382 = vpop.f32.mrf.mxu0
    %v5383 = vadd.f32 %v5214, %v5382
    %5384 = vmatmul.bf16.gmra.mxu0 %v2748
    %v5385 = vpop.f32.mrf.mxu0
    %v5386 = vadd.f32 %v5217, %v5385
    %v5387 = vpop.f32.mrf.mxu0
    %v5388 = vadd.f32 %v5219, %v5387
    %5389 = vmatmul.bf16.gmra.mxu0 %v2752
    %v5390 = vpop.f32.mrf.mxu0
    %v5391 = vadd.f32 %v5222, %v5390
    %v5392 = vpop.f32.mrf.mxu0
    %v5393 = vadd.f32 %v5224, %v5392
    %5394 = vmatmul.bf16.gmra.mxu0 %v2756
    %v5395 = vpop.f32.mrf.mxu0
    %v5396 = vadd.f32 %v5227, %v5395
    %v5397 = vpop.f32.mrf.mxu0
    %v5398 = vadd.f32 %v5229, %v5397
    %5399 = vmatmul.bf16.gmra.mxu0 %v2760
    %v5400 = vpop.f32.mrf.mxu0
    %v5401 = vadd.f32 %v5232, %v5400
    %v5402 = vpop.f32.mrf.mxu0
    %v5403 = vadd.f32 %v5234, %v5402
    %5404 = vmatmul.bf16.gmra.mxu0 %v2764
    %v5405 = vpop.f32.mrf.mxu0
    %v5406 = vadd.f32 %v5237, %v5405
    %v5407 = vpop.f32.mrf.mxu0
    %v5408 = vadd.f32 %v5239, %v5407
    %5409 = vmatmul.bf16.gmra.mxu0 %v2768
    %v5410 = vpop.f32.mrf.mxu0
    %v5411 = vadd.f32 %v5242, %v5410
    %v5412 = vpop.f32.mrf.mxu0
    %v5413 = vadd.f32 %v5244, %v5412
    %5414 = vmatmul.bf16.gmra.mxu0 %v2772
    %v5415 = vpop.f32.mrf.mxu0
    %v5416 = vadd.f32 %v5247, %v5415
    %v5417 = vpop.f32.mrf.mxu0
    %v5418 = vadd.f32 %v5249, %v5417
    %5419 = vmatmul.bf16.gmra.mxu0 %v2776
    %v5420 = vpop.f32.mrf.mxu0
    %v5421 = vadd.f32 %v5252, %v5420
    %v5422 = vpop.f32.mrf.mxu0
    %v5423 = vadd.f32 %v5254, %v5422
    %5424 = vmatmul.bf16.gmra.mxu0 %v2780
    %v5425 = vpop.f32.mrf.mxu0
    %v5426 = vadd.f32 %v5257, %v5425
    %v5427 = vpop.f32.mrf.mxu0
    %v5428 = vadd.f32 %v5259, %v5427
    %5429 = vmatmul.bf16.gmra.mxu0 %v2784
    %v5430 = vpop.f32.mrf.mxu0
    %v5431 = vadd.f32 %v5262, %v5430
    %v5432 = vpop.f32.mrf.mxu0
    %v5433 = vadd.f32 %v5264, %v5432
    %5434 = vmatmul.bf16.gmra.mxu0 %v2788
    %v5435 = vpop.f32.mrf.mxu0
    %v5436 = vadd.f32 %v5267, %v5435
    %v5437 = vpop.f32.mrf.mxu0
    %v5438 = vadd.f32 %v5269, %v5437
    %5439 = vmatmul.bf16.gmra.mxu0 %v2792
    %v5440 = vpop.f32.mrf.mxu0
    %v5441 = vadd.f32 %v5272, %v5440
    %v5442 = vpop.f32.mrf.mxu0
    %v5443 = vadd.f32 %v5274, %v5442
    %5444 = vmatmul.bf16.gmra.mxu0 %v2796
    %v5445 = vpop.f32.mrf.mxu0
    %v5446 = vadd.f32 %v5277, %v5445
    %v5447 = vpop.f32.mrf.mxu0
    %v5448 = vadd.f32 %v5279, %v5447
    %5449 = vmatmul.bf16.gmra.mxu0 %v2800
    %v5450 = vpop.f32.mrf.mxu0
    %v5451 = vadd.f32 %v5282, %v5450
    %v5452 = vpop.f32.mrf.mxu0
    %v5453 = vadd.f32 %v5284, %v5452
    %5454 = vmatmul.bf16.gmra.mxu0 %v2804
    %v5455 = vpop.f32.mrf.mxu0
    %v5456 = vadd.f32 %v5287, %v5455
    %v5457 = vpop.f32.mrf.mxu0
    %v5458 = vadd.f32 %v5289, %v5457
    %5459 = vmatmul.bf16.gmra.mxu0 %v2808
    %v5460 = vpop.f32.mrf.mxu0
    %v5461 = vadd.f32 %v5292, %v5460
    %v5462 = vpop.f32.mrf.mxu0
    %v5463 = vadd.f32 %v5294, %v5462
    %5464 = vmatmul.bf16.gmra.mxu0 %v2812
    %v5465 = vpop.f32.mrf.mxu0
    %v5466 = vadd.f32 %v5297, %v5465
    %v5467 = vpop.f32.mrf.mxu0
    %v5468 = vadd.f32 %v5299, %v5467
    %5469 = vmatmul.bf16.gmra.mxu0 %v2816
    %v5470 = vpop.f32.mrf.mxu0
    %v5471 = vadd.f32 %v5302, %v5470
    %v5472 = vpop.f32.mrf.mxu0
    %v5473 = vadd.f32 %v5304, %v5472
    %5474 = vmatmul.bf16.gmra.mxu0 %v2820
    %v5475 = vpop.f32.mrf.mxu0
    %v5476 = vadd.f32 %v5307, %v5475
    %v5477 = vpop.f32.mrf.mxu0
    %v5478 = vadd.f32 %v5309, %v5477
    %5479 = vmatmul.bf16.gmra.mxu0 %v2824
    %v5480 = vpop.f32.mrf.mxu0
    %v5481 = vadd.f32 %v5312, %v5480
    %v5482 = vpop.f32.mrf.mxu0
    %v5483 = vadd.f32 %v5314, %v5482
    %5484 = vmatmul.bf16.gmra.mxu0 %v2828
    %v5485 = vpop.f32.mrf.mxu0
    %v5486 = vadd.f32 %v5317, %v5485
    %v5487 = vpop.f32.mrf.mxu0
    %v5488 = vadd.f32 %v5319, %v5487
    %5489 = vmatmul.bf16.gmra.mxu0 %v2832
    %v5490 = vpop.f32.mrf.mxu0
    %v5491 = vadd.f32 %v5322, %v5490
    %v5492 = vpop.f32.mrf.mxu0
    %v5493 = vadd.f32 %v5324, %v5492
    %5494 = vmatmul.bf16.gmra.mxu0 %v2836
    %v5495 = vpop.f32.mrf.mxu0
    %v5496 = vadd.f32 %v5327, %v5495
    %v5497 = vpop.f32.mrf.mxu0
    %v5498 = vadd.f32 %v5329, %v5497
    %5499 = vmatmul.bf16.gmra.mxu0 %v2840
    %v5500 = vpop.f32.mrf.mxu0
    %v5501 = vadd.f32 %v5332, %v5500
    %v5502 = vpop.f32.mrf.mxu0
    %v5503 = vadd.f32 %v5334, %v5502
    %5504 = vdwg.mxu0
    %5505 = vmatpush.bf16.msra.mxu0 %v1945
    %5506 = vmatpush.bf16.msra.mxu0 %v1941
    %5507 = vmatpush.bf16.msra.mxu0 %v1937
    %5508 = vmatpush.bf16.msra.mxu0 %v1933
    %5509 = vmatpush.bf16.msra.mxu0 %v1929
    %5510 = vmatpush.bf16.msra.mxu0 %v1925
    %5511 = vmatpush.bf16.msra.mxu0 %v1921
    %5512 = vmatpush.bf16.msra.mxu0 %v1917
    %5513 = vmatmul.bf16.gmra.mxu0 %v2717
    %v5514 = vpop.f32.mrf.mxu0
    %v5515 = vadd.f32 %v5346, %v5514
    %v5516 = vpop.f32.mrf.mxu0
    %v5517 = vadd.f32 %v5348, %v5516
    %5518 = vmatmul.bf16.gmra.mxu0 %v2721
    %v5519 = vpop.f32.mrf.mxu0
    %v5520 = vadd.f32 %v5351, %v5519
    %v5521 = vpop.f32.mrf.mxu0
    %v5522 = vadd.f32 %v5353, %v5521
    %5523 = vmatmul.bf16.gmra.mxu0 %v2725
    %v5524 = vpop.f32.mrf.mxu0
    %v5525 = vadd.f32 %v5356, %v5524
    %v5526 = vpop.f32.mrf.mxu0
    %v5527 = vadd.f32 %v5358, %v5526
    %5528 = vmatmul.bf16.gmra.mxu0 %v2729
    %v5529 = vpop.f32.mrf.mxu0
    %v5530 = vadd.f32 %v5361, %v5529
    %v5531 = vpop.f32.mrf.mxu0
    %v5532 = vadd.f32 %v5363, %v5531
    %5533 = vmatmul.bf16.gmra.mxu0 %v2733
    %v5534 = vpop.f32.mrf.mxu0
    %v5535 = vadd.f32 %v5366, %v5534
    %v5536 = vpop.f32.mrf.mxu0
    %v5537 = vadd.f32 %v5368, %v5536
    %5538 = vmatmul.bf16.gmra.mxu0 %v2737
    %v5539 = vpop.f32.mrf.mxu0
    %v5540 = vadd.f32 %v5371, %v5539
    %v5541 = vpop.f32.mrf.mxu0
    %v5542 = vadd.f32 %v5373, %v5541
    %5543 = vmatmul.bf16.gmra.mxu0 %v2741
    %v5544 = vpop.f32.mrf.mxu0
    %v5545 = vadd.f32 %v5376, %v5544
    %v5546 = vpop.f32.mrf.mxu0
    %v5547 = vadd.f32 %v5378, %v5546
    %5548 = vmatmul.bf16.gmra.mxu0 %v2745
    %v5549 = vpop.f32.mrf.mxu0
    %v5550 = vadd.f32 %v5381, %v5549
    %v5551 = vpop.f32.mrf.mxu0
    %v5552 = vadd.f32 %v5383, %v5551
    %5553 = vmatmul.bf16.gmra.mxu0 %v2749
    %v5554 = vpop.f32.mrf.mxu0
    %v5555 = vadd.f32 %v5386, %v5554
    %v5556 = vpop.f32.mrf.mxu0
    %v5557 = vadd.f32 %v5388, %v5556
    %5558 = vmatmul.bf16.gmra.mxu0 %v2753
    %v5559 = vpop.f32.mrf.mxu0
    %v5560 = vadd.f32 %v5391, %v5559
    %v5561 = vpop.f32.mrf.mxu0
    %v5562 = vadd.f32 %v5393, %v5561
    %5563 = vmatmul.bf16.gmra.mxu0 %v2757
    %v5564 = vpop.f32.mrf.mxu0
    %v5565 = vadd.f32 %v5396, %v5564
    %v5566 = vpop.f32.mrf.mxu0
    %v5567 = vadd.f32 %v5398, %v5566
    %5568 = vmatmul.bf16.gmra.mxu0 %v2761
    %v5569 = vpop.f32.mrf.mxu0
    %v5570 = vadd.f32 %v5401, %v5569
    %v5571 = vpop.f32.mrf.mxu0
    %v5572 = vadd.f32 %v5403, %v5571
    %5573 = vmatmul.bf16.gmra.mxu0 %v2765
    %v5574 = vpop.f32.mrf.mxu0
    %v5575 = vadd.f32 %v5406, %v5574
    %v5576 = vpop.f32.mrf.mxu0
    %v5577 = vadd.f32 %v5408, %v5576
    %5578 = vmatmul.bf16.gmra.mxu0 %v2769
    %v5579 = vpop.f32.mrf.mxu0
    %v5580 = vadd.f32 %v5411, %v5579
    %v5581 = vpop.f32.mrf.mxu0
    %v5582 = vadd.f32 %v5413, %v5581
    %5583 = vmatmul.bf16.gmra.mxu0 %v2773
    %v5584 = vpop.f32.mrf.mxu0
    %v5585 = vadd.f32 %v5416, %v5584
    %v5586 = vpop.f32.mrf.mxu0
    %v5587 = vadd.f32 %v5418, %v5586
    %5588 = vmatmul.bf16.gmra.mxu0 %v2777
    %v5589 = vpop.f32.mrf.mxu0
    %v5590 = vadd.f32 %v5421, %v5589
    %v5591 = vpop.f32.mrf.mxu0
    %v5592 = vadd.f32 %v5423, %v5591
    %5593 = vmatmul.bf16.gmra.mxu0 %v2781
    %v5594 = vpop.f32.mrf.mxu0
    %v5595 = vadd.f32 %v5426, %v5594
    %v5596 = vpop.f32.mrf.mxu0
    %v5597 = vadd.f32 %v5428, %v5596
    %5598 = vmatmul.bf16.gmra.mxu0 %v2785
    %v5599 = vpop.f32.mrf.mxu0
    %v5600 = vadd.f32 %v5431, %v5599
    %v5601 = vpop.f32.mrf.mxu0
    %v5602 = vadd.f32 %v5433, %v5601
    %5603 = vmatmul.bf16.gmra.mxu0 %v2789
    %v5604 = vpop.f32.mrf.mxu0
    %v5605 = vadd.f32 %v5436, %v5604
    %v5606 = vpop.f32.mrf.mxu0
    %v5607 = vadd.f32 %v5438, %v5606
    %5608 = vmatmul.bf16.gmra.mxu0 %v2793
    %v5609 = vpop.f32.mrf.mxu0
    %v5610 = vadd.f32 %v5441, %v5609
    %v5611 = vpop.f32.mrf.mxu0
    %v5612 = vadd.f32 %v5443, %v5611
    %5613 = vmatmul.bf16.gmra.mxu0 %v2797
    %v5614 = vpop.f32.mrf.mxu0
    %v5615 = vadd.f32 %v5446, %v5614
    %v5616 = vpop.f32.mrf.mxu0
    %v5617 = vadd.f32 %v5448, %v5616
    %5618 = vmatmul.bf16.gmra.mxu0 %v2801
    %v5619 = vpop.f32.mrf.mxu0
    %v5620 = vadd.f32 %v5451, %v5619
    %v5621 = vpop.f32.mrf.mxu0
    %v5622 = vadd.f32 %v5453, %v5621
    %5623 = vmatmul.bf16.gmra.mxu0 %v2805
    %v5624 = vpop.f32.mrf.mxu0
    %v5625 = vadd.f32 %v5456, %v5624
    %v5626 = vpop.f32.mrf.mxu0
    %v5627 = vadd.f32 %v5458, %v5626
    %5628 = vmatmul.bf16.gmra.mxu0 %v2809
    %v5629 = vpop.f32.mrf.mxu0
    %v5630 = vadd.f32 %v5461, %v5629
    %v5631 = vpop.f32.mrf.mxu0
    %v5632 = vadd.f32 %v5463, %v5631
    %5633 = vmatmul.bf16.gmra.mxu0 %v2813
    %v5634 = vpop.f32.mrf.mxu0
    %v5635 = vadd.f32 %v5466, %v5634
    %v5636 = vpop.f32.mrf.mxu0
    %v5637 = vadd.f32 %v5468, %v5636
    %5638 = vmatmul.bf16.gmra.mxu0 %v2817
    %v5639 = vpop.f32.mrf.mxu0
    %v5640 = vadd.f32 %v5471, %v5639
    %v5641 = vpop.f32.mrf.mxu0
    %v5642 = vadd.f32 %v5473, %v5641
    %5643 = vmatmul.bf16.gmra.mxu0 %v2821
    %v5644 = vpop.f32.mrf.mxu0
    %v5645 = vadd.f32 %v5476, %v5644
    %v5646 = vpop.f32.mrf.mxu0
    %v5647 = vadd.f32 %v5478, %v5646
    %5648 = vmatmul.bf16.gmra.mxu0 %v2825
    %v5649 = vpop.f32.mrf.mxu0
    %v5650 = vadd.f32 %v5481, %v5649
    %v5651 = vpop.f32.mrf.mxu0
    %v5652 = vadd.f32 %v5483, %v5651
    %5653 = vmatmul.bf16.gmra.mxu0 %v2829
    %v5654 = vpop.f32.mrf.mxu0
    %v5655 = vadd.f32 %v5486, %v5654
    %v5656 = vpop.f32.mrf.mxu0
    %v5657 = vadd.f32 %v5488, %v5656
    %5658 = vmatmul.bf16.gmra.mxu0 %v2833
    %v5659 = vpop.f32.mrf.mxu0
    %v5660 = vadd.f32 %v5491, %v5659
    %v5661 = vpop.f32.mrf.mxu0
    %v5662 = vadd.f32 %v5493, %v5661
    %5663 = vmatmul.bf16.gmra.mxu0 %v2837
    %v5664 = vpop.f32.mrf.mxu0
    %v5665 = vadd.f32 %v5496, %v5664
    %v5666 = vpop.f32.mrf.mxu0
    %v5667 = vadd.f32 %v5498, %v5666
    %5668 = vmatmul.bf16.gmra.mxu0 %v2841
    %v5669 = vpop.f32.mrf.mxu0
    %v5670 = vadd.f32 %v5501, %v5669
    %v5671 = vpop.f32.mrf.mxu0
    %v5672 = vadd.f32 %v5503, %v5671
    %5673 = vdwg.mxu0
    %v5674 = vmax.f32 %v3487, 0.0
    %v5675 = vmax.f32 %v4163, 0.0
    %v5676 = vmax.f32 %v4839, 0.0
    %v5677 = vmax.f32 %v5515, 0.0
    %v5678 = vmax.f32 %v3489, 0.0
    %v5679 = vmax.f32 %v4165, 0.0
    %v5680 = vmax.f32 %v4841, 0.0
    %v5681 = vmax.f32 %v5517, 0.0
    %v5682 = vmax.f32 %v3492, 0.0
    %v5683 = vmax.f32 %v4168, 0.0
    %v5684 = vmax.f32 %v4844, 0.0
    %v5685 = vmax.f32 %v5520, 0.0
    %v5686 = vmax.f32 %v3494, 0.0
    %v5687 = vmax.f32 %v4170, 0.0
    %v5688 = vmax.f32 %v4846, 0.0
    %v5689 = vmax.f32 %v5522, 0.0
    %v5690 = vmax.f32 %v3497, 0.0
    %v5691 = vmax.f32 %v4173, 0.0
    %v5692 = vmax.f32 %v4849, 0.0
    %v5693 = vmax.f32 %v5525, 0.0
    %v5694 = vmax.f32 %v3499, 0.0
    %v5695 = vmax.f32 %v4175, 0.0
    %v5696 = vmax.f32 %v4851, 0.0
    %v5697 = vmax.f32 %v5527, 0.0
    %v5698 = vmax.f32 %v3502, 0.0
    %v5699 = vmax.f32 %v4178, 0.0
    %v5700 = vmax.f32 %v4854, 0.0
    %v5701 = vmax.f32 %v5530, 0.0
    %v5702 = vmax.f32 %v3504, 0.0
    %v5703 = vmax.f32 %v4180, 0.0
    %v5704 = vmax.f32 %v4856, 0.0
    %v5705 = vmax.f32 %v5532, 0.0
    %v5706 = vmax.f32 %v3507, 0.0
    %v5707 = vmax.f32 %v4183, 0.0
    %v5708 = vmax.f32 %v4859, 0.0
    %v5709 = vmax.f32 %v5535, 0.0
    %v5710 = vmax.f32 %v3509, 0.0
    %v5711 = vmax.f32 %v4185, 0.0
    %v5712 = vmax.f32 %v4861, 0.0
    %v5713 = vmax.f32 %v5537, 0.0
    %v5714 = vmax.f32 %v3512, 0.0
    %v5715 = vmax.f32 %v4188, 0.0
    %v5716 = vmax.f32 %v4864, 0.0
    %v5717 = vmax.f32 %v5540, 0.0
    %v5718 = vmax.f32 %v3514, 0.0
    %v5719 = vmax.f32 %v4190, 0.0
    %v5720 = vmax.f32 %v4866, 0.0
    %v5721 = vmax.f32 %v5542, 0.0
    %v5722 = vmax.f32 %v3517, 0.0
    %v5723 = vmax.f32 %v4193, 0.0
    %v5724 = vmax.f32 %v4869, 0.0
    %v5725 = vmax.f32 %v5545, 0.0
    %v5726 = vmax.f32 %v3519, 0.0
    %v5727 = vmax.f32 %v4195, 0.0
    %v5728 = vmax.f32 %v4871, 0.0
    %v5729 = vmax.f32 %v5547, 0.0
    %v5730 = vmax.f32 %v3522, 0.0
    %v5731 = vmax.f32 %v4198, 0.0
    %v5732 = vmax.f32 %v4874, 0.0
    %v5733 = vmax.f32 %v5550, 0.0
    %v5734 = vmax.f32 %v3524, 0.0
    %v5735 = vmax.f32 %v4200, 0.0
    %v5736 = vmax.f32 %v4876, 0.0
    %v5737 = vmax.f32 %v5552, 0.0
    %v5738 = vmax.f32 %v3527, 0.0
    %v5739 = vmax.f32 %v4203, 0.0
    %v5740 = vmax.f32 %v4879, 0.0
    %v5741 = vmax.f32 %v5555, 0.0
    %v5742 = vmax.f32 %v3529, 0.0
    %v5743 = vmax.f32 %v4205, 0.0
    %v5744 = vmax.f32 %v4881, 0.0
    %v5745 = vmax.f32 %v5557, 0.0
    %v5746 = vmax.f32 %v3532, 0.0
    %v5747 = vmax.f32 %v4208, 0.0
    %v5748 = vmax.f32 %v4884, 0.0
    %v5749 = vmax.f32 %v5560, 0.0
    %v5750 = vmax.f32 %v3534, 0.0
    %v5751 = vmax.f32 %v4210, 0.0
    %v5752 = vmax.f32 %v4886, 0.0
    %v5753 = vmax.f32 %v5562, 0.0
    %v5754 = vmax.f32 %v3537, 0.0
    %v5755 = vmax.f32 %v4213, 0.0
    %v5756 = vmax.f32 %v4889, 0.0
    %v5757 = vmax.f32 %v5565, 0.0
    %v5758 = vmax.f32 %v3539, 0.0
    %v5759 = vmax.f32 %v4215, 0.0
    %v5760 = vmax.f32 %v4891, 0.0
    %v5761 = vmax.f32 %v5567, 0.0
    %v5762 = vmax.f32 %v3542, 0.0
    %v5763 = vmax.f32 %v4218, 0.0
    %v5764 = vmax.f32 %v4894, 0.0
    %v5765 = vmax.f32 %v5570, 0.0
    %v5766 = vmax.f32 %v3544, 0.0
    %v5767 = vmax.f32 %v4220, 0.0
    %v5768 = vmax.f32 %v4896, 0.0
    %v5769 = vmax.f32 %v5572, 0.0
    %v5770 = vmax.f32 %v3547, 0.0
    %v5771 = vmax.f32 %v4223, 0.0
    %v5772 = vmax.f32 %v4899, 0.0
    %v5773 = vmax.f32 %v5575, 0.0
    %v5774 = vmax.f32 %v3549, 0.0
    %v5775 = vmax.f32 %v4225, 0.0
    %v5776 = vmax.f32 %v4901, 0.0
    %v5777 = vmax.f32 %v5577, 0.0
    %v5778 = vmax.f32 %v3552, 0.0
    %v5779 = vmax.f32 %v4228, 0.0
    %v5780 = vmax.f32 %v4904, 0.0
    %v5781 = vmax.f32 %v5580, 0.0
    %v5782 = vmax.f32 %v3554, 0.0
    %v5783 = vmax.f32 %v4230, 0.0
    %v5784 = vmax.f32 %v4906, 0.0
    %v5785 = vmax.f32 %v5582, 0.0
    %v5786 = vmax.f32 %v3557, 0.0
    %v5787 = vmax.f32 %v4233, 0.0
    %v5788 = vmax.f32 %v4909, 0.0
    %v5789 = vmax.f32 %v5585, 0.0
    %v5790 = vmax.f32 %v3559, 0.0
    %v5791 = vmax.f32 %v4235, 0.0
    %v5792 = vmax.f32 %v4911, 0.0
    %v5793 = vmax.f32 %v5587, 0.0
    %v5794 = vmax.f32 %v3562, 0.0
    %v5795 = vmax.f32 %v4238, 0.0
    %v5796 = vmax.f32 %v4914, 0.0
    %v5797 = vmax.f32 %v5590, 0.0
    %v5798 = vmax.f32 %v3564, 0.0
    %v5799 = vmax.f32 %v4240, 0.0
    %v5800 = vmax.f32 %v4916, 0.0
    %v5801 = vmax.f32 %v5592, 0.0
    %v5802 = vmax.f32 %v3567, 0.0
    %v5803 = vmax.f32 %v4243, 0.0
    %v5804 = vmax.f32 %v4919, 0.0
    %v5805 = vmax.f32 %v5595, 0.0
    %v5806 = vmax.f32 %v3569, 0.0
    %v5807 = vmax.f32 %v4245, 0.0
    %v5808 = vmax.f32 %v4921, 0.0
    %v5809 = vmax.f32 %v5597, 0.0
    %v5810 = vmax.f32 %v3572, 0.0
    %v5811 = vmax.f32 %v4248, 0.0
    %v5812 = vmax.f32 %v4924, 0.0
    %v5813 = vmax.f32 %v5600, 0.0
    %v5814 = vmax.f32 %v3574, 0.0
    %v5815 = vmax.f32 %v4250, 0.0
    %v5816 = vmax.f32 %v4926, 0.0
    %v5817 = vmax.f32 %v5602, 0.0
    %v5818 = vmax.f32 %v3577, 0.0
    %v5819 = vmax.f32 %v4253, 0.0
    %v5820 = vmax.f32 %v4929, 0.0
    %v5821 = vmax.f32 %v5605, 0.0
    %v5822 = vmax.f32 %v3579, 0.0
    %v5823 = vmax.f32 %v4255, 0.0
    %v5824 = vmax.f32 %v4931, 0.0
    %v5825 = vmax.f32 %v5607, 0.0
    %v5826 = vmax.f32 %v3582, 0.0
    %v5827 = vmax.f32 %v4258, 0.0
    %v5828 = vmax.f32 %v4934, 0.0
    %v5829 = vmax.f32 %v5610, 0.0
    %v5830 = vmax.f32 %v3584, 0.0
    %v5831 = vmax.f32 %v4260, 0.0
    %v5832 = vmax.f32 %v4936, 0.0
    %v5833 = vmax.f32 %v5612, 0.0
    %v5834 = vmax.f32 %v3587, 0.0
    %v5835 = vmax.f32 %v4263, 0.0
    %v5836 = vmax.f32 %v4939, 0.0
    %v5837 = vmax.f32 %v5615, 0.0
    %v5838 = vmax.f32 %v3589, 0.0
    %v5839 = vmax.f32 %v4265, 0.0
    %v5840 = vmax.f32 %v4941, 0.0
    %v5841 = vmax.f32 %v5617, 0.0
    %v5842 = vmax.f32 %v3592, 0.0
    %v5843 = vmax.f32 %v4268, 0.0
    %v5844 = vmax.f32 %v4944, 0.0
    %v5845 = vmax.f32 %v5620, 0.0
    %v5846 = vmax.f32 %v3594, 0.0
    %v5847 = vmax.f32 %v4270, 0.0
    %v5848 = vmax.f32 %v4946, 0.0
    %v5849 = vmax.f32 %v5622, 0.0
    %v5850 = vmax.f32 %v3597, 0.0
    %v5851 = vmax.f32 %v4273, 0.0
    %v5852 = vmax.f32 %v4949, 0.0
    %v5853 = vmax.f32 %v5625, 0.0
    %v5854 = vmax.f32 %v3599, 0.0
    %v5855 = vmax.f32 %v4275, 0.0
    %v5856 = vmax.f32 %v4951, 0.0
    %v5857 = vmax.f32 %v5627, 0.0
    %v5858 = vmax.f32 %v3602, 0.0
    %v5859 = vmax.f32 %v4278, 0.0
    %v5860 = vmax.f32 %v4954, 0.0
    %v5861 = vmax.f32 %v5630, 0.0
    %v5862 = vmax.f32 %v3604, 0.0
    %v5863 = vmax.f32 %v4280, 0.0
    %v5864 = vmax.f32 %v4956, 0.0
    %v5865 = vmax.f32 %v5632, 0.0
    %v5866 = vmax.f32 %v3607, 0.0
    %v5867 = vmax.f32 %v4283, 0.0
    %v5868 = vmax.f32 %v4959, 0.0
    %v5869 = vmax.f32 %v5635, 0.0
    %v5870 = vmax.f32 %v3609, 0.0
    %v5871 = vmax.f32 %v4285, 0.0
    %v5872 = vmax.f32 %v4961, 0.0
    %v5873 = vmax.f32 %v5637, 0.0
    %v5874 = vmax.f32 %v3612, 0.0
    %v5875 = vmax.f32 %v4288, 0.0
    %v5876 = vmax.f32 %v4964, 0.0
    %v5877 = vmax.f32 %v5640, 0.0
    %v5878 = vmax.f32 %v3614, 0.0
    %v5879 = vmax.f32 %v4290, 0.0
    %v5880 = vmax.f32 %v4966, 0.0
    %v5881 = vmax.f32 %v5642, 0.0
    %v5882 = vmax.f32 %v3617, 0.0
    %v5883 = vmax.f32 %v4293, 0.0
    %v5884 = vmax.f32 %v4969, 0.0
    %v5885 = vmax.f32 %v5645, 0.0
    %v5886 = vmax.f32 %v3619, 0.0
    %v5887 = vmax.f32 %v4295, 0.0
    %v5888 = vmax.f32 %v4971, 0.0
    %v5889 = vmax.f32 %v5647, 0.0
    %v5890 = vmax.f32 %v3622, 0.0
    %v5891 = vmax.f32 %v4298, 0.0
    %v5892 = vmax.f32 %v4974, 0.0
    %v5893 = vmax.f32 %v5650, 0.0
    %v5894 = vmax.f32 %v3624, 0.0
    %v5895 = vmax.f32 %v4300, 0.0
    %v5896 = vmax.f32 %v4976, 0.0
    %v5897 = vmax.f32 %v5652, 0.0
    %v5898 = vmax.f32 %v3627, 0.0
    %v5899 = vmax.f32 %v4303, 0.0
    %v5900 = vmax.f32 %v4979, 0.0
    %v5901 = vmax.f32 %v5655, 0.0
    %v5902 = vmax.f32 %v3629, 0.0
    %v5903 = vmax.f32 %v4305, 0.0
    %v5904 = vmax.f32 %v4981, 0.0
    %v5905 = vmax.f32 %v5657, 0.0
    %v5906 = vmax.f32 %v3632, 0.0
    %v5907 = vmax.f32 %v4308, 0.0
    %v5908 = vmax.f32 %v4984, 0.0
    %v5909 = vmax.f32 %v5660, 0.0
    %v5910 = vmax.f32 %v3634, 0.0
    %v5911 = vmax.f32 %v4310, 0.0
    %v5912 = vmax.f32 %v4986, 0.0
    %v5913 = vmax.f32 %v5662, 0.0
    %v5914 = vmax.f32 %v3637, 0.0
    %v5915 = vmax.f32 %v4313, 0.0
    %v5916 = vmax.f32 %v4989, 0.0
    %v5917 = vmax.f32 %v5665, 0.0
    %v5918 = vmax.f32 %v3639, 0.0
    %v5919 = vmax.f32 %v4315, 0.0
    %v5920 = vmax.f32 %v4991, 0.0
    %v5921 = vmax.f32 %v5667, 0.0
    %v5922 = vmax.f32 %v3642, 0.0
    %v5923 = vmax.f32 %v4318, 0.0
    %v5924 = vmax.f32 %v4994, 0.0
    %v5925 = vmax.f32 %v5670, 0.0
    %v5926 = vmax.f32 %v3644, 0.0
    %v5927 = vmax.f32 %v4320, 0.0
    %v5928 = vmax.f32 %v4996, 0.0
    %v5929 = vmax.f32 %v5672, 0.0
    %v5930 = vld [vmem:[%s5] sm:$0xf]
    %v5931 = vpack.c.bf16 %v5678, %v5674
    %v5932 = vpack.c.bf16 %v5679, %v5675
    %v5933 = vpack.c.bf16 %v5680, %v5676
    %v5934 = vpack.c.bf16 %v5681, %v5677
    %v5935 = vpack.c.bf16 %v5686, %v5682
    %v5936 = vpack.c.bf16 %v5687, %v5683
    %v5937 = vpack.c.bf16 %v5688, %v5684
    %v5938 = vpack.c.bf16 %v5689, %v5685
    %v5939 = vpack.c.bf16 %v5694, %v5690
    %v5940 = vpack.c.bf16 %v5695, %v5691
    %v5941 = vpack.c.bf16 %v5696, %v5692
    %v5942 = vpack.c.bf16 %v5697, %v5693
    %v5943 = vpack.c.bf16 %v5702, %v5698
    %v5944 = vpack.c.bf16 %v5703, %v5699
    %v5945 = vpack.c.bf16 %v5704, %v5700
    %v5946 = vpack.c.bf16 %v5705, %v5701
    %v5947 = vpack.c.bf16 %v5710, %v5706
    %v5948 = vpack.c.bf16 %v5711, %v5707
    %v5949 = vpack.c.bf16 %v5712, %v5708
    %v5950 = vpack.c.bf16 %v5713, %v5709
    %v5951 = vpack.c.bf16 %v5718, %v5714
    %v5952 = vpack.c.bf16 %v5719, %v5715
    %v5953 = vpack.c.bf16 %v5720, %v5716
    %v5954 = vpack.c.bf16 %v5721, %v5717
    %v5955 = vpack.c.bf16 %v5726, %v5722
    %v5956 = vpack.c.bf16 %v5727, %v5723
    %v5957 = vpack.c.bf16 %v5728, %v5724
    %v5958 = vpack.c.bf16 %v5729, %v5725
    %v5959 = vpack.c.bf16 %v5734, %v5730
    %v5960 = vpack.c.bf16 %v5735, %v5731
    %v5961 = vpack.c.bf16 %v5736, %v5732
    %v5962 = vpack.c.bf16 %v5737, %v5733
    %v5963 = vpack.c.bf16 %v5742, %v5738
    %v5964 = vpack.c.bf16 %v5743, %v5739
    %v5965 = vpack.c.bf16 %v5744, %v5740
    %v5966 = vpack.c.bf16 %v5745, %v5741
    %v5967 = vpack.c.bf16 %v5750, %v5746
    %v5968 = vpack.c.bf16 %v5751, %v5747
    %v5969 = vpack.c.bf16 %v5752, %v5748
    %v5970 = vpack.c.bf16 %v5753, %v5749
    %v5971 = vpack.c.bf16 %v5758, %v5754
    %v5972 = vpack.c.bf16 %v5759, %v5755
    %v5973 = vpack.c.bf16 %v5760, %v5756
    %v5974 = vpack.c.bf16 %v5761, %v5757
    %v5975 = vpack.c.bf16 %v5766, %v5762
    %v5976 = vpack.c.bf16 %v5767, %v5763
    %v5977 = vpack.c.bf16 %v5768, %v5764
    %v5978 = vpack.c.bf16 %v5769, %v5765
    %v5979 = vpack.c.bf16 %v5774, %v5770
    %v5980 = vpack.c.bf16 %v5775, %v5771
    %v5981 = vpack.c.bf16 %v5776, %v5772
    %v5982 = vpack.c.bf16 %v5777, %v5773
    %v5983 = vpack.c.bf16 %v5782, %v5778
    %v5984 = vpack.c.bf16 %v5783, %v5779
    %v5985 = vpack.c.bf16 %v5784, %v5780
    %v5986 = vpack.c.bf16 %v5785, %v5781
    %v5987 = vpack.c.bf16 %v5790, %v5786
    %v5988 = vpack.c.bf16 %v5791, %v5787
    %v5989 = vpack.c.bf16 %v5792, %v5788
    %v5990 = vpack.c.bf16 %v5793, %v5789
    %v5991 = vpack.c.bf16 %v5798, %v5794
    %v5992 = vpack.c.bf16 %v5799, %v5795
    %v5993 = vpack.c.bf16 %v5800, %v5796
    %v5994 = vpack.c.bf16 %v5801, %v5797
    %v5995 = vpack.c.bf16 %v5806, %v5802
    %v5996 = vpack.c.bf16 %v5807, %v5803
    %v5997 = vpack.c.bf16 %v5808, %v5804
    %v5998 = vpack.c.bf16 %v5809, %v5805
    %v5999 = vpack.c.bf16 %v5814, %v5810
    %v6000 = vpack.c.bf16 %v5815, %v5811
    %v6001 = vpack.c.bf16 %v5816, %v5812
    %v6002 = vpack.c.bf16 %v5817, %v5813
    %v6003 = vpack.c.bf16 %v5822, %v5818
    %v6004 = vpack.c.bf16 %v5823, %v5819
    %v6005 = vpack.c.bf16 %v5824, %v5820
    %v6006 = vpack.c.bf16 %v5825, %v5821
    %v6007 = vpack.c.bf16 %v5830, %v5826
    %v6008 = vpack.c.bf16 %v5831, %v5827
    %v6009 = vpack.c.bf16 %v5832, %v5828
    %v6010 = vpack.c.bf16 %v5833, %v5829
    %v6011 = vpack.c.bf16 %v5838, %v5834
    %v6012 = vpack.c.bf16 %v5839, %v5835
    %v6013 = vpack.c.bf16 %v5840, %v5836
    %v6014 = vpack.c.bf16 %v5841, %v5837
    %v6015 = vpack.c.bf16 %v5846, %v5842
    %v6016 = vpack.c.bf16 %v5847, %v5843
    %v6017 = vpack.c.bf16 %v5848, %v5844
    %v6018 = vpack.c.bf16 %v5849, %v5845
    %v6019 = vpack.c.bf16 %v5854, %v5850
    %v6020 = vpack.c.bf16 %v5855, %v5851
    %v6021 = vpack.c.bf16 %v5856, %v5852
    %v6022 = vpack.c.bf16 %v5857, %v5853
    %v6023 = vpack.c.bf16 %v5862, %v5858
    %v6024 = vpack.c.bf16 %v5863, %v5859
    %v6025 = vpack.c.bf16 %v5864, %v5860
    %v6026 = vpack.c.bf16 %v5865, %v5861
    %v6027 = vpack.c.bf16 %v5870, %v5866
    %v6028 = vpack.c.bf16 %v5871, %v5867
    %v6029 = vpack.c.bf16 %v5872, %v5868
    %v6030 = vpack.c.bf16 %v5873, %v5869
    %v6031 = vpack.c.bf16 %v5878, %v5874
    %v6032 = vpack.c.bf16 %v5879, %v5875
    %v6033 = vpack.c.bf16 %v5880, %v5876
    %v6034 = vpack.c.bf16 %v5881, %v5877
    %v6035 = vpack.c.bf16 %v5886, %v5882
    %v6036 = vpack.c.bf16 %v5887, %v5883
    %v6037 = vpack.c.bf16 %v5888, %v5884
    %v6038 = vpack.c.bf16 %v5889, %v5885
    %v6039 = vpack.c.bf16 %v5894, %v5890
    %v6040 = vpack.c.bf16 %v5895, %v5891
    %v6041 = vpack.c.bf16 %v5896, %v5892
    %v6042 = vpack.c.bf16 %v5897, %v5893
    %v6043 = vpack.c.bf16 %v5902, %v5898
    %v6044 = vpack.c.bf16 %v5903, %v5899
    %v6045 = vpack.c.bf16 %v5904, %v5900
    %v6046 = vpack.c.bf16 %v5905, %v5901
    %v6047 = vpack.c.bf16 %v5910, %v5906
    %v6048 = vpack.c.bf16 %v5911, %v5907
    %v6049 = vpack.c.bf16 %v5912, %v5908
    %v6050 = vpack.c.bf16 %v5913, %v5909
    %v6051 = vpack.c.bf16 %v5918, %v5914
    %v6052 = vpack.c.bf16 %v5919, %v5915
    %v6053 = vpack.c.bf16 %v5920, %v5916
    %v6054 = vpack.c.bf16 %v5921, %v5917
    %v6055 = vpack.c.bf16 %v5926, %v5922
    %v6056 = vpack.c.bf16 %v5927, %v5923
    %v6057 = vpack.c.bf16 %v5928, %v5924
    %v6058 = vpack.c.bf16 %v5929, %v5925
    %s6059 = sld [smem:[#allocation2]]
    %v6060 = vstv %s6059
    %6062 = vst [vmem:[#allocation1] ss:$9 sm:$0xff] %v5930
    %v6063 = vld [vmem:[#allocation1] sm:$0xff]
    %v6064 = vld [vmem:[#allocation1 + $0x9] sm:$0xff]
    %v6065 = vld [vmem:[#allocation1 + $0x12] sm:$0xff]
    %v6066 = vld [vmem:[#allocation1 + $0x1b] sm:$0xff]
    %6071 = vmatpush.bf16.msra.mxu0 %v5959
    %6072 = vmatpush.bf16.msra.mxu0 %v5955
    %6073 = vmatpush.bf16.msra.mxu0 %v5951
    %6074 = vmatpush.bf16.msra.mxu0 %v5947
    %6075 = vmatpush.bf16.msra.mxu0 %v5943
    %6076 = vmatpush.bf16.msra.mxu0 %v5939
    %6077 = vmatpush.bf16.msra.mxu0 %v5935
    %6078 = vmatpush.bf16.msra.mxu0 %v5931
    %6079 = vmatmul.bf16.gmra.mxu0 %v6063
    %v6080 = vpop.f32.mrf.mxu0
    %v6081 = vadd.f32 %v6060, %v6080
    %v6082 = vpop.f32.mrf.mxu0
    %6083 = vdwg.mxu0
    %6084 = vmatpush.bf16.msra.mxu0 %v5991
    %6085 = vmatpush.bf16.msra.mxu0 %v5987
    %6086 = vmatpush.bf16.msra.mxu0 %v5983
    %6087 = vmatpush.bf16.msra.mxu0 %v5979
    %6088 = vmatpush.bf16.msra.mxu0 %v5975
    %6089 = vmatpush.bf16.msra.mxu0 %v5971
    %6090 = vmatpush.bf16.msra.mxu0 %v5967
    %6091 = vmatpush.bf16.msra.mxu0 %v5963
    %6092 = vmatmul.bf16.gmra.mxu0 %v6064
    %v6093 = vpop.f32.mrf.mxu0
    %v6094 = vadd.f32 %v6081, %v6093
    %v6095 = vpop.f32.mrf.mxu0
    %6096 = vdwg.mxu0
    %6097 = vmatpush.bf16.msra.mxu0 %v6023
    %6098 = vmatpush.bf16.msra.mxu0 %v6019
    %6099 = vmatpush.bf16.msra.mxu0 %v6015
    %6100 = vmatpush.bf16.msra.mxu0 %v6011
    %6101 = vmatpush.bf16.msra.mxu0 %v6007
    %6102 = vmatpush.bf16.msra.mxu0 %v6003
    %6103 = vmatpush.bf16.msra.mxu0 %v5999
    %6104 = vmatpush.bf16.msra.mxu0 %v5995
    %6105 = vmatmul.bf16.gmra.mxu0 %v6065
    %v6106 = vpop.f32.mrf.mxu0
    %v6107 = vadd.f32 %v6094, %v6106
    %v6108 = vpop.f32.mrf.mxu0
    %6109 = vdwg.mxu0
    %6110 = vmatpush.bf16.msra.mxu0 %v6055
    %6111 = vmatpush.bf16.msra.mxu0 %v6051
    %6112 = vmatpush.bf16.msra.mxu0 %v6047
    %6113 = vmatpush.bf16.msra.mxu0 %v6043
    %6114 = vmatpush.bf16.msra.mxu0 %v6039
    %6115 = vmatpush.bf16.msra.mxu0 %v6035
    %6116 = vmatpush.bf16.msra.mxu0 %v6031
    %6117 = vmatpush.bf16.msra.mxu0 %v6027
    %6118 = vmatmul.bf16.gmra.mxu0 %v6066
    %v6119 = vpop.f32.mrf.mxu0
    %v6120 = vadd.f32 %v6107, %v6119
    %v6121 = vpop.f32.mrf.mxu0
    %6122 = vdwg.mxu0
    %6123 = vmatpush.bf16.msra.mxu0 %v5960
    %6124 = vmatpush.bf16.msra.mxu0 %v5956
    %6125 = vmatpush.bf16.msra.mxu0 %v5952
    %6126 = vmatpush.bf16.msra.mxu0 %v5948
    %6127 = vmatpush.bf16.msra.mxu0 %v5944
    %6128 = vmatpush.bf16.msra.mxu0 %v5940
    %6129 = vmatpush.bf16.msra.mxu0 %v5936
    %6130 = vmatpush.bf16.msra.mxu0 %v5932
    %6131 = vmatmul.bf16.gmra.mxu0 %v6063
    %v6132 = vpop.f32.mrf.mxu0
    %v6133 = vadd.f32 %v6060, %v6132
    %v6134 = vpop.f32.mrf.mxu0
    %6135 = vdwg.mxu0
    %6136 = vmatpush.bf16.msra.mxu0 %v5992
    %6137 = vmatpush.bf16.msra.mxu0 %v5988
    %6138 = vmatpush.bf16.msra.mxu0 %v5984
    %6139 = vmatpush.bf16.msra.mxu0 %v5980
    %6140 = vmatpush.bf16.msra.mxu0 %v5976
    %6141 = vmatpush.bf16.msra.mxu0 %v5972
    %6142 = vmatpush.bf16.msra.mxu0 %v5968
    %6143 = vmatpush.bf16.msra.mxu0 %v5964
    %6144 = vmatmul.bf16.gmra.mxu0 %v6064
    %v6145 = vpop.f32.mrf.mxu0
    %v6146 = vadd.f32 %v6133, %v6145
    %v6147 = vpop.f32.mrf.mxu0
    %6148 = vdwg.mxu0
    %6149 = vmatpush.bf16.msra.mxu0 %v6024
    %6150 = vmatpush.bf16.msra.mxu0 %v6020
    %6151 = vmatpush.bf16.msra.mxu0 %v6016
    %6152 = vmatpush.bf16.msra.mxu0 %v6012
    %6153 = vmatpush.bf16.msra.mxu0 %v6008
    %6154 = vmatpush.bf16.msra.mxu0 %v6004
    %6155 = vmatpush.bf16.msra.mxu0 %v6000
    %6156 = vmatpush.bf16.msra.mxu0 %v5996
    %6157 = vmatmul.bf16.gmra.mxu0 %v6065
    %v6158 = vpop.f32.mrf.mxu0
    %v6159 = vadd.f32 %v6146, %v6158
    %v6160 = vpop.f32.mrf.mxu0
    %6161 = vdwg.mxu0
    %6162 = vmatpush.bf16.msra.mxu0 %v6056
    %6163 = vmatpush.bf16.msra.mxu0 %v6052
    %6164 = vmatpush.bf16.msra.mxu0 %v6048
    %6165 = vmatpush.bf16.msra.mxu0 %v6044
    %6166 = vmatpush.bf16.msra.mxu0 %v6040
    %6167 = vmatpush.bf16.msra.mxu0 %v6036
    %6168 = vmatpush.bf16.msra.mxu0 %v6032
    %6169 = vmatpush.bf16.msra.mxu0 %v6028
    %6170 = vmatmul.bf16.gmra.mxu0 %v6066
    %v6171 = vpop.f32.mrf.mxu0
    %v6172 = vadd.f32 %v6159, %v6171
    %v6173 = vpop.f32.mrf.mxu0
    %6174 = vdwg.mxu0
    %6175 = vmatpush.bf16.msra.mxu0 %v5961
    %6176 = vmatpush.bf16.msra.mxu0 %v5957
    %6177 = vmatpush.bf16.msra.mxu0 %v5953
    %6178 = vmatpush.bf16.msra.mxu0 %v5949
    %6179 = vmatpush.bf16.msra.mxu0 %v5945
    %6180 = vmatpush.bf16.msra.mxu0 %v5941
    %6181 = vmatpush.bf16.msra.mxu0 %v5937
    %6182 = vmatpush.bf16.msra.mxu0 %v5933
    %6183 = vmatmul.bf16.gmra.mxu0 %v6063
    %v6184 = vpop.f32.mrf.mxu0
    %v6185 = vadd.f32 %v6060, %v6184
    %v6186 = vpop.f32.mrf.mxu0
    %6187 = vdwg.mxu0
    %6188 = vmatpush.bf16.msra.mxu0 %v5993
    %6189 = vmatpush.bf16.msra.mxu0 %v5989
    %6190 = vmatpush.bf16.msra.mxu0 %v5985
    %6191 = vmatpush.bf16.msra.mxu0 %v5981
    %6192 = vmatpush.bf16.msra.mxu0 %v5977
    %6193 = vmatpush.bf16.msra.mxu0 %v5973
    %6194 = vmatpush.bf16.msra.mxu0 %v5969
    %6195 = vmatpush.bf16.msra.mxu0 %v5965
    %6196 = vmatmul.bf16.gmra.mxu0 %v6064
    %v6197 = vpop.f32.mrf.mxu0
    %v6198 = vadd.f32 %v6185, %v6197
    %v6199 = vpop.f32.mrf.mxu0
    %6200 = vdwg.mxu0
    %6201 = vmatpush.bf16.msra.mxu0 %v6025
    %6202 = vmatpush.bf16.msra.mxu0 %v6021
    %6203 = vmatpush.bf16.msra.mxu0 %v6017
    %6204 = vmatpush.bf16.msra.mxu0 %v6013
    %6205 = vmatpush.bf16.msra.mxu0 %v6009
    %6206 = vmatpush.bf16.msra.mxu0 %v6005
    %6207 = vmatpush.bf16.msra.mxu0 %v6001
    %6208 = vmatpush.bf16.msra.mxu0 %v5997
    %6209 = vmatmul.bf16.gmra.mxu0 %v6065
    %v6210 = vpop.f32.mrf.mxu0
    %v6211 = vadd.f32 %v6198, %v6210
    %v6212 = vpop.f32.mrf.mxu0
    %6213 = vdwg.mxu0
    %6214 = vmatpush.bf16.msra.mxu0 %v6057
    %6215 = vmatpush.bf16.msra.mxu0 %v6053
    %6216 = vmatpush.bf16.msra.mxu0 %v6049
    %6217 = vmatpush.bf16.msra.mxu0 %v6045
    %6218 = vmatpush.bf16.msra.mxu0 %v6041
    %6219 = vmatpush.bf16.msra.mxu0 %v6037
    %6220 = vmatpush.bf16.msra.mxu0 %v6033
    %6221 = vmatpush.bf16.msra.mxu0 %v6029
    %6222 = vmatmul.bf16.gmra.mxu0 %v6066
    %v6223 = vpop.f32.mrf.mxu0
    %v6224 = vadd.f32 %v6211, %v6223
    %v6225 = vpop.f32.mrf.mxu0
    %6226 = vdwg.mxu0
    %6227 = vmatpush.bf16.msra.mxu0 %v5962
    %6228 = vmatpush.bf16.msra.mxu0 %v5958
    %6229 = vmatpush.bf16.msra.mxu0 %v5954
    %6230 = vmatpush.bf16.msra.mxu0 %v5950
    %6231 = vmatpush.bf16.msra.mxu0 %v5946
    %6232 = vmatpush.bf16.msra.mxu0 %v5942
    %6233 = vmatpush.bf16.msra.mxu0 %v5938
    %6234 = vmatpush.bf16.msra.mxu0 %v5934
    %6235 = vmatmul.bf16.gmra.mxu0 %v6063
    %v6236 = vpop.f32.mrf.mxu0
    %v6237 = vadd.f32 %v6060, %v6236
    %v6238 = vpop.f32.mrf.mxu0
    %6239 = vdwg.mxu0
    %6240 = vmatpush.bf16.msra.mxu0 %v5994
    %6241 = vmatpush.bf16.msra.mxu0 %v5990
    %6242 = vmatpush.bf16.msra.mxu0 %v5986
    %6243 = vmatpush.bf16.msra.mxu0 %v5982
    %6244 = vmatpush.bf16.msra.mxu0 %v5978
    %6245 = vmatpush.bf16.msra.mxu0 %v5974
    %6246 = vmatpush.bf16.msra.mxu0 %v5970
    %6247 = vmatpush.bf16.msra.mxu0 %v5966
    %6248 = vmatmul.bf16.gmra.mxu0 %v6064
    %v6249 = vpop.f32.mrf.mxu0
    %v6250 = vadd.f32 %v6237, %v6249
    %v6251 = vpop.f32.mrf.mxu0
    %6252 = vdwg.mxu0
    %6253 = vmatpush.bf16.msra.mxu0 %v6026
    %6254 = vmatpush.bf16.msra.mxu0 %v6022
    %6255 = vmatpush.bf16.msra.mxu0 %v6018
    %6256 = vmatpush.bf16.msra.mxu0 %v6014
    %6257 = vmatpush.bf16.msra.mxu0 %v6010
    %6258 = vmatpush.bf16.msra.mxu0 %v6006
    %6259 = vmatpush.bf16.msra.mxu0 %v6002
    %6260 = vmatpush.bf16.msra.mxu0 %v5998
    %6261 = vmatmul.bf16.gmra.mxu0 %v6065
    %v6262 = vpop.f32.mrf.mxu0
    %v6263 = vadd.f32 %v6250, %v6262
    %v6264 = vpop.f32.mrf.mxu0
    %6265 = vdwg.mxu0
    %6266 = vmatpush.bf16.msra.mxu0 %v6058
    %6267 = vmatpush.bf16.msra.mxu0 %v6054
    %6268 = vmatpush.bf16.msra.mxu0 %v6050
    %6269 = vmatpush.bf16.msra.mxu0 %v6046
    %6270 = vmatpush.bf16.msra.mxu0 %v6042
    %6271 = vmatpush.bf16.msra.mxu0 %v6038
    %6272 = vmatpush.bf16.msra.mxu0 %v6034
    %6273 = vmatpush.bf16.msra.mxu0 %v6030
    %6274 = vmatmul.bf16.gmra.mxu0 %v6066
    %v6275 = vpop.f32.mrf.mxu0
    %v6276 = vadd.f32 %v6263, %v6275
    %v6277 = vpop.f32.mrf.mxu0
    %6278 = vdwg.mxu0
    %v6283 = vrot.slane %v6172, 7
    %v6284 = vrot.slane %v6224, 6
    %v6285 = vrot.slane %v6276, 5
    %vm6286 = vcmask 1040384
    %v6287 = vsel %vm6286, %v6120, %v6283
    %vm6288 = vcmask 1042434
    %v6289 = vsel %vm6288, %v6284, %v6285
    %vm6290 = vcmask 1041408
    %v6291 = vsel %vm6290, %v6287, %v6289
    %v6293 = vlaneseq
    %vm6294 = vcmp.ge.s32.totalorder %v6293, 0
    %vm6295 = vcmp.lt.s32.totalorder %v6293, 512
    %vm6296 = vmand %vm6294, %vm6295
    %6297 = vst.msk [vmem:[#allocation3] sm:$0xf] %vm6296, %v6291
    // Predicated region
    $region30: #{overfit_mlp_forward.1} parent=1 // pred_check
      _
    $region31: #{overfit_mlp_forward.1} parent=1 // pred_check_branch
      %6299 = sbr.rel (0) target = $region33
    $region32: #{overfit_mlp_forward.1} parent=1 // pred_region
      %6301 = vsyncadd [#allocation4], 0
      %s6303 = sshll.u32 [#allocation3], 4
      %s6304 = int_to_ptr.vmem [resolvable:$true] %s6303
      %s6305 = sshll.u32 %s7, 4
      %s6306 = int_to_ptr.hbm [resolvable:$true] %s6305
      %6308 = dma.vmem_to_hbm [thread:$0]  %s6304, 64, %s6306, [#allocation4]
    $region33: #{overfit_mlp_forward.1} parent=1 // pred_fallthru
      _
    // Predicated region
    $region34: #{overfit_mlp_forward.1} parent=1 // pred_check
      _
    $region35: #{overfit_mlp_forward.1} parent=1 // pred_check_branch
      %6310 = sbr.rel (0) target = $region37
    $region36: #{overfit_mlp_forward.1} parent=1 // pred_region
      %6312 = dma.done [#allocation4], 64
    $region37: #{overfit_mlp_forward.1} parent=1 // pred_fallthru
      _
    %6313 = vsyncpa [#allocation4], 1

</llo_original>
